<compile_context>
chip_gen: v7x
topology: tpu7x:2x2x1
jax: 0.10.0
libtpu: 0.0.40
codegen_flags: <defaults>
</compile_context>

<pallas_src>
import functools

import numpy as np
import jax
import jax.numpy as jnp
from jax.experimental import pallas as pl
from jax.experimental.pallas import tpu as pltpu


# ---------------------------------------------------------------------------
# Fused kernel (one batch element per grid step)
# ---------------------------------------------------------------------------
def _esa_kernel(x_ref, w1x1_ref, wstk_ref, g2_ref, g3_ref, up_ref, out_ref,
                *, f, C, Wo, Ph, Pw, off_wf, off_w4):
    bf16 = jnp.bfloat16
    PP = Ph * Pw

    # Packed weights (static, 16-row-aligned slices -> no relayout).
    w1 = w1x1_ref[0:f, 0:C]                       # (f, C)   conv1   (1x1)
    wf = w1x1_ref[off_wf:off_wf + f, 0:f]         # (f, f)   conv_f  (1x1)
    w4 = w1x1_ref[off_w4:off_w4 + C, 0:f]         # (C, f)   conv4   (1x1)
    w2s = wstk_ref[0]                             # (9f, f)  conv2   (3x3 s2 p0)
    wmaxs = wstk_ref[1]                           # (9f, f)  conv_max(3x3 p1)
    w3s = wstk_ref[2]                             # (9f, f)  conv3   (3x3 p1)
    w3bs = wstk_ref[3]                            # (9f, f)  conv3_  (3x3 p1)

    # conv1 (1x1): (f, C) @ (C, HW) -> (f, HW)       (pixels on lanes)
    xt = x_ref[...]                               # already bf16
    c1t = jnp.dot(w1, xt, preferred_element_type=jnp.float32)

    # conv_f (1x1): (f, f) @ (f, HW)
    cft = jnp.dot(wf, c1t.astype(bf16), preferred_element_type=jnp.float32)

    def conv3x3(in_t, wstack, g_ref):
        """3x3 conv via tap selection.  in_t: (f, P) f32.  wstack: (9f, f) bf16.
        g_ref: (9P, Q) 0/1 selection matrix (encodes stride + zero padding).
        Per-tap slices (k*f rows of z, k*P rows of g) are tile aligned, so the
        9 accumulating matmuls need no lane concat / relayout."""
        P = g_ref.shape[0] // 9
        z = jnp.dot(wstack, in_t.astype(bf16),
                    preferred_element_type=jnp.float32)            # (9f, P)
        acc = None
        for k in range(9):
            part = jnp.dot(z[k * f:(k + 1) * f, :].astype(bf16),
                           g_ref[k * P:(k + 1) * P, :],
                           preferred_element_type=jnp.float32)     # (f, Q)
            acc = part if acc is None else acc + part
        return acc

    # conv2 (3x3, stride 2, padding 0): (f, HW) -> (f, Ho*Wo)
    c2t = conv3x3(c1t, w2s, g2_ref)

    # max_pool2d(kernel_size=7, stride=3): (f, Ho*Wo) -> (f, Ph*Pw)
    # TODO(synk): for large PP switch this unroll to a fori_loop writing a
    # (f, PP) VMEM scratch; at PP==1 (test shape) the unroll is already minimal.
    cols = []
    for pi in range(Ph):
        for pj in range(Pw):
            win = None
            for dy in range(7):
                start = (3 * pi + dy) * Wo + 3 * pj
                row = c2t[:, start:start + 7]                      # (f, 7)
                win = row if win is None else jnp.maximum(win, row)
            cols.append(jnp.max(win, axis=1, keepdims=True))       # (f, 1)
    vt = cols[0] if len(cols) == 1 else jnp.concatenate(cols, axis=1)

    if PP == 1:
        # Fast path: padding=1 conv on a 1x1 map only sees the center tap, so
        # each pooled-map conv is one (f, f) @ (f, 1) matmul (g3 unused).
        def conv_center(in_t, wstack):
            return jnp.dot(wstack[4 * f:5 * f, :], in_t.astype(bf16),
                           preferred_element_type=jnp.float32)
        v_range = jnp.maximum(conv_center(vt, wmaxs), 0.0)
        c3a = jnp.maximum(conv_center(v_range, w3s), 0.0)
        c3b = conv_center(c3a, w3bs)                               # (f, 1)
        # bilinear upsample of a 1x1 map == broadcast (up row is all ones)
        up = c3b * up_ref[...].astype(jnp.float32)                 # (f, HW)
    else:
        v_range = jnp.maximum(conv3x3(vt, wmaxs, g3_ref), 0.0)
        c3a = jnp.maximum(conv3x3(v_range, w3s, g3_ref), 0.0)
        c3b = conv3x3(c3a, w3bs, g3_ref)                           # (f, PP)
        up = jnp.dot(c3b.astype(bf16), up_ref[...],
                     preferred_element_type=jnp.float32)           # (f, HW)

    # conv4 (1x1) + exact sigmoid (f32 math, per review correctness note)
    yt = (up + cft).astype(bf16)
    c4 = jnp.dot(w4, yt, preferred_element_type=jnp.float32)       # (C, HW)
    out_ref[...] = (1.0 / (1.0 + jnp.exp(-c4))).astype(out_ref.dtype)


# ---------------------------------------------------------------------------
# Host-precomputed, shape-dependent constants
# ---------------------------------------------------------------------------
def _conv3x3_tap_matrix(h_in, w_in, stride, pad):
    """S[(k*h_in*w_in + iy*w_in + ix), (oi*w_out + oj)] = 1 iff input pixel
    (iy, ix) is tap k (= ky*3+kx) of output (oi, oj).  Zero rows encode the
    implicit zero padding."""
    h_out = (h_in + 2 * pad - 3) // stride + 1
    w_out = (w_in + 2 * pad - 3) // stride + 1
    s = np.zeros((9, h_in * w_in, h_out * w_out), np.float32)
    for oi in range(h_out):
        for oj in range(w_out):
            o = oi * w_out + oj
            for ky in range(3):
                for kx in range(3):
                    iy = oi * stride + ky - pad
                    ix = oj * stride + kx - pad
                    if 0 <= iy < h_in and 0 <= ix < w_in:
                        s[ky * 3 + kx, iy * w_in + ix, o] = 1.0
    return s.reshape(9 * h_in * w_in, h_out * w_out), h_out, w_out


def _bilinear_matrix(out_size, in_size):
    """Row weights of F.interpolate(mode='bilinear', align_corners=False)."""
    r = np.zeros((out_size, in_size), np.float32)
    scale = in_size / out_size
    for i in range(out_size):
        src = max((i + 0.5) * scale - 0.5, 0.0)
        i0 = min(int(np.floor(src)), in_size - 1)
        i1 = min(i0 + 1, in_size - 1)
        frac = src - i0
        r[i, i0] += 1.0 - frac
        r[i, i1] += frac
    return r


# ---------------------------------------------------------------------------
# Wrapper (NCHW in, NCHW out -- pure reshapes, no transposes)
# ---------------------------------------------------------------------------
def esa_forward(x_nchw, params):
    B, C, H, W = x_nchw.shape
    f = params["w1"].shape[0]
    n_feats = params["w4"].shape[0]
    assert C == n_feats

    Ho = (H - 3) // 2 + 1            # conv2: 3x3, stride 2, padding 0
    Wo = (W - 3) // 2 + 1
    Ph = (Ho - 7) // 3 + 1           # max_pool2d(7, 3)
    Pw = (Wo - 7) // 3 + 1
    assert Ph >= 1 and Pw >= 1, "input too small for max_pool2d(7, 3)"

    HW, PP = H * W, Ph * Pw
    bf16 = jnp.bfloat16

    # Host-precomputed constants.
    # TODO(synk): g2 is O(HW * Ho*Wo) and grows quadratically with pixels; for
    # inputs much beyond ~48x48 replace the G-matrix conv2 with 9 shifted
    # accumulating matmuls (pltpu.roll +/-1,+/-W + boundary masks, stride-2
    # decimation via pl.ds(stride=2)) or tile G's Q axis on an extra grid dim,
    # and set pltpu.CompilerParams(vmem_limit_bytes=...) explicitly.
    g2_np, ho2, wo2 = _conv3x3_tap_matrix(H, W, stride=2, pad=0)
    assert (ho2, wo2) == (Ho, Wo)
    g3_np, _, _ = _conv3x3_tap_matrix(Ph, Pw, stride=1, pad=1)
    up_np = np.einsum("hp,wq->pqhw", _bilinear_matrix(H, Ph),
                      _bilinear_matrix(W, Pw)).reshape(PP, HW)

    g2 = jnp.asarray(g2_np, bf16)
    g3 = jnp.asarray(g3_np, bf16)    # unused by the kernel when PP == 1 (tiny)
    upT = jnp.asarray(up_np, bf16)

    # Coalesce the four 3x3 weight stacks -> one (4, 9f, f) operand.
    # Layout per stack: rows = tap*f + cout (tap k = ky*3 + kx), cols = cin.
    wstk = jnp.stack([params["w2"].reshape(9 * f, f),
                      params["wmax"].reshape(9 * f, f),
                      params["w3"].reshape(9 * f, f),
                      params["w3b"].reshape(9 * f, f)], axis=0).astype(bf16)

    # Coalesce the three 1x1 weights -> one 2D slab with 16-row-aligned slots
    # (16 = bf16 sublane packing, so in-kernel slices stay tile aligned).
    rup16 = lambda n: -(-n // 16) * 16
    off_wf = rup16(f)
    off_w4 = off_wf + rup16(f)
    rows, cols = off_w4 + n_feats, max(n_feats, f)
    w1x1 = jnp.zeros((rows, cols), bf16)
    w1x1 = w1x1.at[0:f, 0:n_feats].set(params["w1"].astype(bf16))
    w1x1 = w1x1.at[off_wf:off_wf + f, 0:f].set(params["wf"].astype(bf16))
    w1x1 = w1x1.at[off_w4:off_w4 + n_feats, 0:f].set(params["w4"].astype(bf16))

    # bf16 input: halves the only per-step HBM read scaling with B*HW (the
    # kernel fed the MXU in bf16 anyway).  Output stays f32 (sigmoid gate).
    x = x_nchw.astype(bf16).reshape(B, C, HW)

    kernel = functools.partial(_esa_kernel, f=f, C=n_feats, Wo=Wo, Ph=Ph,
                               Pw=Pw, off_wf=off_wf, off_w4=off_w4)

    def run(single_buffer_consts):
        # Constant operands: their index_map never changes across the grid, so
        # single buffering (pl.Buffered(1)) halves their VMEM footprint.
        if single_buffer_consts:
            cspec = lambda shp, imap: pl.BlockSpec(
                shp, imap, pipeline_mode=pl.Buffered(1))
        else:
            cspec = lambda shp, imap: pl.BlockSpec(shp, imap)
        c2d = lambda b: (0, 0)
        c3d = lambda b: (0, 0, 0)
        return pl.pallas_call(
            kernel,
            out_shape=jax.ShapeDtypeStruct((B, n_feats, HW), jnp.float32),
            grid=(B,),                                  # B=2 feeds both v7x TCs
            in_specs=[
                pl.BlockSpec((None, C, HW), lambda b: (b, 0, 0)),   # x
                cspec((rows, cols), c2d),                           # 1x1 weights
                cspec((4, 9 * f, f), c3d),                          # 3x3 weights
                cspec((9 * HW, Ho * Wo), c2d),                      # conv2 taps
                cspec((9 * PP, PP), c2d),                           # same-pad taps
                cspec((PP, HW), c2d),                               # bilinear map
            ],
            out_specs=pl.BlockSpec((None, n_feats, HW), lambda b: (b, 0, 0)),
            compiler_params=pltpu.CompilerParams(
                dimension_semantics=("parallel",)),
        )(x, w1x1, wstk, g2, g3, upT)

    try:
        out = run(True)
    except Exception:
        # pipeline_mode=pl.Buffered(1) not supported on this jax build ->
        # fall back to default double-buffered constants (correctness first).
        out = run(False)

    # m already has n_feats channels -> expand_as(x) is the identity here.
    return out.reshape(B, n_feats, H, W)


# ---------------------------------------------------------------------------
# Deterministic parameter init (shapes implied by ESA(n_feats, conv), bias=False)
# ---------------------------------------------------------------------------
def init_params(key, n_feats):
    f = n_feats // 4
    ks = jax.random.split(key, 7)

    def u(k, shape, fan_in):
        bound = 1.0 / np.sqrt(fan_in)
        return jax.random.uniform(k, shape, jnp.float32, -bound, bound)

    # Layouts used by the kernel:
    #  - 1x1 convs: (Cout, Cin)
    #  - 3x3 convs: (9, Cout, Cin), tap index k = ky*3 + kx
    return {
        "w1":   u(ks[0], (f, n_feats), n_feats),   # conv1  (1x1)
        "wf":   u(ks[1], (f, f), f),               # conv_f (1x1)
        "w2":   u(ks[2], (9, f, f), 9 * f),        # conv2  (3x3, s2, p0)
        "wmax": u(ks[3], (9, f, f), 9 * f),        # conv_max (3x3, p1)
        "w3":   u(ks[4], (9, f, f), 9 * f),        # conv3  (3x3, p1)
        "w3b":  u(ks[5], (9, f, f), 9 * f),        # conv3_ (3x3, p1)
        "w4":   u(ks[6], (n_feats, f), f),         # conv4  (1x1)
    }


if __name__ == "__main__":
    key = jax.random.PRNGKey(0)
    k_x, k_p = jax.random.split(key)

    B, n_feats, H, W = 2, 32, 16, 16
    params = init_params(k_p, n_feats)
    x = jax.random.normal(k_x, (B, n_feats, H, W), jnp.float32)

    out = esa_forward(x, params)
    out = jax.block_until_ready(out)
    assert out.shape == (B, n_feats, H, W)
    assert bool(jnp.isfinite(out).all())
    print("KERNEL_OK")
</pallas_src>

<mosaic_0001>
module attributes {stable_mosaic.version = 11 : i64} {
  func.func @_esa_kernel(%arg0: i32, %arg1: memref<1x32x256xbf16, #tpu.memory_space<vmem>>, %arg2: memref<64x32xbf16, #tpu.memory_space<vmem>>, %arg3: memref<4x72x8xbf16, #tpu.memory_space<vmem>>, %arg4: memref<2304x49xbf16, #tpu.memory_space<vmem>>, %arg5: memref<9x1xbf16, #tpu.memory_space<vmem>>, %arg6: memref<1x256xbf16, #tpu.memory_space<vmem>>, %arg7: memref<1x32x256xf32, #tpu.memory_space<vmem>>) attributes {dimension_semantics = [#tpu.dimension_semantics<parallel>], iteration_bounds = array<i64: 2>, scalar_prefetch = 0 : i64, scratch_operands = 0 : i64, tpu.core_type = #tpu.core_type<tc>, window_params = [{transform_indices = @transform_0, window_bounds = array<i64: 1, 32, 256>}, {pipeline_mode = #tpu.pipeline_mode<synchronous>, transform_indices = @transform_1, window_bounds = array<i64: 64, 32>}, {pipeline_mode = #tpu.pipeline_mode<synchronous>, transform_indices = @transform_2, window_bounds = array<i64: 4, 72, 8>}, {pipeline_mode = #tpu.pipeline_mode<synchronous>, transform_indices = @transform_3, window_bounds = array<i64: 2304, 49>}, {pipeline_mode = #tpu.pipeline_mode<synchronous>, transform_indices = @transform_4, window_bounds = array<i64: 9, 1>}, {pipeline_mode = #tpu.pipeline_mode<synchronous>, transform_indices = @transform_5, window_bounds = array<i64: 1, 256>}, {transform_indices = @transform_6, window_bounds = array<i64: 1, 32, 256>}]} {
    %c0 = arith.constant 0 : index
    %c0_0 = arith.constant 0 : index
    %0 = vector.load %arg2[%c0, %c0_0] : memref<64x32xbf16, #tpu.memory_space<vmem>>, vector<8x32xbf16>
    %c16 = arith.constant 16 : index
    %c0_1 = arith.constant 0 : index
    %1 = vector.load %arg2[%c16, %c0_1] : memref<64x32xbf16, #tpu.memory_space<vmem>>, vector<8x8xbf16>
    %c32 = arith.constant 32 : index
    %c0_2 = arith.constant 0 : index
    %2 = vector.load %arg2[%c32, %c0_2] : memref<64x32xbf16, #tpu.memory_space<vmem>>, vector<32x8xbf16>
    %c0_3 = arith.constant 0 : index
    %c0_4 = arith.constant 0 : index
    %c0_5 = arith.constant 0 : index
    %3 = vector.load %arg3[%c0_3, %c0_4, %c0_5] : memref<4x72x8xbf16, #tpu.memory_space<vmem>>, vector<1x72x8xbf16>
    %4 = vector.shape_cast %3 : vector<1x72x8xbf16> to vector<72x8xbf16>
    %c1 = arith.constant 1 : index
    %c0_6 = arith.constant 0 : index
    %c0_7 = arith.constant 0 : index
    %5 = vector.load %arg3[%c1, %c0_6, %c0_7] : memref<4x72x8xbf16, #tpu.memory_space<vmem>>, vector<1x72x8xbf16>
    %6 = vector.shape_cast %5 : vector<1x72x8xbf16> to vector<72x8xbf16>
    %c2 = arith.constant 2 : index
    %c0_8 = arith.constant 0 : index
    %c0_9 = arith.constant 0 : index
    %7 = vector.load %arg3[%c2, %c0_8, %c0_9] : memref<4x72x8xbf16, #tpu.memory_space<vmem>>, vector<1x72x8xbf16>
    %8 = vector.shape_cast %7 : vector<1x72x8xbf16> to vector<72x8xbf16>
    %c3 = arith.constant 3 : index
    %c0_10 = arith.constant 0 : index
    %c0_11 = arith.constant 0 : index
    %9 = vector.load %arg3[%c3, %c0_10, %c0_11] : memref<4x72x8xbf16, #tpu.memory_space<vmem>>, vector<1x72x8xbf16>
    %10 = vector.shape_cast %9 : vector<1x72x8xbf16> to vector<72x8xbf16>
    %c0_12 = arith.constant 0 : index
    %c0_13 = arith.constant 0 : index
    %c0_14 = arith.constant 0 : index
    %11 = vector.load %arg1[%c0_12, %c0_13, %c0_14] : memref<1x32x256xbf16, #tpu.memory_space<vmem>>, vector<1x32x256xbf16>
    %12 = vector.shape_cast %11 : vector<1x32x256xbf16> to vector<32x256xbf16>
    %cst = arith.constant dense<0.000000e+00> : vector<8x256xf32>
    %13 = tpu.matmul %0, %12, %cst {dimension_numbers = #tpu.dot_dimension_numbers<[1], [0], [0], [1], [0, 0, 1, 1], [], []>} : vector<8x32xbf16>, vector<32x256xbf16>, vector<8x256xf32> -> vector<8x256xf32>
    %14 = arith.truncf %13 : vector<8x256xf32> to vector<8x256xbf16>
    %cst_15 = arith.constant dense<0.000000e+00> : vector<8x256xf32>
    %15 = tpu.matmul %1, %14, %cst_15 {dimension_numbers = #tpu.dot_dimension_numbers<[1], [0], [0], [1], [0, 0, 1, 1], [], []>} : vector<8x8xbf16>, vector<8x256xbf16>, vector<8x256xf32> -> vector<8x256xf32>
    %16 = arith.truncf %13 : vector<8x256xf32> to vector<8x256xbf16>
    %cst_16 = arith.constant dense<0.000000e+00> : vector<72x256xf32>
    %17 = tpu.matmul %4, %16, %cst_16 {dimension_numbers = #tpu.dot_dimension_numbers<[1], [0], [0], [1], [0, 0, 1, 1], [], []>} : vector<72x8xbf16>, vector<8x256xbf16>, vector<72x256xf32> -> vector<72x256xf32>
    %18 = vector.extract_strided_slice %17 {offsets = [0, 0], sizes = [8, 256], strides = [1, 1]} : vector<72x256xf32> to vector<8x256xf32>
    %19 = arith.truncf %18 : vector<8x256xf32> to vector<8x256xbf16>
    %c0_17 = arith.constant 0 : index
    %c0_18 = arith.constant 0 : index
    %20 = vector.load %arg4[%c0_17, %c0_18] : memref<2304x49xbf16, #tpu.memory_space<vmem>>, vector<256x49xbf16>
    %cst_19 = arith.constant dense<0.000000e+00> : vector<8x49xf32>
    %21 = tpu.matmul %19, %20, %cst_19 {dimension_numbers = #tpu.dot_dimension_numbers<[1], [0], [0], [1], [0, 0, 1, 1], [], []>} : vector<8x256xbf16>, vector<256x49xbf16>, vector<8x49xf32> -> vector<8x49xf32>
    %22 = vector.extract_strided_slice %17 {offsets = [8, 0], sizes = [8, 256], strides = [1, 1]} : vector<72x256xf32> to vector<8x256xf32>
    %23 = arith.truncf %22 : vector<8x256xf32> to vector<8x256xbf16>
    %c256 = arith.constant 256 : index
    %c0_20 = arith.constant 0 : index
    %24 = vector.load %arg4[%c256, %c0_20] : memref<2304x49xbf16, #tpu.memory_space<vmem>>, vector<256x49xbf16>
    %cst_21 = arith.constant dense<0.000000e+00> : vector<8x49xf32>
    %25 = tpu.matmul %23, %24, %cst_21 {dimension_numbers = #tpu.dot_dimension_numbers<[1], [0], [0], [1], [0, 0, 1, 1], [], []>} : vector<8x256xbf16>, vector<256x49xbf16>, vector<8x49xf32> -> vector<8x49xf32>
    %26 = arith.addf %21, %25 : vector<8x49xf32>
    %27 = vector.extract_strided_slice %17 {offsets = [16, 0], sizes = [8, 256], strides = [1, 1]} : vector<72x256xf32> to vector<8x256xf32>
    %28 = arith.truncf %27 : vector<8x256xf32> to vector<8x256xbf16>
    %c512 = arith.constant 512 : index
    %c0_22 = arith.constant 0 : index
    %29 = vector.load %arg4[%c512, %c0_22] : memref<2304x49xbf16, #tpu.memory_space<vmem>>, vector<256x49xbf16>
    %cst_23 = arith.constant dense<0.000000e+00> : vector<8x49xf32>
    %30 = tpu.matmul %28, %29, %cst_23 {dimension_numbers = #tpu.dot_dimension_numbers<[1], [0], [0], [1], [0, 0, 1, 1], [], []>} : vector<8x256xbf16>, vector<256x49xbf16>, vector<8x49xf32> -> vector<8x49xf32>
    %31 = arith.addf %26, %30 : vector<8x49xf32>
    %32 = vector.extract_strided_slice %17 {offsets = [24, 0], sizes = [8, 256], strides = [1, 1]} : vector<72x256xf32> to vector<8x256xf32>
    %33 = arith.truncf %32 : vector<8x256xf32> to vector<8x256xbf16>
    %c768 = arith.constant 768 : index
    %c0_24 = arith.constant 0 : index
    %34 = vector.load %arg4[%c768, %c0_24] : memref<2304x49xbf16, #tpu.memory_space<vmem>>, vector<256x49xbf16>
    %cst_25 = arith.constant dense<0.000000e+00> : vector<8x49xf32>
    %35 = tpu.matmul %33, %34, %cst_25 {dimension_numbers = #tpu.dot_dimension_numbers<[1], [0], [0], [1], [0, 0, 1, 1], [], []>} : vector<8x256xbf16>, vector<256x49xbf16>, vector<8x49xf32> -> vector<8x49xf32>
    %36 = arith.addf %31, %35 : vector<8x49xf32>
    %37 = vector.extract_strided_slice %17 {offsets = [32, 0], sizes = [8, 256], strides = [1, 1]} : vector<72x256xf32> to vector<8x256xf32>
    %38 = arith.truncf %37 : vector<8x256xf32> to vector<8x256xbf16>
    %c1024 = arith.constant 1024 : index
    %c0_26 = arith.constant 0 : index
    %39 = vector.load %arg4[%c1024, %c0_26] : memref<2304x49xbf16, #tpu.memory_space<vmem>>, vector<256x49xbf16>
    %cst_27 = arith.constant dense<0.000000e+00> : vector<8x49xf32>
    %40 = tpu.matmul %38, %39, %cst_27 {dimension_numbers = #tpu.dot_dimension_numbers<[1], [0], [0], [1], [0, 0, 1, 1], [], []>} : vector<8x256xbf16>, vector<256x49xbf16>, vector<8x49xf32> -> vector<8x49xf32>
    %41 = arith.addf %36, %40 : vector<8x49xf32>
    %42 = vector.extract_strided_slice %17 {offsets = [40, 0], sizes = [8, 256], strides = [1, 1]} : vector<72x256xf32> to vector<8x256xf32>
    %43 = arith.truncf %42 : vector<8x256xf32> to vector<8x256xbf16>
    %c1280 = arith.constant 1280 : index
    %c0_28 = arith.constant 0 : index
    %44 = vector.load %arg4[%c1280, %c0_28] : memref<2304x49xbf16, #tpu.memory_space<vmem>>, vector<256x49xbf16>
    %cst_29 = arith.constant dense<0.000000e+00> : vector<8x49xf32>
    %45 = tpu.matmul %43, %44, %cst_29 {dimension_numbers = #tpu.dot_dimension_numbers<[1], [0], [0], [1], [0, 0, 1, 1], [], []>} : vector<8x256xbf16>, vector<256x49xbf16>, vector<8x49xf32> -> vector<8x49xf32>
    %46 = arith.addf %41, %45 : vector<8x49xf32>
    %47 = vector.extract_strided_slice %17 {offsets = [48, 0], sizes = [8, 256], strides = [1, 1]} : vector<72x256xf32> to vector<8x256xf32>
    %48 = arith.truncf %47 : vector<8x256xf32> to vector<8x256xbf16>
    %c1536 = arith.constant 1536 : index
    %c0_30 = arith.constant 0 : index
    %49 = vector.load %arg4[%c1536, %c0_30] : memref<2304x49xbf16, #tpu.memory_space<vmem>>, vector<256x49xbf16>
    %cst_31 = arith.constant dense<0.000000e+00> : vector<8x49xf32>
    %50 = tpu.matmul %48, %49, %cst_31 {dimension_numbers = #tpu.dot_dimension_numbers<[1], [0], [0], [1], [0, 0, 1, 1], [], []>} : vector<8x256xbf16>, vector<256x49xbf16>, vector<8x49xf32> -> vector<8x49xf32>
    %51 = arith.addf %46, %50 : vector<8x49xf32>
    %52 = vector.extract_strided_slice %17 {offsets = [56, 0], sizes = [8, 256], strides = [1, 1]} : vector<72x256xf32> to vector<8x256xf32>
    %53 = arith.truncf %52 : vector<8x256xf32> to vector<8x256xbf16>
    %c1792 = arith.constant 1792 : index
    %c0_32 = arith.constant 0 : index
    %54 = vector.load %arg4[%c1792, %c0_32] : memref<2304x49xbf16, #tpu.memory_space<vmem>>, vector<256x49xbf16>
    %cst_33 = arith.constant dense<0.000000e+00> : vector<8x49xf32>
    %55 = tpu.matmul %53, %54, %cst_33 {dimension_numbers = #tpu.dot_dimension_numbers<[1], [0], [0], [1], [0, 0, 1, 1], [], []>} : vector<8x256xbf16>, vector<256x49xbf16>, vector<8x49xf32> -> vector<8x49xf32>
    %56 = arith.addf %51, %55 : vector<8x49xf32>
    %57 = vector.extract_strided_slice %17 {offsets = [64, 0], sizes = [8, 256], strides = [1, 1]} : vector<72x256xf32> to vector<8x256xf32>
    %58 = arith.truncf %57 : vector<8x256xf32> to vector<8x256xbf16>
    %c2048 = arith.constant 2048 : index
    %c0_34 = arith.constant 0 : index
    %59 = vector.load %arg4[%c2048, %c0_34] : memref<2304x49xbf16, #tpu.memory_space<vmem>>, vector<256x49xbf16>
    %cst_35 = arith.constant dense<0.000000e+00> : vector<8x49xf32>
    %60 = tpu.matmul %58, %59, %cst_35 {dimension_numbers = #tpu.dot_dimension_numbers<[1], [0], [0], [1], [0, 0, 1, 1], [], []>} : vector<8x256xbf16>, vector<256x49xbf16>, vector<8x49xf32> -> vector<8x49xf32>
    %61 = arith.addf %56, %60 : vector<8x49xf32>
    %62 = vector.extract_strided_slice %61 {offsets = [0, 0], sizes = [8, 7], strides = [1, 1]} : vector<8x49xf32> to vector<8x7xf32>
    %63 = vector.extract_strided_slice %61 {offsets = [0, 7], sizes = [8, 7], strides = [1, 1]} : vector<8x49xf32> to vector<8x7xf32>
    %64 = arith.maximumf %62, %63 : vector<8x7xf32>
    %65 = vector.extract_strided_slice %61 {offsets = [0, 14], sizes = [8, 7], strides = [1, 1]} : vector<8x49xf32> to vector<8x7xf32>
    %66 = arith.maximumf %64, %65 : vector<8x7xf32>
    %67 = vector.extract_strided_slice %61 {offsets = [0, 21], sizes = [8, 7], strides = [1, 1]} : vector<8x49xf32> to vector<8x7xf32>
    %68 = arith.maximumf %66, %67 : vector<8x7xf32>
    %69 = vector.extract_strided_slice %61 {offsets = [0, 28], sizes = [8, 7], strides = [1, 1]} : vector<8x49xf32> to vector<8x7xf32>
    %70 = arith.maximumf %68, %69 : vector<8x7xf32>
    %71 = vector.extract_strided_slice %61 {offsets = [0, 35], sizes = [8, 7], strides = [1, 1]} : vector<8x49xf32> to vector<8x7xf32>
    %72 = arith.maximumf %70, %71 : vector<8x7xf32>
    %73 = vector.extract_strided_slice %61 {offsets = [0, 42], sizes = [8, 7], strides = [1, 1]} : vector<8x49xf32> to vector<8x7xf32>
    %74 = arith.maximumf %72, %73 : vector<8x7xf32>
    %cst_36 = arith.constant dense<0xFF800000> : vector<8xf32>
    %75 = vector.multi_reduction <maximumf>, %74, %cst_36 [1] : vector<8x7xf32> to vector<8xf32>
    %76 = vector.shape_cast %75 : vector<8xf32> to vector<8x1xf32>
    %77 = vector.extract_strided_slice %6 {offsets = [32, 0], sizes = [8, 8], strides = [1, 1]} : vector<72x8xbf16> to vector<8x8xbf16>
    %78 = arith.truncf %76 : vector<8x1xf32> to vector<8x1xbf16>
    %cst_37 = arith.constant dense<0.000000e+00> : vector<8x1xf32>
    %79 = tpu.matmul %77, %78, %cst_37 {dimension_numbers = #tpu.dot_dimension_numbers<[1], [0], [0], [1], [0, 0, 1, 1], [], []>} : vector<8x8xbf16>, vector<8x1xbf16>, vector<8x1xf32> -> vector<8x1xf32>
    %cst_38 = arith.constant 0.000000e+00 : f32
    %80 = vector.broadcast %cst_38 : f32 to vector<8x1xf32>
    %81 = arith.maximumf %79, %80 : vector<8x1xf32>
    %82 = vector.extract_strided_slice %8 {offsets = [32, 0], sizes = [8, 8], strides = [1, 1]} : vector<72x8xbf16> to vector<8x8xbf16>
    %83 = arith.truncf %81 : vector<8x1xf32> to vector<8x1xbf16>
    %cst_39 = arith.constant dense<0.000000e+00> : vector<8x1xf32>
    %84 = tpu.matmul %82, %83, %cst_39 {dimension_numbers = #tpu.dot_dimension_numbers<[1], [0], [0], [1], [0, 0, 1, 1], [], []>} : vector<8x8xbf16>, vector<8x1xbf16>, vector<8x1xf32> -> vector<8x1xf32>
    %cst_40 = arith.constant 0.000000e+00 : f32
    %85 = vector.broadcast %cst_40 : f32 to vector<8x1xf32>
    %86 = arith.maximumf %84, %85 : vector<8x1xf32>
    %87 = vector.extract_strided_slice %10 {offsets = [32, 0], sizes = [8, 8], strides = [1, 1]} : vector<72x8xbf16> to vector<8x8xbf16>
    %88 = arith.truncf %86 : vector<8x1xf32> to vector<8x1xbf16>
    %cst_41 = arith.constant dense<0.000000e+00> : vector<8x1xf32>
    %89 = tpu.matmul %87, %88, %cst_41 {dimension_numbers = #tpu.dot_dimension_numbers<[1], [0], [0], [1], [0, 0, 1, 1], [], []>} : vector<8x8xbf16>, vector<8x1xbf16>, vector<8x1xf32> -> vector<8x1xf32>
    %c0_42 = arith.constant 0 : index
    %c0_43 = arith.constant 0 : index
    %90 = vector.load %arg6[%c0_42, %c0_43] : memref<1x256xbf16, #tpu.memory_space<vmem>>, vector<1x256xbf16>
    %91 = arith.extf %90 : vector<1x256xbf16> to vector<1x256xf32>
    %92 = vector.broadcast %89 : vector<8x1xf32> to vector<8x256xf32>
    %93 = vector.broadcast %91 : vector<1x256xf32> to vector<8x256xf32>
    %94 = arith.mulf %92, %93 : vector<8x256xf32>
    %95 = arith.addf %94, %15 : vector<8x256xf32>
    %96 = arith.truncf %95 : vector<8x256xf32> to vector<8x256xbf16>
    %cst_44 = arith.constant dense<0.000000e+00> : vector<32x256xf32>
    %97 = tpu.matmul %2, %96, %cst_44 {dimension_numbers = #tpu.dot_dimension_numbers<[1], [0], [0], [1], [0, 0, 1, 1], [], []>} : vector<32x8xbf16>, vector<8x256xbf16>, vector<32x256xf32> -> vector<32x256xf32>
    %cst_45 = arith.constant 0.000000e+00 : f32
    %98 = vector.broadcast %cst_45 : f32 to vector<32x256xf32>
    %99 = arith.subf %98, %97 : vector<32x256xf32>
    %100 = math.exp %99 : vector<32x256xf32>
    %cst_46 = arith.constant 1.000000e+00 : f32
    %101 = vector.broadcast %cst_46 : f32 to vector<32x256xf32>
    %102 = arith.addf %101, %100 : vector<32x256xf32>
    %cst_47 = arith.constant 1.000000e+00 : f32
    %103 = vector.broadcast %cst_47 : f32 to vector<32x256xf32>
    %104 = arith.divf %103, %102 : vector<32x256xf32>
    %c0_48 = arith.constant 0 : index
    %c0_49 = arith.constant 0 : index
    %c0_50 = arith.constant 0 : index
    %105 = vector.load %arg7[%c0_48, %c0_49, %c0_50] : memref<1x32x256xf32, #tpu.memory_space<vmem>>, vector<1x32x256xf32>
    %106 = vector.shape_cast %105 : vector<1x32x256xf32> to vector<32x256xf32>
    %107 = vector.shape_cast %104 : vector<32x256xf32> to vector<1x32x256xf32>
    tpu.vector_store %arg7[%c0_48, %c0_49, %c0_50], %107 {strides = array<i32>} : memref<1x32x256xf32, #tpu.memory_space<vmem>>, vector<1x32x256xf32>,
    return
  }
  func.func @transform_0(%arg0: i32) -> (i32, i32, i32) {
    %c0_i32 = arith.constant 0 : i32
    %c0_i32_0 = arith.constant 0 : i32
    %c0_i32_1 = arith.constant 0 : i32
    return %arg0, %c0_i32, %c0_i32_0 : i32, i32, i32
  }
  func.func @transform_1(%arg0: i32) -> (i32, i32) {
    %c0_i32 = arith.constant 0 : i32
    %c0_i32_0 = arith.constant 0 : i32
    %c0_i32_1 = arith.constant 0 : i32
    return %c0_i32, %c0_i32_0 : i32, i32
  }
  func.func @transform_2(%arg0: i32) -> (i32, i32, i32) {
    %c0_i32 = arith.constant 0 : i32
    %c0_i32_0 = arith.constant 0 : i32
    %c0_i32_1 = arith.constant 0 : i32
    %c0_i32_2 = arith.constant 0 : i32
    return %c0_i32, %c0_i32_0, %c0_i32_1 : i32, i32, i32
  }
  func.func @transform_3(%arg0: i32) -> (i32, i32) {
    %c0_i32 = arith.constant 0 : i32
    %c0_i32_0 = arith.constant 0 : i32
    %c0_i32_1 = arith.constant 0 : i32
    return %c0_i32, %c0_i32_0 : i32, i32
  }
  func.func @transform_4(%arg0: i32) -> (i32, i32) {
    %c0_i32 = arith.constant 0 : i32
    %c0_i32_0 = arith.constant 0 : i32
    %c0_i32_1 = arith.constant 0 : i32
    return %c0_i32, %c0_i32_0 : i32, i32
  }
  func.func @transform_5(%arg0: i32) -> (i32, i32) {
    %c0_i32 = arith.constant 0 : i32
    %c0_i32_0 = arith.constant 0 : i32
    %c0_i32_1 = arith.constant 0 : i32
    return %c0_i32, %c0_i32_0 : i32, i32
  }
  func.func @transform_6(%arg0: i32) -> (i32, i32, i32) {
    %c0_i32 = arith.constant 0 : i32
    %c0_i32_0 = arith.constant 0 : i32
    %c0_i32_1 = arith.constant 0 : i32
    return %arg0, %c0_i32, %c0_i32_0 : i32, i32, i32
  }
}

module attributes {stable_mosaic.version = 11 : i64} {
  func.func @_esa_kernel(%arg0: i32, %arg1: memref<1x32x256xbf16, #tpu.memory_space<vmem>>, %arg2: memref<64x32xbf16, #tpu.memory_space<vmem>>, %arg3: memref<4x72x8xbf16, #tpu.memory_space<vmem>>, %arg4: memref<2304x49xbf16, #tpu.memory_space<vmem>>, %arg5: memref<9x1xbf16, #tpu.memory_space<vmem>>, %arg6: memref<1x256xbf16, #tpu.memory_space<vmem>>, %arg7: memref<1x32x256xf32, #tpu.memory_space<vmem>>) attributes {dimension_semantics = [#tpu.dimension_semantics<parallel>], iteration_bounds = array<i64: 2>, scalar_prefetch = 0 : i64, scratch_operands = 0 : i64, tpu.core_type = #tpu.core_type<tc>, window_params = [{transform_indices = @transform_0, window_bounds = array<i64: 1, 32, 256>}, {pipeline_mode = #tpu.pipeline_mode<synchronous>, transform_indices = @transform_1, window_bounds = array<i64: 64, 32>}, {pipeline_mode = #tpu.pipeline_mode<synchronous>, transform_indices = @transform_2, window_bounds = array<i64: 4, 72, 8>}, {pipeline_mode = #tpu.pipeline_mode<synchronous>, transform_indices = @transform_3, window_bounds = array<i64: 2304, 49>}, {pipeline_mode = #tpu.pipeline_mode<synchronous>, transform_indices = @transform_4, window_bounds = array<i64: 9, 1>}, {pipeline_mode = #tpu.pipeline_mode<synchronous>, transform_indices = @transform_5, window_bounds = array<i64: 1, 256>}, {transform_indices = @transform_6, window_bounds = array<i64: 1, 32, 256>}]} {
    %c0 = arith.constant 0 : index
    %c0_0 = arith.constant 0 : index
    %0 = vector.load %arg2[%c0, %c0_0] : memref<64x32xbf16, #tpu.memory_space<vmem>>, vector<8x32xbf16>
    %c16 = arith.constant 16 : index
    %c0_1 = arith.constant 0 : index
    %1 = vector.load %arg2[%c16, %c0_1] : memref<64x32xbf16, #tpu.memory_space<vmem>>, vector<8x8xbf16>
    %c32 = arith.constant 32 : index
    %c0_2 = arith.constant 0 : index
    %2 = vector.load %arg2[%c32, %c0_2] : memref<64x32xbf16, #tpu.memory_space<vmem>>, vector<32x8xbf16>
    %c0_3 = arith.constant 0 : index
    %c0_4 = arith.constant 0 : index
    %c0_5 = arith.constant 0 : index
    %3 = vector.load %arg3[%c0_3, %c0_4, %c0_5] : memref<4x72x8xbf16, #tpu.memory_space<vmem>>, vector<1x72x8xbf16>
    %4 = vector.shape_cast %3 : vector<1x72x8xbf16> to vector<72x8xbf16>
    %c1 = arith.constant 1 : index
    %c0_6 = arith.constant 0 : index
    %c0_7 = arith.constant 0 : index
    %5 = vector.load %arg3[%c1, %c0_6, %c0_7] : memref<4x72x8xbf16, #tpu.memory_space<vmem>>, vector<1x72x8xbf16>
    %6 = vector.shape_cast %5 : vector<1x72x8xbf16> to vector<72x8xbf16>
    %c2 = arith.constant 2 : index
    %c0_8 = arith.constant 0 : index
    %c0_9 = arith.constant 0 : index
    %7 = vector.load %arg3[%c2, %c0_8, %c0_9] : memref<4x72x8xbf16, #tpu.memory_space<vmem>>, vector<1x72x8xbf16>
    %8 = vector.shape_cast %7 : vector<1x72x8xbf16> to vector<72x8xbf16>
    %c3 = arith.constant 3 : index
    %c0_10 = arith.constant 0 : index
    %c0_11 = arith.constant 0 : index
    %9 = vector.load %arg3[%c3, %c0_10, %c0_11] : memref<4x72x8xbf16, #tpu.memory_space<vmem>>, vector<1x72x8xbf16>
    %10 = vector.shape_cast %9 : vector<1x72x8xbf16> to vector<72x8xbf16>
    %c0_12 = arith.constant 0 : index
    %c0_13 = arith.constant 0 : index
    %c0_14 = arith.constant 0 : index
    %11 = vector.load %arg1[%c0_12, %c0_13, %c0_14] : memref<1x32x256xbf16, #tpu.memory_space<vmem>>, vector<1x32x256xbf16>
    %12 = vector.shape_cast %11 : vector<1x32x256xbf16> to vector<32x256xbf16>
    %cst = arith.constant dense<0.000000e+00> : vector<8x256xf32>
    %13 = tpu.matmul %0, %12, %cst {dimension_numbers = #tpu.dot_dimension_numbers<[1], [0], [0], [1], [0, 0, 1, 1], [], []>} : vector<8x32xbf16>, vector<32x256xbf16>, vector<8x256xf32> -> vector<8x256xf32>
    %14 = arith.truncf %13 : vector<8x256xf32> to vector<8x256xbf16>
    %cst_15 = arith.constant dense<0.000000e+00> : vector<8x256xf32>
    %15 = tpu.matmul %1, %14, %cst_15 {dimension_numbers = #tpu.dot_dimension_numbers<[1], [0], [0], [1], [0, 0, 1, 1], [], []>} : vector<8x8xbf16>, vector<8x256xbf16>, vector<8x256xf32> -> vector<8x256xf32>
    %16 = arith.truncf %13 : vector<8x256xf32> to vector<8x256xbf16>
    %cst_16 = arith.constant dense<0.000000e+00> : vector<72x256xf32>
    %17 = tpu.matmul %4, %16, %cst_16 {dimension_numbers = #tpu.dot_dimension_numbers<[1], [0], [0], [1], [0, 0, 1, 1], [], []>} : vector<72x8xbf16>, vector<8x256xbf16>, vector<72x256xf32> -> vector<72x256xf32>
    %18 = vector.extract_strided_slice %17 {offsets = [0, 0], sizes = [8, 256], strides = [1, 1]} : vector<72x256xf32> to vector<8x256xf32>
    %19 = arith.truncf %18 : vector<8x256xf32> to vector<8x256xbf16>
    %c0_17 = arith.constant 0 : index
    %c0_18 = arith.constant 0 : index
    %20 = vector.load %arg4[%c0_17, %c0_18] : memref<2304x49xbf16, #tpu.memory_space<vmem>>, vector<256x49xbf16>
    %cst_19 = arith.constant dense<0.000000e+00> : vector<8x49xf32>
    %21 = tpu.matmul %19, %20, %cst_19 {dimension_numbers = #tpu.dot_dimension_numbers<[1], [0], [0], [1], [0, 0, 1, 1], [], []>} : vector<8x256xbf16>, vector<256x49xbf16>, vector<8x49xf32> -> vector<8x49xf32>
    %22 = vector.extract_strided_slice %17 {offsets = [8, 0], sizes = [8, 256], strides = [1, 1]} : vector<72x256xf32> to vector<8x256xf32>
    %23 = arith.truncf %22 : vector<8x256xf32> to vector<8x256xbf16>
    %c256 = arith.constant 256 : index
    %c0_20 = arith.constant 0 : index
    %24 = vector.load %arg4[%c256, %c0_20] : memref<2304x49xbf16, #tpu.memory_space<vmem>>, vector<256x49xbf16>
    %cst_21 = arith.constant dense<0.000000e+00> : vector<8x49xf32>
    %25 = tpu.matmul %23, %24, %cst_21 {dimension_numbers = #tpu.dot_dimension_numbers<[1], [0], [0], [1], [0, 0, 1, 1], [], []>} : vector<8x256xbf16>, vector<256x49xbf16>, vector<8x49xf32> -> vector<8x49xf32>
    %26 = arith.addf %21, %25 : vector<8x49xf32>
    %27 = vector.extract_strided_slice %17 {offsets = [16, 0], sizes = [8, 256], strides = [1, 1]} : vector<72x256xf32> to vector<8x256xf32>
    %28 = arith.truncf %27 : vector<8x256xf32> to vector<8x256xbf16>
    %c512 = arith.constant 512 : index
    %c0_22 = arith.constant 0 : index
    %29 = vector.load %arg4[%c512, %c0_22] : memref<2304x49xbf16, #tpu.memory_space<vmem>>, vector<256x49xbf16>
    %cst_23 = arith.constant dense<0.000000e+00> : vector<8x49xf32>
    %30 = tpu.matmul %28, %29, %cst_23 {dimension_numbers = #tpu.dot_dimension_numbers<[1], [0], [0], [1], [0, 0, 1, 1], [], []>} : vector<8x256xbf16>, vector<256x49xbf16>, vector<8x49xf32> -> vector<8x49xf32>
    %31 = arith.addf %26, %30 : vector<8x49xf32>
    %32 = vector.extract_strided_slice %17 {offsets = [24, 0], sizes = [8, 256], strides = [1, 1]} : vector<72x256xf32> to vector<8x256xf32>
    %33 = arith.truncf %32 : vector<8x256xf32> to vector<8x256xbf16>
    %c768 = arith.constant 768 : index
    %c0_24 = arith.constant 0 : index
    %34 = vector.load %arg4[%c768, %c0_24] : memref<2304x49xbf16, #tpu.memory_space<vmem>>, vector<256x49xbf16>
    %cst_25 = arith.constant dense<0.000000e+00> : vector<8x49xf32>
    %35 = tpu.matmul %33, %34, %cst_25 {dimension_numbers = #tpu.dot_dimension_numbers<[1], [0], [0], [1], [0, 0, 1, 1], [], []>} : vector<8x256xbf16>, vector<256x49xbf16>, vector<8x49xf32> -> vector<8x49xf32>
    %36 = arith.addf %31, %35 : vector<8x49xf32>
    %37 = vector.extract_strided_slice %17 {offsets = [32, 0], sizes = [8, 256], strides = [1, 1]} : vector<72x256xf32> to vector<8x256xf32>
    %38 = arith.truncf %37 : vector<8x256xf32> to vector<8x256xbf16>
    %c1024 = arith.constant 1024 : index
    %c0_26 = arith.constant 0 : index
    %39 = vector.load %arg4[%c1024, %c0_26] : memref<2304x49xbf16, #tpu.memory_space<vmem>>, vector<256x49xbf16>
    %cst_27 = arith.constant dense<0.000000e+00> : vector<8x49xf32>
    %40 = tpu.matmul %38, %39, %cst_27 {dimension_numbers = #tpu.dot_dimension_numbers<[1], [0], [0], [1], [0, 0, 1, 1], [], []>} : vector<8x256xbf16>, vector<256x49xbf16>, vector<8x49xf32> -> vector<8x49xf32>
    %41 = arith.addf %36, %40 : vector<8x49xf32>
    %42 = vector.extract_strided_slice %17 {offsets = [40, 0], sizes = [8, 256], strides = [1, 1]} : vector<72x256xf32> to vector<8x256xf32>
    %43 = arith.truncf %42 : vector<8x256xf32> to vector<8x256xbf16>
    %c1280 = arith.constant 1280 : index
    %c0_28 = arith.constant 0 : index
    %44 = vector.load %arg4[%c1280, %c0_28] : memref<2304x49xbf16, #tpu.memory_space<vmem>>, vector<256x49xbf16>
    %cst_29 = arith.constant dense<0.000000e+00> : vector<8x49xf32>
    %45 = tpu.matmul %43, %44, %cst_29 {dimension_numbers = #tpu.dot_dimension_numbers<[1], [0], [0], [1], [0, 0, 1, 1], [], []>} : vector<8x256xbf16>, vector<256x49xbf16>, vector<8x49xf32> -> vector<8x49xf32>
    %46 = arith.addf %41, %45 : vector<8x49xf32>
    %47 = vector.extract_strided_slice %17 {offsets = [48, 0], sizes = [8, 256], strides = [1, 1]} : vector<72x256xf32> to vector<8x256xf32>
    %48 = arith.truncf %47 : vector<8x256xf32> to vector<8x256xbf16>
    %c1536 = arith.constant 1536 : index
    %c0_30 = arith.constant 0 : index
    %49 = vector.load %arg4[%c1536, %c0_30] : memref<2304x49xbf16, #tpu.memory_space<vmem>>, vector<256x49xbf16>
    %cst_31 = arith.constant dense<0.000000e+00> : vector<8x49xf32>
    %50 = tpu.matmul %48, %49, %cst_31 {dimension_numbers = #tpu.dot_dimension_numbers<[1], [0], [0], [1], [0, 0, 1, 1], [], []>} : vector<8x256xbf16>, vector<256x49xbf16>, vector<8x49xf32> -> vector<8x49xf32>
    %51 = arith.addf %46, %50 : vector<8x49xf32>
    %52 = vector.extract_strided_slice %17 {offsets = [56, 0], sizes = [8, 256], strides = [1, 1]} : vector<72x256xf32> to vector<8x256xf32>
    %53 = arith.truncf %52 : vector<8x256xf32> to vector<8x256xbf16>
    %c1792 = arith.constant 1792 : index
    %c0_32 = arith.constant 0 : index
    %54 = vector.load %arg4[%c1792, %c0_32] : memref<2304x49xbf16, #tpu.memory_space<vmem>>, vector<256x49xbf16>
    %cst_33 = arith.constant dense<0.000000e+00> : vector<8x49xf32>
    %55 = tpu.matmul %53, %54, %cst_33 {dimension_numbers = #tpu.dot_dimension_numbers<[1], [0], [0], [1], [0, 0, 1, 1], [], []>} : vector<8x256xbf16>, vector<256x49xbf16>, vector<8x49xf32> -> vector<8x49xf32>
    %56 = arith.addf %51, %55 : vector<8x49xf32>
    %57 = vector.extract_strided_slice %17 {offsets = [64, 0], sizes = [8, 256], strides = [1, 1]} : vector<72x256xf32> to vector<8x256xf32>
    %58 = arith.truncf %57 : vector<8x256xf32> to vector<8x256xbf16>
    %c2048 = arith.constant 2048 : index
    %c0_34 = arith.constant 0 : index
    %59 = vector.load %arg4[%c2048, %c0_34] : memref<2304x49xbf16, #tpu.memory_space<vmem>>, vector<256x49xbf16>
    %cst_35 = arith.constant dense<0.000000e+00> : vector<8x49xf32>
    %60 = tpu.matmul %58, %59, %cst_35 {dimension_numbers = #tpu.dot_dimension_numbers<[1], [0], [0], [1], [0, 0, 1, 1], [], []>} : vector<8x256xbf16>, vector<256x49xbf16>, vector<8x49xf32> -> vector<8x49xf32>
    %61 = arith.addf %56, %60 : vector<8x49xf32>
    %62 = vector.extract_strided_slice %61 {offsets = [0, 0], sizes = [8, 7], strides = [1, 1]} : vector<8x49xf32> to vector<8x7xf32>
    %63 = vector.extract_strided_slice %61 {offsets = [0, 7], sizes = [8, 7], strides = [1, 1]} : vector<8x49xf32> to vector<8x7xf32>
    %64 = arith.maximumf %62, %63 : vector<8x7xf32>
    %65 = vector.extract_strided_slice %61 {offsets = [0, 14], sizes = [8, 7], strides = [1, 1]} : vector<8x49xf32> to vector<8x7xf32>
    %66 = arith.maximumf %64, %65 : vector<8x7xf32>
    %67 = vector.extract_strided_slice %61 {offsets = [0, 21], sizes = [8, 7], strides = [1, 1]} : vector<8x49xf32> to vector<8x7xf32>
    %68 = arith.maximumf %66, %67 : vector<8x7xf32>
    %69 = vector.extract_strided_slice %61 {offsets = [0, 28], sizes = [8, 7], strides = [1, 1]} : vector<8x49xf32> to vector<8x7xf32>
    %70 = arith.maximumf %68, %69 : vector<8x7xf32>
    %71 = vector.extract_strided_slice %61 {offsets = [0, 35], sizes = [8, 7], strides = [1, 1]} : vector<8x49xf32> to vector<8x7xf32>
    %72 = arith.maximumf %70, %71 : vector<8x7xf32>
    %73 = vector.extract_strided_slice %61 {offsets = [0, 42], sizes = [8, 7], strides = [1, 1]} : vector<8x49xf32> to vector<8x7xf32>
    %74 = arith.maximumf %72, %73 : vector<8x7xf32>
    %cst_36 = arith.constant dense<0xFF800000> : vector<8xf32>
    %75 = vector.multi_reduction <maximumf>, %74, %cst_36 [1] : vector<8x7xf32> to vector<8xf32>
    %76 = vector.shape_cast %75 : vector<8xf32> to vector<8x1xf32>
    %77 = vector.extract_strided_slice %6 {offsets = [32, 0], sizes = [8, 8], strides = [1, 1]} : vector<72x8xbf16> to vector<8x8xbf16>
    %78 = arith.truncf %76 : vector<8x1xf32> to vector<8x1xbf16>
    %cst_37 = arith.constant dense<0.000000e+00> : vector<8x1xf32>
    %79 = tpu.matmul %77, %78, %cst_37 {dimension_numbers = #tpu.dot_dimension_numbers<[1], [0], [0], [1], [0, 0, 1, 1], [], []>} : vector<8x8xbf16>, vector<8x1xbf16>, vector<8x1xf32> -> vector<8x1xf32>
    %cst_38 = arith.constant 0.000000e+00 : f32
    %80 = vector.broadcast %cst_38 : f32 to vector<8x1xf32>
    %81 = arith.maximumf %79, %80 : vector<8x1xf32>
    %82 = vector.extract_strided_slice %8 {offsets = [32, 0], sizes = [8, 8], strides = [1, 1]} : vector<72x8xbf16> to vector<8x8xbf16>
    %83 = arith.truncf %81 : vector<8x1xf32> to vector<8x1xbf16>
    %cst_39 = arith.constant dense<0.000000e+00> : vector<8x1xf32>
    %84 = tpu.matmul %82, %83, %cst_39 {dimension_numbers = #tpu.dot_dimension_numbers<[1], [0], [0], [1], [0, 0, 1, 1], [], []>} : vector<8x8xbf16>, vector<8x1xbf16>, vector<8x1xf32> -> vector<8x1xf32>
    %cst_40 = arith.constant 0.000000e+00 : f32
    %85 = vector.broadcast %cst_40 : f32 to vector<8x1xf32>
    %86 = arith.maximumf %84, %85 : vector<8x1xf32>
    %87 = vector.extract_strided_slice %10 {offsets = [32, 0], sizes = [8, 8], strides = [1, 1]} : vector<72x8xbf16> to vector<8x8xbf16>
    %88 = arith.truncf %86 : vector<8x1xf32> to vector<8x1xbf16>
    %cst_41 = arith.constant dense<0.000000e+00> : vector<8x1xf32>
    %89 = tpu.matmul %87, %88, %cst_41 {dimension_numbers = #tpu.dot_dimension_numbers<[1], [0], [0], [1], [0, 0, 1, 1], [], []>} : vector<8x8xbf16>, vector<8x1xbf16>, vector<8x1xf32> -> vector<8x1xf32>
    %c0_42 = arith.constant 0 : index
    %c0_43 = arith.constant 0 : index
    %90 = vector.load %arg6[%c0_42, %c0_43] : memref<1x256xbf16, #tpu.memory_space<vmem>>, vector<1x256xbf16>
    %91 = arith.extf %90 : vector<1x256xbf16> to vector<1x256xf32>
    %92 = vector.broadcast %89 : vector<8x1xf32> to vector<8x256xf32>
    %93 = vector.broadcast %91 : vector<1x256xf32> to vector<8x256xf32>
    %94 = arith.mulf %92, %93 : vector<8x256xf32>
    %95 = arith.addf %94, %15 : vector<8x256xf32>
    %96 = arith.truncf %95 : vector<8x256xf32> to vector<8x256xbf16>
    %cst_44 = arith.constant dense<0.000000e+00> : vector<32x256xf32>
    %97 = tpu.matmul %2, %96, %cst_44 {dimension_numbers = #tpu.dot_dimension_numbers<[1], [0], [0], [1], [0, 0, 1, 1], [], []>} : vector<32x8xbf16>, vector<8x256xbf16>, vector<32x256xf32> -> vector<32x256xf32>
    %cst_45 = arith.constant 0.000000e+00 : f32
    %98 = vector.broadcast %cst_45 : f32 to vector<32x256xf32>
    %99 = arith.subf %98, %97 : vector<32x256xf32>
    %100 = math.exp %99 : vector<32x256xf32>
    %cst_46 = arith.constant 1.000000e+00 : f32
    %101 = vector.broadcast %cst_46 : f32 to vector<32x256xf32>
    %102 = arith.addf %101, %100 : vector<32x256xf32>
    %cst_47 = arith.constant 1.000000e+00 : f32
    %103 = vector.broadcast %cst_47 : f32 to vector<32x256xf32>
    %104 = arith.divf %103, %102 : vector<32x256xf32>
    %c0_48 = arith.constant 0 : index
    %c0_49 = arith.constant 0 : index
    %c0_50 = arith.constant 0 : index
    %105 = vector.load %arg7[%c0_48, %c0_49, %c0_50] : memref<1x32x256xf32, #tpu.memory_space<vmem>>, vector<1x32x256xf32>
    %106 = vector.shape_cast %105 : vector<1x32x256xf32> to vector<32x256xf32>
    %107 = vector.shape_cast %104 : vector<32x256xf32> to vector<1x32x256xf32>
    tpu.vector_store %arg7[%c0_48, %c0_49, %c0_50], %107 {strides = array<i32>} : memref<1x32x256xf32, #tpu.memory_space<vmem>>, vector<1x32x256xf32>,
    return
  }
  func.func @transform_0(%arg0: i32) -> (i32, i32, i32) {
    %c0_i32 = arith.constant 0 : i32
    %c0_i32_0 = arith.constant 0 : i32
    %c0_i32_1 = arith.constant 0 : i32
    return %arg0, %c0_i32, %c0_i32_0 : i32, i32, i32
  }
  func.func @transform_1(%arg0: i32) -> (i32, i32) {
    %c0_i32 = arith.constant 0 : i32
    %c0_i32_0 = arith.constant 0 : i32
    %c0_i32_1 = arith.constant 0 : i32
    return %c0_i32, %c0_i32_0 : i32, i32
  }
  func.func @transform_2(%arg0: i32) -> (i32, i32, i32) {
    %c0_i32 = arith.constant 0 : i32
    %c0_i32_0 = arith.constant 0 : i32
    %c0_i32_1 = arith.constant 0 : i32
    %c0_i32_2 = arith.constant 0 : i32
    return %c0_i32, %c0_i32_0, %c0_i32_1 : i32, i32, i32
  }
  func.func @transform_3(%arg0: i32) -> (i32, i32) {
    %c0_i32 = arith.constant 0 : i32
    %c0_i32_0 = arith.constant 0 : i32
    %c0_i32_1 = arith.constant 0 : i32
    return %c0_i32, %c0_i32_0 : i32, i32
  }
  func.func @transform_4(%arg0: i32) -> (i32, i32) {
    %c0_i32 = arith.constant 0 : i32
    %c0_i32_0 = arith.constant 0 : i32
    %c0_i32_1 = arith.constant 0 : i32
    return %c0_i32, %c0_i32_0 : i32, i32
  }
  func.func @transform_5(%arg0: i32) -> (i32, i32) {
    %c0_i32 = arith.constant 0 : i32
    %c0_i32_0 = arith.constant 0 : i32
    %c0_i32_1 = arith.constant 0 : i32
    return %c0_i32, %c0_i32_0 : i32, i32
  }
  func.func @transform_6(%arg0: i32) -> (i32, i32, i32) {
    %c0_i32 = arith.constant 0 : i32
    %c0_i32_0 = arith.constant 0 : i32
    %c0_i32_1 = arith.constant 0 : i32
    return %arg0, %c0_i32, %c0_i32_0 : i32, i32, i32
  }
}

</mosaic_0001>

<llo_original>
// kernel: tpu_custom_call.1
$region0: #{tpu_custom_call.1}
  #allocation0 [shape = 'u32[]', space=smem, size = 0x4, offset = 0x4, fixed_abs, tag = 'smem constant byte address 0x4 - core index']
  #allocation1 [shape = 'u32[144,128]{1,0:T(1,128)}', space=vmem, size = 0x12000, scoped, tag = 'internal scratch']
  %s0 = inlined_call_operand.vmem [shape: bf16[2,32,256], index: 0, kind: input, shape index: {}]
  %s1 = inlined_call_operand.vmem [shape: bf16[64,32], index: 1, kind: input, shape index: {}]
  %s2 = inlined_call_operand.vmem [shape: bf16[4,72,8], index: 2, kind: input, shape index: {}]
  %s3 = inlined_call_operand.vmem [shape: bf16[2304,49], index: 3, kind: input, shape index: {}]
  %s4 = inlined_call_operand.vmem [shape: bf16[9,1], index: 4, kind: input, shape index: {}]
  %s5 = inlined_call_operand.vmem [shape: bf16[1,256], index: 5, kind: input, shape index: {}]
  %s6 = inlined_call_operand.hbm [shape: f32[2,32,256], index: 6, kind: output, shape index: {}]
  %s7 = sld [smem:[#allocation0]]
  $region57: #{tpu_custom_call.1} parent=0
    _
  %s9 = ssub.s32 1, %s7
  %s10 = scalar_select 0, %s9, %s7
  $region1: #{tpu_custom_call.1} parent=0
    #allocation2 [shape = 'u8[65536]{0}', space=vmem, size = 0x10000, scoped, tag = 'output window, operand 0']
    #allocation3 [shape = 's32[2]{0}', space=sflag, size = 0x8, scoped, tag = 'scoped memory for tpu_custom_call.1']
    %11 = vsyncpa [#allocation3], 0
    %s12 = scalar_lea.sflag [#allocation3], 1
    %13 = vsyncpa %s12, 0
    loop: start=0, step=1, limit=4
    $region2: #{tpu_custom_call.1} parent=1 // loop_pre_header
      _
    $region3: #{tpu_custom_call.1} parent=1 // loop_header
      %s15 = sphi 0, %s19
      %p16 = scmp.ge.s32.totalorder %s15, 4
      %s25 = sphi 0, %s27
      %s28 = sphi 0, %s25
      %s29 = sphi 0, %s28
      %s45 = sphi 0, %s29
      %s49 = sphi 0, %s49
      %s51 = sphi 0, %s49
      %s52 = sphi 0, %s51
      %s66 = sphi 0, %s52
      %s70 = sphi 0, %s70
      %s72 = sphi 0, %s70
      %s73 = sphi 0, %s72
      %s87 = sphi 0, %s73
      %s91 = sphi 0, %s91
      %s93 = sphi 0, %s91
      %s94 = sphi 0, %s93
      %s108 = sphi 0, %s94
      %s112 = sphi 0, %s112
      %s114 = sphi 0, %s112
      %s115 = sphi 0, %s114
      %s129 = sphi 0, %s115
      %s133 = sphi 0, %s133
      %s135 = sphi 0, %s133
      %s136 = sphi 0, %s135
      %s150 = sphi 0, %s136
      %s156 = sphi 0, %s158
      %s159 = sphi 0, %s156
      %s160 = sphi 0, %s159
      %s176 = sphi 0, %s160
    $region4: #{tpu_custom_call.1} parent=1 // loop_header_branch
      %18 = sbr.rel (%p16) target = $region8
    $region5: #{tpu_custom_call.1} parent=1 // loop_body
      %s20 = ssub.s32 %s15, 1
      %s21 = ssub.s32 %s15, 2
      %s22 = sadd.s32 %s15, 1
      %s23 = ssub.s32 %s15, %s22
      %p24 = scmp.eq.s32.totalorder %s23, 0
      %s26 = sadd.s32 %s25, 1
      %s27 = scalar_select %p24, %s25, %s26
      %p30 = pneg %p24
      %p31 = scmp.eq.s32.totalorder %s15, 1
      %p32 = por %p30, %p31
      %p33 = scmp.ne.s32.totalorder %s25, %s28
      %p34 = scmp.eq.s32.totalorder %s15, 0
      %p35 = por %p33, %p34
      %p36 = scmp.ne.s32.totalorder %s25, %s28
      %p37 = scmp.eq.s32.totalorder %s20, 1
      %p38 = por %p36, %p37
      %p39 = scmp.ne.s32.totalorder %s28, %s29
      %p40 = scmp.eq.s32.totalorder %s20, 0
      %p41 = por %p39, %p40
      %p42 = scmp.ne.s32.totalorder %s28, %s29
      %p43 = scmp.eq.s32.totalorder %s21, 1
      %p44 = por %p42, %p43
      %p46 = scmp.ne.s32.totalorder %s29, %s45
      %p47 = scmp.eq.s32.totalorder %s21, 0
      %p48 = por %p46, %p47
      %s50 = sadd.s32 %s49, 1
      %p53 = scmp.eq.s32.totalorder %s15, 1
      %p54 = scmp.ne.s32.totalorder %s49, %s51
      %p55 = scmp.eq.s32.totalorder %s15, 0
      %p56 = por %p54, %p55
      %p57 = scmp.ne.s32.totalorder %s49, %s51
      %p58 = scmp.eq.s32.totalorder %s20, 1
      %p59 = por %p57, %p58
      %p60 = scmp.ne.s32.totalorder %s51, %s52
      %p61 = scmp.eq.s32.totalorder %s20, 0
      %p62 = por %p60, %p61
      %p63 = scmp.ne.s32.totalorder %s51, %s52
      %p64 = scmp.eq.s32.totalorder %s21, 1
      %p65 = por %p63, %p64
      %p67 = scmp.ne.s32.totalorder %s52, %s66
      %p68 = scmp.eq.s32.totalorder %s21, 0
      %p69 = por %p67, %p68
      %s71 = sadd.s32 %s70, 1
      %p74 = scmp.eq.s32.totalorder %s15, 1
      %p75 = scmp.ne.s32.totalorder %s70, %s72
      %p76 = scmp.eq.s32.totalorder %s15, 0
      %p77 = por %p75, %p76
      %p78 = scmp.ne.s32.totalorder %s70, %s72
      %p79 = scmp.eq.s32.totalorder %s20, 1
      %p80 = por %p78, %p79
      %p81 = scmp.ne.s32.totalorder %s72, %s73
      %p82 = scmp.eq.s32.totalorder %s20, 0
      %p83 = por %p81, %p82
      %p84 = scmp.ne.s32.totalorder %s72, %s73
      %p85 = scmp.eq.s32.totalorder %s21, 1
      %p86 = por %p84, %p85
      %p88 = scmp.ne.s32.totalorder %s73, %s87
      %p89 = scmp.eq.s32.totalorder %s21, 0
      %p90 = por %p88, %p89
      %s92 = sadd.s32 %s91, 1
      %p95 = scmp.eq.s32.totalorder %s15, 1
      %p96 = scmp.ne.s32.totalorder %s91, %s93
      %p97 = scmp.eq.s32.totalorder %s15, 0
      %p98 = por %p96, %p97
      %p99 = scmp.ne.s32.totalorder %s91, %s93
      %p100 = scmp.eq.s32.totalorder %s20, 1
      %p101 = por %p99, %p100
      %p102 = scmp.ne.s32.totalorder %s93, %s94
      %p103 = scmp.eq.s32.totalorder %s20, 0
      %p104 = por %p102, %p103
      %p105 = scmp.ne.s32.totalorder %s93, %s94
      %p106 = scmp.eq.s32.totalorder %s21, 1
      %p107 = por %p105, %p106
      %p109 = scmp.ne.s32.totalorder %s94, %s108
      %p110 = scmp.eq.s32.totalorder %s21, 0
      %p111 = por %p109, %p110
      %s113 = sadd.s32 %s112, 1
      %p116 = scmp.eq.s32.totalorder %s15, 1
      %p117 = scmp.ne.s32.totalorder %s112, %s114
      %p118 = scmp.eq.s32.totalorder %s15, 0
      %p119 = por %p117, %p118
      %p120 = scmp.ne.s32.totalorder %s112, %s114
      %p121 = scmp.eq.s32.totalorder %s20, 1
      %p122 = por %p120, %p121
      %p123 = scmp.ne.s32.totalorder %s114, %s115
      %p124 = scmp.eq.s32.totalorder %s20, 0
      %p125 = por %p123, %p124
      %p126 = scmp.ne.s32.totalorder %s114, %s115
      %p127 = scmp.eq.s32.totalorder %s21, 1
      %p128 = por %p126, %p127
      %p130 = scmp.ne.s32.totalorder %s115, %s129
      %p131 = scmp.eq.s32.totalorder %s21, 0
      %p132 = por %p130, %p131
      %s134 = sadd.s32 %s133, 1
      %p137 = scmp.eq.s32.totalorder %s15, 1
      %p138 = scmp.ne.s32.totalorder %s133, %s135
      %p139 = scmp.eq.s32.totalorder %s15, 0
      %p140 = por %p138, %p139
      %p141 = scmp.ne.s32.totalorder %s133, %s135
      %p142 = scmp.eq.s32.totalorder %s20, 1
      %p143 = por %p141, %p142
      %p144 = scmp.ne.s32.totalorder %s135, %s136
      %p145 = scmp.eq.s32.totalorder %s20, 0
      %p146 = por %p144, %p145
      %p147 = scmp.ne.s32.totalorder %s135, %s136
      %p148 = scmp.eq.s32.totalorder %s21, 1
      %p149 = por %p147, %p148
      %p151 = scmp.ne.s32.totalorder %s136, %s150
      %p152 = scmp.eq.s32.totalorder %s21, 0
      %p153 = por %p151, %p152
      %s154 = ssub.s32 %s15, %s22
      %p155 = scmp.eq.s32.totalorder %s154, 0
      %s157 = sadd.s32 %s156, 1
      %s158 = scalar_select %p155, %s156, %s157
      %p161 = pneg %p155
      %p162 = scmp.eq.s32.totalorder %s15, 1
      %p163 = por %p161, %p162
      %p164 = scmp.ne.s32.totalorder %s156, %s159
      %p165 = scmp.eq.s32.totalorder %s15, 0
      %p166 = por %p164, %p165
      %p167 = scmp.ne.s32.totalorder %s156, %s159
      %p168 = scmp.eq.s32.totalorder %s20, 1
      %p169 = por %p167, %p168
      %p170 = scmp.ne.s32.totalorder %s159, %s160
      %p171 = scmp.eq.s32.totalorder %s20, 0
      %p172 = por %p170, %p171
      %p173 = scmp.ne.s32.totalorder %s159, %s160
      %p174 = scmp.eq.s32.totalorder %s21, 1
      %p175 = por %p173, %p174
      %p177 = scmp.ne.s32.totalorder %s160, %s176
      %p178 = scmp.eq.s32.totalorder %s21, 0
      %p179 = por %p177, %p178
      %p180 = scmp.le.s32.totalorder 1, %s15
      %p181 = scmp.lt.s32.totalorder %s15, 3
      %p182 = pnand %p180, %p181
      %p183 = pneg %p182
      // Predicated region
      $region9: #{tpu_custom_call.1} parent=5 // pred_check
        _
      $region10: #{tpu_custom_call.1} parent=5 // pred_check_branch
        %185 = sbr.rel (%p182) target = $region12
      $region11: #{tpu_custom_call.1} parent=5 // pred_region
        %s186 = ssub.s32 %s15, 1
        // Predicated region
        $region13: #{tpu_custom_call.1} parent=11 // pred_check
          %p187 = pneg %p62
        $region14: #{tpu_custom_call.1} parent=11 // pred_check_branch
          %189 = sbr.rel (%p187) target = $region16
        $region15: #{tpu_custom_call.1} parent=11 // pred_region
          _
        $region16: #{tpu_custom_call.1} parent=11 // pred_fallthru
          _
        // Predicated region
        $region17: #{tpu_custom_call.1} parent=11 // pred_check
          %p190 = pneg %p83
        $region18: #{tpu_custom_call.1} parent=11 // pred_check_branch
          %192 = sbr.rel (%p190) target = $region20
        $region19: #{tpu_custom_call.1} parent=11 // pred_region
          _
        $region20: #{tpu_custom_call.1} parent=11 // pred_fallthru
          _
        // Predicated region
        $region21: #{tpu_custom_call.1} parent=11 // pred_check
          %p193 = pneg %p104
        $region22: #{tpu_custom_call.1} parent=11 // pred_check_branch
          %195 = sbr.rel (%p193) target = $region24
        $region23: #{tpu_custom_call.1} parent=11 // pred_region
          _
        $region24: #{tpu_custom_call.1} parent=11 // pred_fallthru
          _
        // Predicated region
        $region25: #{tpu_custom_call.1} parent=11 // pred_check
          %p196 = pneg %p125
        $region26: #{tpu_custom_call.1} parent=11 // pred_check_branch
          %198 = sbr.rel (%p196) target = $region28
        $region27: #{tpu_custom_call.1} parent=11 // pred_region
          _
        $region28: #{tpu_custom_call.1} parent=11 // pred_fallthru
          _
        // Predicated region
        $region29: #{tpu_custom_call.1} parent=11 // pred_check
          %p199 = pneg %p146
        $region30: #{tpu_custom_call.1} parent=11 // pred_check_branch
          %201 = sbr.rel (%p199) target = $region32
        $region31: #{tpu_custom_call.1} parent=11 // pred_region
          _
        $region32: #{tpu_custom_call.1} parent=11 // pred_fallthru
          _
      $region12: #{tpu_custom_call.1} parent=5 // pred_fallthru
        _
      %p202 = scmp.lt.s32.totalorder %s15, 2
      // Predicated region
      $region33: #{tpu_custom_call.1} parent=5 // pred_check
        %p203 = pneg %p202
      $region34: #{tpu_custom_call.1} parent=5 // pred_check_branch
        %205 = sbr.rel (%p203) target = $region36
      $region35: #{tpu_custom_call.1} parent=5 // pred_region
        // Predicated region
        $region37: #{tpu_custom_call.1} parent=35 // pred_check
          %p206 = pneg %p35
        $region38: #{tpu_custom_call.1} parent=35 // pred_check_branch
          %208 = sbr.rel (%p206) target = $region40
        $region39: #{tpu_custom_call.1} parent=35 // pred_region
          %p209 = scmp.lt.s32.totalorder %s15, 1
          %s210 = scalar_select %p209, %s15, 1
          %s211 = smul.addr %s210, 8
          %s212 = smul.addr %s211, 4
          %s213 = scalar_lea.vmem %s0, %s212
        $region40: #{tpu_custom_call.1} parent=35 // pred_fallthru
          _
      $region36: #{tpu_custom_call.1} parent=5 // pred_fallthru
        _
      %p214 = scmp.le.s32.totalorder 1, %s15
      %p215 = scmp.lt.s32.totalorder %s15, 3
      %p216 = pnand %p214, %p215
      %p217 = pneg %p216
      // Predicated region
      $region41: #{tpu_custom_call.1} parent=5 // pred_check
        _
      $region42: #{tpu_custom_call.1} parent=5 // pred_check_branch
        %219 = sbr.rel (%p216) target = $region44
      $region43: #{tpu_custom_call.1} parent=5 // pred_region
        %s220 = ssub.s32 %s15, 1
        %p221 = scmp.lt.s32.totalorder %s20, 1
        %s222 = scalar_select %p221, %s20, 1
        %s223 = smul.addr %s222, 8
        %s224 = smul.addr %s223, 4
        %s225 = scalar_lea.vmem %s0, %s224
        %p226 = pneg %p41
        %p227 = pneg %p38
        %p228 = pneg %p62
        %p229 = pneg %p59
        %p230 = pneg %p83
        %p231 = pneg %p80
        %p232 = pneg %p104
        %p233 = pneg %p101
        %p234 = pneg %p125
        %p235 = pneg %p122
        %p236 = pneg %p146
        %p237 = pneg %p143
        %p238 = pneg %p172
        %p239 = pneg %p169
        %s240 = sand.u32 %s159, 1
        %s241 = scalar_lea.sflag [#allocation3], %s240
        %s242 = sand.u32 %s159, 1
        %s243 = smul.addr %s242, 64
        %s244 = scalar_lea.vmem [#allocation2], %s243
        %p245 = scmp.lt.s32.totalorder %s20, 1
        %s246 = scalar_select %p245, %s20, 1
        %s247 = smul.addr %s246, 8
        %s248 = smul.addr %s247, 4
        %s249 = scalar_lea.vmem %s0, %s248
        %v251 = vld [vmem:[%s1] sm:$0xf]
        %v252 = vld [vmem:[%s1 + $0x8] sm:$0xf]
        %v253 = vld [vmem:[%s1 + $0x10] sm:$0xf]
        %v254 = vld [vmem:[%s1 + $0x14] sm:$0xf]
        %v255 = vld [vmem:[%s1 + $0x18] sm:$0xf]
        %v256 = vld [vmem:[%s1 + $0x1c] sm:$0xf]
        %v257 = vld [vmem:[%s2] sm:$0xf]
        %v258 = vld [vmem:[%s2 + $0x4] sm:$0xf]
        %v259 = vld [vmem:[%s2 + $0x8] sm:$0xf]
        %v260 = vld [vmem:[%s2 + $0xc] sm:$0xf]
        %v261 = vld [vmem:[%s2 + $0x10] sm:$0xf]
        %v262 = vld [vmem:[%s2 + $0x14] sm:$0xf]
        %v263 = vld [vmem:[%s2 + $0x18] sm:$0xf]
        %v264 = vld [vmem:[%s2 + $0x1c] sm:$0xf]
        %v265 = vld [vmem:[%s2 + $0x20] sm:$0xf]
        %s266 = scalar_lea.vmem %s2, 36
        %v267 = vld [vmem:[%s266 + $0x10] sm:$0xf]
        %s268 = scalar_lea.vmem %s2, 72
        %v269 = vld [vmem:[%s268 + $0x10] sm:$0xf]
        %s270 = scalar_lea.vmem %s2, 108
        %v271 = vld [vmem:[%s270 + $0x10] sm:$0xf]
        %v272 = vld [vmem:[%s249] sm:$0xff]
        %v273 = vld [vmem:[%s249 + $0x8] sm:$0xff]
        %v274 = vld [vmem:[%s249 + $0x10] sm:$0xff]
        %v275 = vld [vmem:[%s249 + $0x18] sm:$0xff]
        %v280 = vunpack.c.l.b16 %v272
        %v281 = vunpack.c.h.b16 %v272
        %v282 = vunpack.c.l.b16 %v273
        %v283 = vunpack.c.h.b16 %v273
        %v284 = vunpack.c.l.b16 %v274
        %v285 = vunpack.c.h.b16 %v274
        %v286 = vunpack.c.l.b16 %v275
        %v287 = vunpack.c.h.b16 %v275
        %v288 = vpack.c.b16 %v282, %v280
        %v289 = vpack.c.b16 %v283, %v281
        %v290 = vpack.c.b16 %v286, %v284
        %v291 = vpack.c.b16 %v287, %v285
        %vm296 = vcmask 261120
        %v298 = vsel %vm296, %v251, 0
        %300 = vmatprep.subr.bf16.mxu0 %v289
        %301 = vmatpush1.bf16.msra.mxu0 %v288
        %302 = vmatprep.subr.bf16.mxu0 %v291
        %303 = vmatpush1.bf16.msra.mxu0 %v290
        %304 = vmatprep.subr.bf16.mxu0 0
        %305 = vmatpush1.bf16.msra.mxu0 0
        %306 = vmatprep.subr.bf16.mxu0 0
        %307 = vmatpush1.bf16.msra.mxu0 0
        %308 = vmatprep.subr.bf16.mxu0 0
        %309 = vmatpush1.bf16.msra.mxu0 0
        %310 = vmatprep.subr.bf16.mxu0 0
        %311 = vmatpush1.bf16.msra.mxu0 0
        %312 = vmatprep.subr.bf16.mxu0 0
        %313 = vmatpush1.bf16.msra.mxu0 0
        %314 = vmatprep.subr.bf16.mxu0 0
        %315 = vmatpush1.bf16.msra.mxu0 0
        %316 = vmatprep.subr.bf16.mxu0 0
        %317 = vmatpush1.bf16.msra.mxu0 0
        %318 = vmatprep.subr.bf16.mxu0 0
        %319 = vmatpush1.bf16.msra.mxu0 0
        %320 = vmatprep.subr.bf16.mxu0 0
        %321 = vmatpush1.bf16.msra.mxu0 0
        %322 = vmatprep.subr.bf16.mxu0 0
        %323 = vmatpush1.bf16.msra.mxu0 0
        %324 = vmatprep.subr.bf16.mxu0 0
        %325 = vmatpush1.bf16.msra.mxu0 0
        %326 = vmatprep.subr.bf16.mxu0 0
        %327 = vmatpush1.bf16.msra.mxu0 0
        %328 = vmatprep.subr.bf16.mxu0 0
        %329 = vmatpush1.bf16.msra.mxu0 0
        %330 = vmatprep.subr.bf16.mxu0 0
        %331 = vmatpush1.bf16.msra.mxu0 0
        %332 = vmatprep.mubr.bf16.mxu0 0
        %333 = vmatmul.mubr.bf16.gmra.mrb[0].mxu0 %v298
        %v334 = vpop.f32.mrb[0].mxu0
        %v335 = vadd.f32 0.0, %v334
        %v336 = vpop.f32.mrb[0].mxu0
        %v337 = vadd.f32 0.0, %v336
        %v338 = vpop.f32.mrb[0].mxu0
        %v339 = vpop.f32.mrb[0].mxu0
        %340 = vdwg.mxu0
        %v341 = vpack.c.bf16 %v335, %v335
        %v342 = vpack.c.bf16 %v337, %v337
        %vm343 = vcmask 64512
        %v345 = vsel %vm343, %v252, 0
        %vm347 = vcmask 1043456
        %v349 = vsel %vm347, %v341, 0
        %v352 = vsel %vm347, %v342, 0
        %354 = vmatprep.subr.bf16.mxu0 %v352
        %355 = vmatpush1.bf16.msra.mxu0 %v349
        %356 = vmatprep.subr.bf16.mxu0 0
        %357 = vmatpush1.bf16.msra.mxu0 0
        %358 = vmatprep.subr.bf16.mxu0 0
        %359 = vmatpush1.bf16.msra.mxu0 0
        %360 = vmatprep.subr.bf16.mxu0 0
        %361 = vmatpush1.bf16.msra.mxu0 0
        %362 = vmatprep.subr.bf16.mxu0 0
        %363 = vmatpush1.bf16.msra.mxu0 0
        %364 = vmatprep.subr.bf16.mxu0 0
        %365 = vmatpush1.bf16.msra.mxu0 0
        %366 = vmatprep.subr.bf16.mxu0 0
        %367 = vmatpush1.bf16.msra.mxu0 0
        %368 = vmatprep.subr.bf16.mxu0 0
        %369 = vmatpush1.bf16.msra.mxu0 0
        %370 = vmatprep.subr.bf16.mxu0 0
        %371 = vmatpush1.bf16.msra.mxu0 0
        %372 = vmatprep.subr.bf16.mxu0 0
        %373 = vmatpush1.bf16.msra.mxu0 0
        %374 = vmatprep.subr.bf16.mxu0 0
        %375 = vmatpush1.bf16.msra.mxu0 0
        %376 = vmatprep.subr.bf16.mxu0 0
        %377 = vmatpush1.bf16.msra.mxu0 0
        %378 = vmatprep.subr.bf16.mxu0 0
        %379 = vmatpush1.bf16.msra.mxu0 0
        %380 = vmatprep.subr.bf16.mxu0 0
        %381 = vmatpush1.bf16.msra.mxu0 0
        %382 = vmatprep.subr.bf16.mxu0 0
        %383 = vmatpush1.bf16.msra.mxu0 0
        %384 = vmatprep.subr.bf16.mxu0 0
        %385 = vmatpush1.bf16.msra.mxu0 0
        %386 = vmatprep.mubr.bf16.mxu0 0
        %387 = vmatmul.mubr.bf16.gmra.mrb[0].mxu0 %v345
        %v388 = vpop.f32.mrb[0].mxu0
        %v389 = vadd.f32 0.0, %v388
        %v390 = vpop.f32.mrb[0].mxu0
        %v391 = vadd.f32 0.0, %v390
        %v392 = vpop.f32.mrb[0].mxu0
        %v393 = vpop.f32.mrb[0].mxu0
        %394 = vdwg.mxu0
        %v404 = vunpack.c.l.b16 %v257
        %v405 = vunpack.c.l.b16 %v258
        %v406 = vunpack.c.l.b16 %v259
        %v407 = vunpack.c.l.b16 %v260
        %v408 = vunpack.c.l.b16 %v261
        %v409 = vunpack.c.l.b16 %v262
        %v410 = vunpack.c.l.b16 %v263
        %v411 = vunpack.c.l.b16 %v264
        %v412 = vunpack.c.l.b16 %v265
        %v413 = vpack.c.b16 %v405, %v404
        %v414 = vpack.c.b16 %v407, %v406
        %v415 = vpack.c.b16 %v409, %v408
        %v416 = vpack.c.b16 %v411, %v410
        %v417 = vpack.c.b16 %v412, %v412
        %v419 = vsel %vm343, %v413, 0
        %v422 = vsel %vm343, %v414, 0
        %v425 = vsel %vm343, %v415, 0
        %v428 = vsel %vm343, %v416, 0
        %v431 = vsel %vm343, %v417, 0
        %433 = vmatprep.subr.bf16.mxu0 %v352
        %434 = vmatpush1.bf16.msra.mxu0 %v349
        %435 = vmatprep.subr.bf16.mxu0 0
        %436 = vmatpush1.bf16.msra.mxu0 0
        %437 = vmatprep.subr.bf16.mxu0 0
        %438 = vmatpush1.bf16.msra.mxu0 0
        %439 = vmatprep.subr.bf16.mxu0 0
        %440 = vmatpush1.bf16.msra.mxu0 0
        %441 = vmatprep.subr.bf16.mxu0 0
        %442 = vmatpush1.bf16.msra.mxu0 0
        %443 = vmatprep.subr.bf16.mxu0 0
        %444 = vmatpush1.bf16.msra.mxu0 0
        %445 = vmatprep.subr.bf16.mxu0 0
        %446 = vmatpush1.bf16.msra.mxu0 0
        %447 = vmatprep.subr.bf16.mxu0 0
        %448 = vmatpush1.bf16.msra.mxu0 0
        %449 = vmatprep.subr.bf16.mxu0 0
        %450 = vmatpush1.bf16.msra.mxu0 0
        %451 = vmatprep.subr.bf16.mxu0 0
        %452 = vmatpush1.bf16.msra.mxu0 0
        %453 = vmatprep.subr.bf16.mxu0 0
        %454 = vmatpush1.bf16.msra.mxu0 0
        %455 = vmatprep.subr.bf16.mxu0 0
        %456 = vmatpush1.bf16.msra.mxu0 0
        %457 = vmatprep.subr.bf16.mxu0 0
        %458 = vmatpush1.bf16.msra.mxu0 0
        %459 = vmatprep.subr.bf16.mxu0 0
        %460 = vmatpush1.bf16.msra.mxu0 0
        %461 = vmatprep.subr.bf16.mxu0 0
        %462 = vmatpush1.bf16.msra.mxu0 0
        %463 = vmatprep.subr.bf16.mxu0 0
        %464 = vmatpush1.bf16.msra.mxu0 0
        %465 = vmatprep.mubr.bf16.mxu0 0
        %466 = vmatmul.mubr.bf16.gmra.mrb[0].mxu0 %v419
        %v467 = vpop.f32.mrb[0].mxu0
        %v468 = vadd.f32 0.0, %v467
        %v469 = vpop.f32.mrb[0].mxu0
        %v470 = vadd.f32 0.0, %v469
        %v471 = vpop.f32.mrb[0].mxu0
        %v472 = vadd.f32 0.0, %v471
        %v473 = vpop.f32.mrb[0].mxu0
        %v474 = vadd.f32 0.0, %v473
        %475 = vmatprep.mubr.bf16.mxu0 0
        %476 = vmatmul.mubr.bf16.gmra.mrb[0].mxu0 %v422
        %v477 = vpop.f32.mrb[0].mxu0
        %v478 = vadd.f32 0.0, %v477
        %v479 = vpop.f32.mrb[0].mxu0
        %v480 = vadd.f32 0.0, %v479
        %v481 = vpop.f32.mrb[0].mxu0
        %v482 = vadd.f32 0.0, %v481
        %v483 = vpop.f32.mrb[0].mxu0
        %v484 = vadd.f32 0.0, %v483
        %485 = vmatprep.mubr.bf16.mxu0 0
        %486 = vmatmul.mubr.bf16.gmra.mrb[0].mxu0 %v425
        %v487 = vpop.f32.mrb[0].mxu0
        %v488 = vadd.f32 0.0, %v487
        %v489 = vpop.f32.mrb[0].mxu0
        %v490 = vadd.f32 0.0, %v489
        %v491 = vpop.f32.mrb[0].mxu0
        %v492 = vadd.f32 0.0, %v491
        %v493 = vpop.f32.mrb[0].mxu0
        %v494 = vadd.f32 0.0, %v493
        %495 = vmatprep.mubr.bf16.mxu0 0
        %496 = vmatmul.mubr.bf16.gmra.mrb[0].mxu0 %v428
        %v497 = vpop.f32.mrb[0].mxu0
        %v498 = vadd.f32 0.0, %v497
        %v499 = vpop.f32.mrb[0].mxu0
        %v500 = vadd.f32 0.0, %v499
        %v501 = vpop.f32.mrb[0].mxu0
        %v502 = vadd.f32 0.0, %v501
        %v503 = vpop.f32.mrb[0].mxu0
        %v504 = vadd.f32 0.0, %v503
        %505 = vmatprep.mubr.bf16.mxu0 0
        %506 = vmatmul.mubr.bf16.gmra.mrb[0].mxu0 %v431
        %v507 = vpop.f32.mrb[0].mxu0
        %v508 = vadd.f32 0.0, %v507
        %v509 = vpop.f32.mrb[0].mxu0
        %v510 = vadd.f32 0.0, %v509
        %v511 = vpop.f32.mrb[0].mxu0
        %v512 = vpop.f32.mrb[0].mxu0
        %513 = vdwg.mxu0
        %v514 = vpack.c.bf16 %v468, %v468
        %v515 = vpack.c.bf16 %v470, %v470
        %v516 = vld [vmem:[%s3] sm:$0xf]
        %v517 = vld [vmem:[%s3 + $0x4] sm:$0xf]
        %v518 = vld [vmem:[%s3 + $0x8] sm:$0xf]
        %v519 = vld [vmem:[%s3 + $0xc] sm:$0xf]
        %v520 = vld [vmem:[%s3 + $0x10] sm:$0xf]
        %v521 = vld [vmem:[%s3 + $0x14] sm:$0xf]
        %v522 = vld [vmem:[%s3 + $0x18] sm:$0xf]
        %v523 = vld [vmem:[%s3 + $0x1c] sm:$0xf]
        %v524 = vld [vmem:[%s3 + $0x20] sm:$0xf]
        %v525 = vld [vmem:[%s3 + $0x24] sm:$0xf]
        %v526 = vld [vmem:[%s3 + $0x28] sm:$0xf]
        %v527 = vld [vmem:[%s3 + $0x2c] sm:$0xf]
        %v528 = vld [vmem:[%s3 + $0x30] sm:$0xf]
        %v529 = vld [vmem:[%s3 + $0x34] sm:$0xf]
        %v530 = vld [vmem:[%s3 + $0x38] sm:$0xf]
        %v531 = vld [vmem:[%s3 + $0x3c] sm:$0xf]
        %v532 = vld [vmem:[%s3 + $0x40] sm:$0xf]
        %v533 = vld [vmem:[%s3 + $0x44] sm:$0xf]
        %v534 = vld [vmem:[%s3 + $0x48] sm:$0xf]
        %v535 = vld [vmem:[%s3 + $0x4c] sm:$0xf]
        %v536 = vld [vmem:[%s3 + $0x50] sm:$0xf]
        %v537 = vld [vmem:[%s3 + $0x54] sm:$0xf]
        %v538 = vld [vmem:[%s3 + $0x58] sm:$0xf]
        %v539 = vld [vmem:[%s3 + $0x5c] sm:$0xf]
        %v540 = vld [vmem:[%s3 + $0x60] sm:$0xf]
        %v541 = vld [vmem:[%s3 + $0x64] sm:$0xf]
        %v542 = vld [vmem:[%s3 + $0x68] sm:$0xf]
        %v543 = vld [vmem:[%s3 + $0x6c] sm:$0xf]
        %v544 = vld [vmem:[%s3 + $0x70] sm:$0xf]
        %v545 = vld [vmem:[%s3 + $0x74] sm:$0xf]
        %v546 = vld [vmem:[%s3 + $0x78] sm:$0xf]
        %v547 = vld [vmem:[%s3 + $0x7c] sm:$0xf]
        %v548 = vpack.c.bf16 %v472, %v472
        %v549 = vpack.c.bf16 %v474, %v474
        %v550 = vld [vmem:[%s3 + $0x80] sm:$0xf]
        %v551 = vld [vmem:[%s3 + $0x84] sm:$0xf]
        %v552 = vld [vmem:[%s3 + $0x88] sm:$0xf]
        %v553 = vld [vmem:[%s3 + $0x8c] sm:$0xf]
        %v554 = vld [vmem:[%s3 + $0x90] sm:$0xf]
        %v555 = vld [vmem:[%s3 + $0x94] sm:$0xf]
        %v556 = vld [vmem:[%s3 + $0x98] sm:$0xf]
        %v557 = vld [vmem:[%s3 + $0x9c] sm:$0xf]
        %v558 = vld [vmem:[%s3 + $0xa0] sm:$0xf]
        %v559 = vld [vmem:[%s3 + $0xa4] sm:$0xf]
        %v560 = vld [vmem:[%s3 + $0xa8] sm:$0xf]
        %v561 = vld [vmem:[%s3 + $0xac] sm:$0xf]
        %v562 = vld [vmem:[%s3 + $0xb0] sm:$0xf]
        %v563 = vld [vmem:[%s3 + $0xb4] sm:$0xf]
        %v564 = vld [vmem:[%s3 + $0xb8] sm:$0xf]
        %v565 = vld [vmem:[%s3 + $0xbc] sm:$0xf]
        %v566 = vld [vmem:[%s3 + $0xc0] sm:$0xf]
        %v567 = vld [vmem:[%s3 + $0xc4] sm:$0xf]
        %v568 = vld [vmem:[%s3 + $0xc8] sm:$0xf]
        %v569 = vld [vmem:[%s3 + $0xcc] sm:$0xf]
        %v570 = vld [vmem:[%s3 + $0xd0] sm:$0xf]
        %v571 = vld [vmem:[%s3 + $0xd4] sm:$0xf]
        %v572 = vld [vmem:[%s3 + $0xd8] sm:$0xf]
        %v573 = vld [vmem:[%s3 + $0xdc] sm:$0xf]
        %v574 = vld [vmem:[%s3 + $0xe0] sm:$0xf]
        %v575 = vld [vmem:[%s3 + $0xe4] sm:$0xf]
        %v576 = vld [vmem:[%s3 + $0xe8] sm:$0xf]
        %v577 = vld [vmem:[%s3 + $0xec] sm:$0xf]
        %v578 = vld [vmem:[%s3 + $0xf0] sm:$0xf]
        %v579 = vld [vmem:[%s3 + $0xf4] sm:$0xf]
        %v580 = vld [vmem:[%s3 + $0xf8] sm:$0xf]
        %v581 = vld [vmem:[%s3 + $0xfc] sm:$0xf]
        %v614 = vunpack.c.l.b16 %v550
        %v615 = vunpack.c.l.b16 %v551
        %v616 = vunpack.c.l.b16 %v552
        %v617 = vunpack.c.l.b16 %v553
        %v618 = vunpack.c.l.b16 %v554
        %v619 = vunpack.c.l.b16 %v555
        %v620 = vunpack.c.l.b16 %v556
        %v621 = vunpack.c.l.b16 %v557
        %v622 = vunpack.c.l.b16 %v558
        %v623 = vunpack.c.l.b16 %v559
        %v624 = vunpack.c.l.b16 %v560
        %v625 = vunpack.c.l.b16 %v561
        %v626 = vunpack.c.l.b16 %v562
        %v627 = vunpack.c.l.b16 %v563
        %v628 = vunpack.c.l.b16 %v564
        %v629 = vunpack.c.l.b16 %v565
        %v630 = vunpack.c.l.b16 %v566
        %v631 = vunpack.c.l.b16 %v567
        %v632 = vunpack.c.l.b16 %v568
        %v633 = vunpack.c.l.b16 %v569
        %v634 = vunpack.c.l.b16 %v570
        %v635 = vunpack.c.l.b16 %v571
        %v636 = vunpack.c.l.b16 %v572
        %v637 = vunpack.c.l.b16 %v573
        %v638 = vunpack.c.l.b16 %v574
        %v639 = vunpack.c.l.b16 %v575
        %v640 = vunpack.c.l.b16 %v576
        %v641 = vunpack.c.l.b16 %v577
        %v642 = vunpack.c.l.b16 %v578
        %v643 = vunpack.c.l.b16 %v579
        %v644 = vunpack.c.l.b16 %v580
        %v645 = vunpack.c.l.b16 %v581
        %v646 = vpack.c.b16 %v615, %v614
        %v647 = vpack.c.b16 %v617, %v616
        %v648 = vpack.c.b16 %v619, %v618
        %v649 = vpack.c.b16 %v621, %v620
        %v650 = vpack.c.b16 %v623, %v622
        %v651 = vpack.c.b16 %v625, %v624
        %v652 = vpack.c.b16 %v627, %v626
        %v653 = vpack.c.b16 %v629, %v628
        %v654 = vpack.c.b16 %v631, %v630
        %v655 = vpack.c.b16 %v633, %v632
        %v656 = vpack.c.b16 %v635, %v634
        %v657 = vpack.c.b16 %v637, %v636
        %v658 = vpack.c.b16 %v639, %v638
        %v659 = vpack.c.b16 %v641, %v640
        %v660 = vpack.c.b16 %v643, %v642
        %v661 = vpack.c.b16 %v645, %v644
        %678 = vmatprep.subr.bf16.mxu0 0
        %679 = vmatpush1.bf16.msra.mxu0 %v646
        %680 = vmatprep.subr.bf16.mxu0 0
        %681 = vmatpush1.bf16.msra.mxu0 %v647
        %682 = vmatprep.subr.bf16.mxu0 0
        %683 = vmatpush1.bf16.msra.mxu0 %v648
        %684 = vmatprep.subr.bf16.mxu0 0
        %685 = vmatpush1.bf16.msra.mxu0 %v649
        %686 = vmatprep.subr.bf16.mxu0 0
        %687 = vmatpush1.bf16.msra.mxu0 %v650
        %688 = vmatprep.subr.bf16.mxu0 0
        %689 = vmatpush1.bf16.msra.mxu0 %v651
        %690 = vmatprep.subr.bf16.mxu0 0
        %691 = vmatpush1.bf16.msra.mxu0 %v652
        %692 = vmatprep.subr.bf16.mxu0 0
        %693 = vmatpush1.bf16.msra.mxu0 %v653
        %694 = vmatprep.subr.bf16.mxu0 0
        %695 = vmatpush1.bf16.msra.mxu0 %v654
        %696 = vmatprep.subr.bf16.mxu0 0
        %697 = vmatpush1.bf16.msra.mxu0 %v655
        %698 = vmatprep.subr.bf16.mxu0 0
        %699 = vmatpush1.bf16.msra.mxu0 %v656
        %700 = vmatprep.subr.bf16.mxu0 0
        %701 = vmatpush1.bf16.msra.mxu0 %v657
        %702 = vmatprep.subr.bf16.mxu0 0
        %703 = vmatpush1.bf16.msra.mxu0 %v658
        %704 = vmatprep.subr.bf16.mxu0 0
        %705 = vmatpush1.bf16.msra.mxu0 %v659
        %706 = vmatprep.subr.bf16.mxu0 0
        %707 = vmatpush1.bf16.msra.mxu0 %v660
        %708 = vmatprep.subr.bf16.mxu0 0
        %709 = vmatpush1.bf16.msra.mxu0 %v661
        %710 = vmatprep.mubr.bf16.mxu0 %v549
        %711 = vmatmul.mubr.bf16.gmra.mrb[0].mxu0 %v548
        %v712 = vpop.f32.mrb[0].mxu0
        %v713 = vadd.f32 0.0, %v712
        %v714 = vpop.f32.mrb[0].mxu0
        %v715 = vpop.f32.mrb[0].mxu0
        %v716 = vpop.f32.mrb[0].mxu0
        %717 = vdwg.mxu0
        %v750 = vunpack.c.l.b16 %v516
        %v751 = vunpack.c.l.b16 %v517
        %v752 = vunpack.c.l.b16 %v518
        %v753 = vunpack.c.l.b16 %v519
        %v754 = vunpack.c.l.b16 %v520
        %v755 = vunpack.c.l.b16 %v521
        %v756 = vunpack.c.l.b16 %v522
        %v757 = vunpack.c.l.b16 %v523
        %v758 = vunpack.c.l.b16 %v524
        %v759 = vunpack.c.l.b16 %v525
        %v760 = vunpack.c.l.b16 %v526
        %v761 = vunpack.c.l.b16 %v527
        %v762 = vunpack.c.l.b16 %v528
        %v763 = vunpack.c.l.b16 %v529
        %v764 = vunpack.c.l.b16 %v530
        %v765 = vunpack.c.l.b16 %v531
        %v766 = vunpack.c.l.b16 %v532
        %v767 = vunpack.c.l.b16 %v533
        %v768 = vunpack.c.l.b16 %v534
        %v769 = vunpack.c.l.b16 %v535
        %v770 = vunpack.c.l.b16 %v536
        %v771 = vunpack.c.l.b16 %v537
        %v772 = vunpack.c.l.b16 %v538
        %v773 = vunpack.c.l.b16 %v539
        %v774 = vunpack.c.l.b16 %v540
        %v775 = vunpack.c.l.b16 %v541
        %v776 = vunpack.c.l.b16 %v542
        %v777 = vunpack.c.l.b16 %v543
        %v778 = vunpack.c.l.b16 %v544
        %v779 = vunpack.c.l.b16 %v545
        %v780 = vunpack.c.l.b16 %v546
        %v781 = vunpack.c.l.b16 %v547
        %v782 = vpack.c.b16 %v751, %v750
        %v783 = vpack.c.b16 %v753, %v752
        %v784 = vpack.c.b16 %v755, %v754
        %v785 = vpack.c.b16 %v757, %v756
        %v786 = vpack.c.b16 %v759, %v758
        %v787 = vpack.c.b16 %v761, %v760
        %v788 = vpack.c.b16 %v763, %v762
        %v789 = vpack.c.b16 %v765, %v764
        %v790 = vpack.c.b16 %v767, %v766
        %v791 = vpack.c.b16 %v769, %v768
        %v792 = vpack.c.b16 %v771, %v770
        %v793 = vpack.c.b16 %v773, %v772
        %v794 = vpack.c.b16 %v775, %v774
        %v795 = vpack.c.b16 %v777, %v776
        %v796 = vpack.c.b16 %v779, %v778
        %v797 = vpack.c.b16 %v781, %v780
        %814 = vmatprep.subr.bf16.mxu0 0
        %815 = vmatpush1.bf16.msra.mxu0 %v782
        %816 = vmatprep.subr.bf16.mxu0 0
        %817 = vmatpush1.bf16.msra.mxu0 %v783
        %818 = vmatprep.subr.bf16.mxu0 0
        %819 = vmatpush1.bf16.msra.mxu0 %v784
        %820 = vmatprep.subr.bf16.mxu0 0
        %821 = vmatpush1.bf16.msra.mxu0 %v785
        %822 = vmatprep.subr.bf16.mxu0 0
        %823 = vmatpush1.bf16.msra.mxu0 %v786
        %824 = vmatprep.subr.bf16.mxu0 0
        %825 = vmatpush1.bf16.msra.mxu0 %v787
        %826 = vmatprep.subr.bf16.mxu0 0
        %827 = vmatpush1.bf16.msra.mxu0 %v788
        %828 = vmatprep.subr.bf16.mxu0 0
        %829 = vmatpush1.bf16.msra.mxu0 %v789
        %830 = vmatprep.subr.bf16.mxu0 0
        %831 = vmatpush1.bf16.msra.mxu0 %v790
        %832 = vmatprep.subr.bf16.mxu0 0
        %833 = vmatpush1.bf16.msra.mxu0 %v791
        %834 = vmatprep.subr.bf16.mxu0 0
        %835 = vmatpush1.bf16.msra.mxu0 %v792
        %836 = vmatprep.subr.bf16.mxu0 0
        %837 = vmatpush1.bf16.msra.mxu0 %v793
        %838 = vmatprep.subr.bf16.mxu0 0
        %839 = vmatpush1.bf16.msra.mxu0 %v794
        %840 = vmatprep.subr.bf16.mxu0 0
        %841 = vmatpush1.bf16.msra.mxu0 %v795
        %842 = vmatprep.subr.bf16.mxu0 0
        %843 = vmatpush1.bf16.msra.mxu0 %v796
        %844 = vmatprep.subr.bf16.mxu0 0
        %845 = vmatpush1.bf16.msra.mxu0 %v797
        %846 = vmatprep.mubr.bf16.mxu0 %v515
        %847 = vmatmul.mubr.bf16.gmra.mrb[0].mxu0 %v514
        %v848 = vpop.f32.mrb[0].mxu0
        %v849 = vadd.f32 %v713, %v848
        %v850 = vpop.f32.mrb[0].mxu0
        %v851 = vpop.f32.mrb[0].mxu0
        %v852 = vpop.f32.mrb[0].mxu0
        %853 = vdwg.mxu0
        %v854 = vpack.c.bf16 %v478, %v478
        %v855 = vpack.c.bf16 %v480, %v480
        %v856 = vld [vmem:[%s3 + $0x100] sm:$0xf]
        %v857 = vld [vmem:[%s3 + $0x104] sm:$0xf]
        %v858 = vld [vmem:[%s3 + $0x108] sm:$0xf]
        %v859 = vld [vmem:[%s3 + $0x10c] sm:$0xf]
        %v860 = vld [vmem:[%s3 + $0x110] sm:$0xf]
        %v861 = vld [vmem:[%s3 + $0x114] sm:$0xf]
        %v862 = vld [vmem:[%s3 + $0x118] sm:$0xf]
        %v863 = vld [vmem:[%s3 + $0x11c] sm:$0xf]
        %v864 = vld [vmem:[%s3 + $0x120] sm:$0xf]
        %v865 = vld [vmem:[%s3 + $0x124] sm:$0xf]
        %v866 = vld [vmem:[%s3 + $0x128] sm:$0xf]
        %v867 = vld [vmem:[%s3 + $0x12c] sm:$0xf]
        %v868 = vld [vmem:[%s3 + $0x130] sm:$0xf]
        %v869 = vld [vmem:[%s3 + $0x134] sm:$0xf]
        %v870 = vld [vmem:[%s3 + $0x138] sm:$0xf]
        %v871 = vld [vmem:[%s3 + $0x13c] sm:$0xf]
        %v872 = vld [vmem:[%s3 + $0x140] sm:$0xf]
        %v873 = vld [vmem:[%s3 + $0x144] sm:$0xf]
        %v874 = vld [vmem:[%s3 + $0x148] sm:$0xf]
        %v875 = vld [vmem:[%s3 + $0x14c] sm:$0xf]
        %v876 = vld [vmem:[%s3 + $0x150] sm:$0xf]
        %v877 = vld [vmem:[%s3 + $0x154] sm:$0xf]
        %v878 = vld [vmem:[%s3 + $0x158] sm:$0xf]
        %v879 = vld [vmem:[%s3 + $0x15c] sm:$0xf]
        %v880 = vld [vmem:[%s3 + $0x160] sm:$0xf]
        %v881 = vld [vmem:[%s3 + $0x164] sm:$0xf]
        %v882 = vld [vmem:[%s3 + $0x168] sm:$0xf]
        %v883 = vld [vmem:[%s3 + $0x16c] sm:$0xf]
        %v884 = vld [vmem:[%s3 + $0x170] sm:$0xf]
        %v885 = vld [vmem:[%s3 + $0x174] sm:$0xf]
        %v886 = vld [vmem:[%s3 + $0x178] sm:$0xf]
        %v887 = vld [vmem:[%s3 + $0x17c] sm:$0xf]
        %v920 = vunpack.c.l.b16 %v856
        %v921 = vunpack.c.l.b16 %v857
        %v922 = vunpack.c.l.b16 %v858
        %v923 = vunpack.c.l.b16 %v859
        %v924 = vunpack.c.l.b16 %v860
        %v925 = vunpack.c.l.b16 %v861
        %v926 = vunpack.c.l.b16 %v862
        %v927 = vunpack.c.l.b16 %v863
        %v928 = vunpack.c.l.b16 %v864
        %v929 = vunpack.c.l.b16 %v865
        %v930 = vunpack.c.l.b16 %v866
        %v931 = vunpack.c.l.b16 %v867
        %v932 = vunpack.c.l.b16 %v868
        %v933 = vunpack.c.l.b16 %v869
        %v934 = vunpack.c.l.b16 %v870
        %v935 = vunpack.c.l.b16 %v871
        %v936 = vunpack.c.l.b16 %v872
        %v937 = vunpack.c.l.b16 %v873
        %v938 = vunpack.c.l.b16 %v874
        %v939 = vunpack.c.l.b16 %v875
        %v940 = vunpack.c.l.b16 %v876
        %v941 = vunpack.c.l.b16 %v877
        %v942 = vunpack.c.l.b16 %v878
        %v943 = vunpack.c.l.b16 %v879
        %v944 = vunpack.c.l.b16 %v880
        %v945 = vunpack.c.l.b16 %v881
        %v946 = vunpack.c.l.b16 %v882
        %v947 = vunpack.c.l.b16 %v883
        %v948 = vunpack.c.l.b16 %v884
        %v949 = vunpack.c.l.b16 %v885
        %v950 = vunpack.c.l.b16 %v886
        %v951 = vunpack.c.l.b16 %v887
        %v952 = vpack.c.b16 %v921, %v920
        %v953 = vpack.c.b16 %v923, %v922
        %v954 = vpack.c.b16 %v925, %v924
        %v955 = vpack.c.b16 %v927, %v926
        %v956 = vpack.c.b16 %v929, %v928
        %v957 = vpack.c.b16 %v931, %v930
        %v958 = vpack.c.b16 %v933, %v932
        %v959 = vpack.c.b16 %v935, %v934
        %v960 = vpack.c.b16 %v937, %v936
        %v961 = vpack.c.b16 %v939, %v938
        %v962 = vpack.c.b16 %v941, %v940
        %v963 = vpack.c.b16 %v943, %v942
        %v964 = vpack.c.b16 %v945, %v944
        %v965 = vpack.c.b16 %v947, %v946
        %v966 = vpack.c.b16 %v949, %v948
        %v967 = vpack.c.b16 %v951, %v950
        %984 = vmatprep.subr.bf16.mxu0 0
        %985 = vmatpush1.bf16.msra.mxu0 %v952
        %986 = vmatprep.subr.bf16.mxu0 0
        %987 = vmatpush1.bf16.msra.mxu0 %v953
        %988 = vmatprep.subr.bf16.mxu0 0
        %989 = vmatpush1.bf16.msra.mxu0 %v954
        %990 = vmatprep.subr.bf16.mxu0 0
        %991 = vmatpush1.bf16.msra.mxu0 %v955
        %992 = vmatprep.subr.bf16.mxu0 0
        %993 = vmatpush1.bf16.msra.mxu0 %v956
        %994 = vmatprep.subr.bf16.mxu0 0
        %995 = vmatpush1.bf16.msra.mxu0 %v957
        %996 = vmatprep.subr.bf16.mxu0 0
        %997 = vmatpush1.bf16.msra.mxu0 %v958
        %998 = vmatprep.subr.bf16.mxu0 0
        %999 = vmatpush1.bf16.msra.mxu0 %v959
        %1000 = vmatprep.subr.bf16.mxu0 0
        %1001 = vmatpush1.bf16.msra.mxu0 %v960
        %1002 = vmatprep.subr.bf16.mxu0 0
        %1003 = vmatpush1.bf16.msra.mxu0 %v961
        %1004 = vmatprep.subr.bf16.mxu0 0
        %1005 = vmatpush1.bf16.msra.mxu0 %v962
        %1006 = vmatprep.subr.bf16.mxu0 0
        %1007 = vmatpush1.bf16.msra.mxu0 %v963
        %1008 = vmatprep.subr.bf16.mxu0 0
        %1009 = vmatpush1.bf16.msra.mxu0 %v964
        %1010 = vmatprep.subr.bf16.mxu0 0
        %1011 = vmatpush1.bf16.msra.mxu0 %v965
        %1012 = vmatprep.subr.bf16.mxu0 0
        %1013 = vmatpush1.bf16.msra.mxu0 %v966
        %1014 = vmatprep.subr.bf16.mxu0 0
        %1015 = vmatpush1.bf16.msra.mxu0 %v967
        %1016 = vmatprep.mubr.bf16.mxu0 %v855
        %1017 = vmatmul.mubr.bf16.gmra.mrb[0].mxu0 %v854
        %v1018 = vpop.f32.mrb[0].mxu0
        %v1019 = vadd.f32 0.0, %v1018
        %v1020 = vpop.f32.mrb[0].mxu0
        %v1021 = vpop.f32.mrb[0].mxu0
        %v1022 = vpop.f32.mrb[0].mxu0
        %1023 = vdwg.mxu0
        %v1024 = vadd.f32 %v849, %v1019
        %v1025 = vpack.c.bf16 %v482, %v482
        %v1026 = vpack.c.bf16 %v484, %v484
        %v1027 = vld [vmem:[%s3 + $0x180] sm:$0xf]
        %v1028 = vld [vmem:[%s3 + $0x184] sm:$0xf]
        %v1029 = vld [vmem:[%s3 + $0x188] sm:$0xf]
        %v1030 = vld [vmem:[%s3 + $0x18c] sm:$0xf]
        %v1031 = vld [vmem:[%s3 + $0x190] sm:$0xf]
        %v1032 = vld [vmem:[%s3 + $0x194] sm:$0xf]
        %v1033 = vld [vmem:[%s3 + $0x198] sm:$0xf]
        %v1034 = vld [vmem:[%s3 + $0x19c] sm:$0xf]
        %v1035 = vld [vmem:[%s3 + $0x1a0] sm:$0xf]
        %v1036 = vld [vmem:[%s3 + $0x1a4] sm:$0xf]
        %v1037 = vld [vmem:[%s3 + $0x1a8] sm:$0xf]
        %v1038 = vld [vmem:[%s3 + $0x1ac] sm:$0xf]
        %v1039 = vld [vmem:[%s3 + $0x1b0] sm:$0xf]
        %v1040 = vld [vmem:[%s3 + $0x1b4] sm:$0xf]
        %v1041 = vld [vmem:[%s3 + $0x1b8] sm:$0xf]
        %v1042 = vld [vmem:[%s3 + $0x1bc] sm:$0xf]
        %v1043 = vld [vmem:[%s3 + $0x1c0] sm:$0xf]
        %v1044 = vld [vmem:[%s3 + $0x1c4] sm:$0xf]
        %v1045 = vld [vmem:[%s3 + $0x1c8] sm:$0xf]
        %v1046 = vld [vmem:[%s3 + $0x1cc] sm:$0xf]
        %v1047 = vld [vmem:[%s3 + $0x1d0] sm:$0xf]
        %v1048 = vld [vmem:[%s3 + $0x1d4] sm:$0xf]
        %v1049 = vld [vmem:[%s3 + $0x1d8] sm:$0xf]
        %v1050 = vld [vmem:[%s3 + $0x1dc] sm:$0xf]
        %v1051 = vld [vmem:[%s3 + $0x1e0] sm:$0xf]
        %v1052 = vld [vmem:[%s3 + $0x1e4] sm:$0xf]
        %v1053 = vld [vmem:[%s3 + $0x1e8] sm:$0xf]
        %v1054 = vld [vmem:[%s3 + $0x1ec] sm:$0xf]
        %v1055 = vld [vmem:[%s3 + $0x1f0] sm:$0xf]
        %v1056 = vld [vmem:[%s3 + $0x1f4] sm:$0xf]
        %v1057 = vld [vmem:[%s3 + $0x1f8] sm:$0xf]
        %v1058 = vld [vmem:[%s3 + $0x1fc] sm:$0xf]
        %v1091 = vunpack.c.l.b16 %v1027
        %v1092 = vunpack.c.l.b16 %v1028
        %v1093 = vunpack.c.l.b16 %v1029
        %v1094 = vunpack.c.l.b16 %v1030
        %v1095 = vunpack.c.l.b16 %v1031
        %v1096 = vunpack.c.l.b16 %v1032
        %v1097 = vunpack.c.l.b16 %v1033
        %v1098 = vunpack.c.l.b16 %v1034
        %v1099 = vunpack.c.l.b16 %v1035
        %v1100 = vunpack.c.l.b16 %v1036
        %v1101 = vunpack.c.l.b16 %v1037
        %v1102 = vunpack.c.l.b16 %v1038
        %v1103 = vunpack.c.l.b16 %v1039
        %v1104 = vunpack.c.l.b16 %v1040
        %v1105 = vunpack.c.l.b16 %v1041
        %v1106 = vunpack.c.l.b16 %v1042
        %v1107 = vunpack.c.l.b16 %v1043
        %v1108 = vunpack.c.l.b16 %v1044
        %v1109 = vunpack.c.l.b16 %v1045
        %v1110 = vunpack.c.l.b16 %v1046
        %v1111 = vunpack.c.l.b16 %v1047
        %v1112 = vunpack.c.l.b16 %v1048
        %v1113 = vunpack.c.l.b16 %v1049
        %v1114 = vunpack.c.l.b16 %v1050
        %v1115 = vunpack.c.l.b16 %v1051
        %v1116 = vunpack.c.l.b16 %v1052
        %v1117 = vunpack.c.l.b16 %v1053
        %v1118 = vunpack.c.l.b16 %v1054
        %v1119 = vunpack.c.l.b16 %v1055
        %v1120 = vunpack.c.l.b16 %v1056
        %v1121 = vunpack.c.l.b16 %v1057
        %v1122 = vunpack.c.l.b16 %v1058
        %v1123 = vpack.c.b16 %v1092, %v1091
        %v1124 = vpack.c.b16 %v1094, %v1093
        %v1125 = vpack.c.b16 %v1096, %v1095
        %v1126 = vpack.c.b16 %v1098, %v1097
        %v1127 = vpack.c.b16 %v1100, %v1099
        %v1128 = vpack.c.b16 %v1102, %v1101
        %v1129 = vpack.c.b16 %v1104, %v1103
        %v1130 = vpack.c.b16 %v1106, %v1105
        %v1131 = vpack.c.b16 %v1108, %v1107
        %v1132 = vpack.c.b16 %v1110, %v1109
        %v1133 = vpack.c.b16 %v1112, %v1111
        %v1134 = vpack.c.b16 %v1114, %v1113
        %v1135 = vpack.c.b16 %v1116, %v1115
        %v1136 = vpack.c.b16 %v1118, %v1117
        %v1137 = vpack.c.b16 %v1120, %v1119
        %v1138 = vpack.c.b16 %v1122, %v1121
        %1155 = vmatprep.subr.bf16.mxu0 0
        %1156 = vmatpush1.bf16.msra.mxu0 %v1123
        %1157 = vmatprep.subr.bf16.mxu0 0
        %1158 = vmatpush1.bf16.msra.mxu0 %v1124
        %1159 = vmatprep.subr.bf16.mxu0 0
        %1160 = vmatpush1.bf16.msra.mxu0 %v1125
        %1161 = vmatprep.subr.bf16.mxu0 0
        %1162 = vmatpush1.bf16.msra.mxu0 %v1126
        %1163 = vmatprep.subr.bf16.mxu0 0
        %1164 = vmatpush1.bf16.msra.mxu0 %v1127
        %1165 = vmatprep.subr.bf16.mxu0 0
        %1166 = vmatpush1.bf16.msra.mxu0 %v1128
        %1167 = vmatprep.subr.bf16.mxu0 0
        %1168 = vmatpush1.bf16.msra.mxu0 %v1129
        %1169 = vmatprep.subr.bf16.mxu0 0
        %1170 = vmatpush1.bf16.msra.mxu0 %v1130
        %1171 = vmatprep.subr.bf16.mxu0 0
        %1172 = vmatpush1.bf16.msra.mxu0 %v1131
        %1173 = vmatprep.subr.bf16.mxu0 0
        %1174 = vmatpush1.bf16.msra.mxu0 %v1132
        %1175 = vmatprep.subr.bf16.mxu0 0
        %1176 = vmatpush1.bf16.msra.mxu0 %v1133
        %1177 = vmatprep.subr.bf16.mxu0 0
        %1178 = vmatpush1.bf16.msra.mxu0 %v1134
        %1179 = vmatprep.subr.bf16.mxu0 0
        %1180 = vmatpush1.bf16.msra.mxu0 %v1135
        %1181 = vmatprep.subr.bf16.mxu0 0
        %1182 = vmatpush1.bf16.msra.mxu0 %v1136
        %1183 = vmatprep.subr.bf16.mxu0 0
        %1184 = vmatpush1.bf16.msra.mxu0 %v1137
        %1185 = vmatprep.subr.bf16.mxu0 0
        %1186 = vmatpush1.bf16.msra.mxu0 %v1138
        %1187 = vmatprep.mubr.bf16.mxu0 %v1026
        %1188 = vmatmul.mubr.bf16.gmra.mrb[0].mxu0 %v1025
        %v1189 = vpop.f32.mrb[0].mxu0
        %v1190 = vadd.f32 0.0, %v1189
        %v1191 = vpop.f32.mrb[0].mxu0
        %v1192 = vpop.f32.mrb[0].mxu0
        %v1193 = vpop.f32.mrb[0].mxu0
        %1194 = vdwg.mxu0
        %v1195 = vadd.f32 %v1024, %v1190
        %v1196 = vpack.c.bf16 %v488, %v488
        %v1197 = vpack.c.bf16 %v490, %v490
        %v1198 = vld [vmem:[%s3 + $0x200] sm:$0xf]
        %v1199 = vld [vmem:[%s3 + $0x204] sm:$0xf]
        %v1200 = vld [vmem:[%s3 + $0x208] sm:$0xf]
        %v1201 = vld [vmem:[%s3 + $0x20c] sm:$0xf]
        %v1202 = vld [vmem:[%s3 + $0x210] sm:$0xf]
        %v1203 = vld [vmem:[%s3 + $0x214] sm:$0xf]
        %v1204 = vld [vmem:[%s3 + $0x218] sm:$0xf]
        %v1205 = vld [vmem:[%s3 + $0x21c] sm:$0xf]
        %v1206 = vld [vmem:[%s3 + $0x220] sm:$0xf]
        %v1207 = vld [vmem:[%s3 + $0x224] sm:$0xf]
        %v1208 = vld [vmem:[%s3 + $0x228] sm:$0xf]
        %v1209 = vld [vmem:[%s3 + $0x22c] sm:$0xf]
        %v1210 = vld [vmem:[%s3 + $0x230] sm:$0xf]
        %v1211 = vld [vmem:[%s3 + $0x234] sm:$0xf]
        %v1212 = vld [vmem:[%s3 + $0x238] sm:$0xf]
        %v1213 = vld [vmem:[%s3 + $0x23c] sm:$0xf]
        %v1214 = vld [vmem:[%s3 + $0x240] sm:$0xf]
        %v1215 = vld [vmem:[%s3 + $0x244] sm:$0xf]
        %v1216 = vld [vmem:[%s3 + $0x248] sm:$0xf]
        %v1217 = vld [vmem:[%s3 + $0x24c] sm:$0xf]
        %v1218 = vld [vmem:[%s3 + $0x250] sm:$0xf]
        %v1219 = vld [vmem:[%s3 + $0x254] sm:$0xf]
        %v1220 = vld [vmem:[%s3 + $0x258] sm:$0xf]
        %v1221 = vld [vmem:[%s3 + $0x25c] sm:$0xf]
        %v1222 = vld [vmem:[%s3 + $0x260] sm:$0xf]
        %v1223 = vld [vmem:[%s3 + $0x264] sm:$0xf]
        %v1224 = vld [vmem:[%s3 + $0x268] sm:$0xf]
        %v1225 = vld [vmem:[%s3 + $0x26c] sm:$0xf]
        %v1226 = vld [vmem:[%s3 + $0x270] sm:$0xf]
        %v1227 = vld [vmem:[%s3 + $0x274] sm:$0xf]
        %v1228 = vld [vmem:[%s3 + $0x278] sm:$0xf]
        %v1229 = vld [vmem:[%s3 + $0x27c] sm:$0xf]
        %v1262 = vunpack.c.l.b16 %v1198
        %v1263 = vunpack.c.l.b16 %v1199
        %v1264 = vunpack.c.l.b16 %v1200
        %v1265 = vunpack.c.l.b16 %v1201
        %v1266 = vunpack.c.l.b16 %v1202
        %v1267 = vunpack.c.l.b16 %v1203
        %v1268 = vunpack.c.l.b16 %v1204
        %v1269 = vunpack.c.l.b16 %v1205
        %v1270 = vunpack.c.l.b16 %v1206
        %v1271 = vunpack.c.l.b16 %v1207
        %v1272 = vunpack.c.l.b16 %v1208
        %v1273 = vunpack.c.l.b16 %v1209
        %v1274 = vunpack.c.l.b16 %v1210
        %v1275 = vunpack.c.l.b16 %v1211
        %v1276 = vunpack.c.l.b16 %v1212
        %v1277 = vunpack.c.l.b16 %v1213
        %v1278 = vunpack.c.l.b16 %v1214
        %v1279 = vunpack.c.l.b16 %v1215
        %v1280 = vunpack.c.l.b16 %v1216
        %v1281 = vunpack.c.l.b16 %v1217
        %v1282 = vunpack.c.l.b16 %v1218
        %v1283 = vunpack.c.l.b16 %v1219
        %v1284 = vunpack.c.l.b16 %v1220
        %v1285 = vunpack.c.l.b16 %v1221
        %v1286 = vunpack.c.l.b16 %v1222
        %v1287 = vunpack.c.l.b16 %v1223
        %v1288 = vunpack.c.l.b16 %v1224
        %v1289 = vunpack.c.l.b16 %v1225
        %v1290 = vunpack.c.l.b16 %v1226
        %v1291 = vunpack.c.l.b16 %v1227
        %v1292 = vunpack.c.l.b16 %v1228
        %v1293 = vunpack.c.l.b16 %v1229
        %v1294 = vpack.c.b16 %v1263, %v1262
        %v1295 = vpack.c.b16 %v1265, %v1264
        %v1296 = vpack.c.b16 %v1267, %v1266
        %v1297 = vpack.c.b16 %v1269, %v1268
        %v1298 = vpack.c.b16 %v1271, %v1270
        %v1299 = vpack.c.b16 %v1273, %v1272
        %v1300 = vpack.c.b16 %v1275, %v1274
        %v1301 = vpack.c.b16 %v1277, %v1276
        %v1302 = vpack.c.b16 %v1279, %v1278
        %v1303 = vpack.c.b16 %v1281, %v1280
        %v1304 = vpack.c.b16 %v1283, %v1282
        %v1305 = vpack.c.b16 %v1285, %v1284
        %v1306 = vpack.c.b16 %v1287, %v1286
        %v1307 = vpack.c.b16 %v1289, %v1288
        %v1308 = vpack.c.b16 %v1291, %v1290
        %v1309 = vpack.c.b16 %v1293, %v1292
        %1326 = vmatprep.subr.bf16.mxu0 0
        %1327 = vmatpush1.bf16.msra.mxu0 %v1294
        %1328 = vmatprep.subr.bf16.mxu0 0
        %1329 = vmatpush1.bf16.msra.mxu0 %v1295
        %1330 = vmatprep.subr.bf16.mxu0 0
        %1331 = vmatpush1.bf16.msra.mxu0 %v1296
        %1332 = vmatprep.subr.bf16.mxu0 0
        %1333 = vmatpush1.bf16.msra.mxu0 %v1297
        %1334 = vmatprep.subr.bf16.mxu0 0
        %1335 = vmatpush1.bf16.msra.mxu0 %v1298
        %1336 = vmatprep.subr.bf16.mxu0 0
        %1337 = vmatpush1.bf16.msra.mxu0 %v1299
        %1338 = vmatprep.subr.bf16.mxu0 0
        %1339 = vmatpush1.bf16.msra.mxu0 %v1300
        %1340 = vmatprep.subr.bf16.mxu0 0
        %1341 = vmatpush1.bf16.msra.mxu0 %v1301
        %1342 = vmatprep.subr.bf16.mxu0 0
        %1343 = vmatpush1.bf16.msra.mxu0 %v1302
        %1344 = vmatprep.subr.bf16.mxu0 0
        %1345 = vmatpush1.bf16.msra.mxu0 %v1303
        %1346 = vmatprep.subr.bf16.mxu0 0
        %1347 = vmatpush1.bf16.msra.mxu0 %v1304
        %1348 = vmatprep.subr.bf16.mxu0 0
        %1349 = vmatpush1.bf16.msra.mxu0 %v1305
        %1350 = vmatprep.subr.bf16.mxu0 0
        %1351 = vmatpush1.bf16.msra.mxu0 %v1306
        %1352 = vmatprep.subr.bf16.mxu0 0
        %1353 = vmatpush1.bf16.msra.mxu0 %v1307
        %1354 = vmatprep.subr.bf16.mxu0 0
        %1355 = vmatpush1.bf16.msra.mxu0 %v1308
        %1356 = vmatprep.subr.bf16.mxu0 0
        %1357 = vmatpush1.bf16.msra.mxu0 %v1309
        %1358 = vmatprep.mubr.bf16.mxu0 %v1197
        %1359 = vmatmul.mubr.bf16.gmra.mrb[0].mxu0 %v1196
        %v1360 = vpop.f32.mrb[0].mxu0
        %v1361 = vadd.f32 0.0, %v1360
        %v1362 = vpop.f32.mrb[0].mxu0
        %v1363 = vpop.f32.mrb[0].mxu0
        %v1364 = vpop.f32.mrb[0].mxu0
        %1365 = vdwg.mxu0
        %v1366 = vadd.f32 %v1195, %v1361
        %v1367 = vpack.c.bf16 %v492, %v492
        %v1368 = vpack.c.bf16 %v494, %v494
        %v1369 = vld [vmem:[%s3 + $0x280] sm:$0xf]
        %v1370 = vld [vmem:[%s3 + $0x284] sm:$0xf]
        %v1371 = vld [vmem:[%s3 + $0x288] sm:$0xf]
        %v1372 = vld [vmem:[%s3 + $0x28c] sm:$0xf]
        %v1373 = vld [vmem:[%s3 + $0x290] sm:$0xf]
        %v1374 = vld [vmem:[%s3 + $0x294] sm:$0xf]
        %v1375 = vld [vmem:[%s3 + $0x298] sm:$0xf]
        %v1376 = vld [vmem:[%s3 + $0x29c] sm:$0xf]
        %v1377 = vld [vmem:[%s3 + $0x2a0] sm:$0xf]
        %v1378 = vld [vmem:[%s3 + $0x2a4] sm:$0xf]
        %v1379 = vld [vmem:[%s3 + $0x2a8] sm:$0xf]
        %v1380 = vld [vmem:[%s3 + $0x2ac] sm:$0xf]
        %v1381 = vld [vmem:[%s3 + $0x2b0] sm:$0xf]
        %v1382 = vld [vmem:[%s3 + $0x2b4] sm:$0xf]
        %v1383 = vld [vmem:[%s3 + $0x2b8] sm:$0xf]
        %v1384 = vld [vmem:[%s3 + $0x2bc] sm:$0xf]
        %v1385 = vld [vmem:[%s3 + $0x2c0] sm:$0xf]
        %v1386 = vld [vmem:[%s3 + $0x2c4] sm:$0xf]
        %v1387 = vld [vmem:[%s3 + $0x2c8] sm:$0xf]
        %v1388 = vld [vmem:[%s3 + $0x2cc] sm:$0xf]
        %v1389 = vld [vmem:[%s3 + $0x2d0] sm:$0xf]
        %v1390 = vld [vmem:[%s3 + $0x2d4] sm:$0xf]
        %v1391 = vld [vmem:[%s3 + $0x2d8] sm:$0xf]
        %v1392 = vld [vmem:[%s3 + $0x2dc] sm:$0xf]
        %v1393 = vld [vmem:[%s3 + $0x2e0] sm:$0xf]
        %v1394 = vld [vmem:[%s3 + $0x2e4] sm:$0xf]
        %v1395 = vld [vmem:[%s3 + $0x2e8] sm:$0xf]
        %v1396 = vld [vmem:[%s3 + $0x2ec] sm:$0xf]
        %v1397 = vld [vmem:[%s3 + $0x2f0] sm:$0xf]
        %v1398 = vld [vmem:[%s3 + $0x2f4] sm:$0xf]
        %v1399 = vld [vmem:[%s3 + $0x2f8] sm:$0xf]
        %v1400 = vld [vmem:[%s3 + $0x2fc] sm:$0xf]
        %v1433 = vunpack.c.l.b16 %v1369
        %v1434 = vunpack.c.l.b16 %v1370
        %v1435 = vunpack.c.l.b16 %v1371
        %v1436 = vunpack.c.l.b16 %v1372
        %v1437 = vunpack.c.l.b16 %v1373
        %v1438 = vunpack.c.l.b16 %v1374
        %v1439 = vunpack.c.l.b16 %v1375
        %v1440 = vunpack.c.l.b16 %v1376
        %v1441 = vunpack.c.l.b16 %v1377
        %v1442 = vunpack.c.l.b16 %v1378
        %v1443 = vunpack.c.l.b16 %v1379
        %v1444 = vunpack.c.l.b16 %v1380
        %v1445 = vunpack.c.l.b16 %v1381
        %v1446 = vunpack.c.l.b16 %v1382
        %v1447 = vunpack.c.l.b16 %v1383
        %v1448 = vunpack.c.l.b16 %v1384
        %v1449 = vunpack.c.l.b16 %v1385
        %v1450 = vunpack.c.l.b16 %v1386
        %v1451 = vunpack.c.l.b16 %v1387
        %v1452 = vunpack.c.l.b16 %v1388
        %v1453 = vunpack.c.l.b16 %v1389
        %v1454 = vunpack.c.l.b16 %v1390
        %v1455 = vunpack.c.l.b16 %v1391
        %v1456 = vunpack.c.l.b16 %v1392
        %v1457 = vunpack.c.l.b16 %v1393
        %v1458 = vunpack.c.l.b16 %v1394
        %v1459 = vunpack.c.l.b16 %v1395
        %v1460 = vunpack.c.l.b16 %v1396
        %v1461 = vunpack.c.l.b16 %v1397
        %v1462 = vunpack.c.l.b16 %v1398
        %v1463 = vunpack.c.l.b16 %v1399
        %v1464 = vunpack.c.l.b16 %v1400
        %v1465 = vpack.c.b16 %v1434, %v1433
        %v1466 = vpack.c.b16 %v1436, %v1435
        %v1467 = vpack.c.b16 %v1438, %v1437
        %v1468 = vpack.c.b16 %v1440, %v1439
        %v1469 = vpack.c.b16 %v1442, %v1441
        %v1470 = vpack.c.b16 %v1444, %v1443
        %v1471 = vpack.c.b16 %v1446, %v1445
        %v1472 = vpack.c.b16 %v1448, %v1447
        %v1473 = vpack.c.b16 %v1450, %v1449
        %v1474 = vpack.c.b16 %v1452, %v1451
        %v1475 = vpack.c.b16 %v1454, %v1453
        %v1476 = vpack.c.b16 %v1456, %v1455
        %v1477 = vpack.c.b16 %v1458, %v1457
        %v1478 = vpack.c.b16 %v1460, %v1459
        %v1479 = vpack.c.b16 %v1462, %v1461
        %v1480 = vpack.c.b16 %v1464, %v1463
        %1497 = vmatprep.subr.bf16.mxu0 0
        %1498 = vmatpush1.bf16.msra.mxu0 %v1465
        %1499 = vmatprep.subr.bf16.mxu0 0
        %1500 = vmatpush1.bf16.msra.mxu0 %v1466
        %1501 = vmatprep.subr.bf16.mxu0 0
        %1502 = vmatpush1.bf16.msra.mxu0 %v1467
        %1503 = vmatprep.subr.bf16.mxu0 0
        %1504 = vmatpush1.bf16.msra.mxu0 %v1468
        %1505 = vmatprep.subr.bf16.mxu0 0
        %1506 = vmatpush1.bf16.msra.mxu0 %v1469
        %1507 = vmatprep.subr.bf16.mxu0 0
        %1508 = vmatpush1.bf16.msra.mxu0 %v1470
        %1509 = vmatprep.subr.bf16.mxu0 0
        %1510 = vmatpush1.bf16.msra.mxu0 %v1471
        %1511 = vmatprep.subr.bf16.mxu0 0
        %1512 = vmatpush1.bf16.msra.mxu0 %v1472
        %1513 = vmatprep.subr.bf16.mxu0 0
        %1514 = vmatpush1.bf16.msra.mxu0 %v1473
        %1515 = vmatprep.subr.bf16.mxu0 0
        %1516 = vmatpush1.bf16.msra.mxu0 %v1474
        %1517 = vmatprep.subr.bf16.mxu0 0
        %1518 = vmatpush1.bf16.msra.mxu0 %v1475
        %1519 = vmatprep.subr.bf16.mxu0 0
        %1520 = vmatpush1.bf16.msra.mxu0 %v1476
        %1521 = vmatprep.subr.bf16.mxu0 0
        %1522 = vmatpush1.bf16.msra.mxu0 %v1477
        %1523 = vmatprep.subr.bf16.mxu0 0
        %1524 = vmatpush1.bf16.msra.mxu0 %v1478
        %1525 = vmatprep.subr.bf16.mxu0 0
        %1526 = vmatpush1.bf16.msra.mxu0 %v1479
        %1527 = vmatprep.subr.bf16.mxu0 0
        %1528 = vmatpush1.bf16.msra.mxu0 %v1480
        %1529 = vmatprep.mubr.bf16.mxu0 %v1368
        %1530 = vmatmul.mubr.bf16.gmra.mrb[0].mxu0 %v1367
        %v1531 = vpop.f32.mrb[0].mxu0
        %v1532 = vadd.f32 0.0, %v1531
        %v1533 = vpop.f32.mrb[0].mxu0
        %v1534 = vpop.f32.mrb[0].mxu0
        %v1535 = vpop.f32.mrb[0].mxu0
        %1536 = vdwg.mxu0
        %v1537 = vadd.f32 %v1366, %v1532
        %v1538 = vpack.c.bf16 %v498, %v498
        %v1539 = vpack.c.bf16 %v500, %v500
        %v1540 = vld [vmem:[%s3 + $0x300] sm:$0xf]
        %v1541 = vld [vmem:[%s3 + $0x304] sm:$0xf]
        %v1542 = vld [vmem:[%s3 + $0x308] sm:$0xf]
        %v1543 = vld [vmem:[%s3 + $0x30c] sm:$0xf]
        %v1544 = vld [vmem:[%s3 + $0x310] sm:$0xf]
        %v1545 = vld [vmem:[%s3 + $0x314] sm:$0xf]
        %v1546 = vld [vmem:[%s3 + $0x318] sm:$0xf]
        %v1547 = vld [vmem:[%s3 + $0x31c] sm:$0xf]
        %v1548 = vld [vmem:[%s3 + $0x320] sm:$0xf]
        %v1549 = vld [vmem:[%s3 + $0x324] sm:$0xf]
        %v1550 = vld [vmem:[%s3 + $0x328] sm:$0xf]
        %v1551 = vld [vmem:[%s3 + $0x32c] sm:$0xf]
        %v1552 = vld [vmem:[%s3 + $0x330] sm:$0xf]
        %v1553 = vld [vmem:[%s3 + $0x334] sm:$0xf]
        %v1554 = vld [vmem:[%s3 + $0x338] sm:$0xf]
        %v1555 = vld [vmem:[%s3 + $0x33c] sm:$0xf]
        %v1556 = vld [vmem:[%s3 + $0x340] sm:$0xf]
        %v1557 = vld [vmem:[%s3 + $0x344] sm:$0xf]
        %v1558 = vld [vmem:[%s3 + $0x348] sm:$0xf]
        %v1559 = vld [vmem:[%s3 + $0x34c] sm:$0xf]
        %v1560 = vld [vmem:[%s3 + $0x350] sm:$0xf]
        %v1561 = vld [vmem:[%s3 + $0x354] sm:$0xf]
        %v1562 = vld [vmem:[%s3 + $0x358] sm:$0xf]
        %v1563 = vld [vmem:[%s3 + $0x35c] sm:$0xf]
        %v1564 = vld [vmem:[%s3 + $0x360] sm:$0xf]
        %v1565 = vld [vmem:[%s3 + $0x364] sm:$0xf]
        %v1566 = vld [vmem:[%s3 + $0x368] sm:$0xf]
        %v1567 = vld [vmem:[%s3 + $0x36c] sm:$0xf]
        %v1568 = vld [vmem:[%s3 + $0x370] sm:$0xf]
        %v1569 = vld [vmem:[%s3 + $0x374] sm:$0xf]
        %v1570 = vld [vmem:[%s3 + $0x378] sm:$0xf]
        %v1571 = vld [vmem:[%s3 + $0x37c] sm:$0xf]
        %v1604 = vunpack.c.l.b16 %v1540
        %v1605 = vunpack.c.l.b16 %v1541
        %v1606 = vunpack.c.l.b16 %v1542
        %v1607 = vunpack.c.l.b16 %v1543
        %v1608 = vunpack.c.l.b16 %v1544
        %v1609 = vunpack.c.l.b16 %v1545
        %v1610 = vunpack.c.l.b16 %v1546
        %v1611 = vunpack.c.l.b16 %v1547
        %v1612 = vunpack.c.l.b16 %v1548
        %v1613 = vunpack.c.l.b16 %v1549
        %v1614 = vunpack.c.l.b16 %v1550
        %v1615 = vunpack.c.l.b16 %v1551
        %v1616 = vunpack.c.l.b16 %v1552
        %v1617 = vunpack.c.l.b16 %v1553
        %v1618 = vunpack.c.l.b16 %v1554
        %v1619 = vunpack.c.l.b16 %v1555
        %v1620 = vunpack.c.l.b16 %v1556
        %v1621 = vunpack.c.l.b16 %v1557
        %v1622 = vunpack.c.l.b16 %v1558
        %v1623 = vunpack.c.l.b16 %v1559
        %v1624 = vunpack.c.l.b16 %v1560
        %v1625 = vunpack.c.l.b16 %v1561
        %v1626 = vunpack.c.l.b16 %v1562
        %v1627 = vunpack.c.l.b16 %v1563
        %v1628 = vunpack.c.l.b16 %v1564
        %v1629 = vunpack.c.l.b16 %v1565
        %v1630 = vunpack.c.l.b16 %v1566
        %v1631 = vunpack.c.l.b16 %v1567
        %v1632 = vunpack.c.l.b16 %v1568
        %v1633 = vunpack.c.l.b16 %v1569
        %v1634 = vunpack.c.l.b16 %v1570
        %v1635 = vunpack.c.l.b16 %v1571
        %v1636 = vpack.c.b16 %v1605, %v1604
        %v1637 = vpack.c.b16 %v1607, %v1606
        %v1638 = vpack.c.b16 %v1609, %v1608
        %v1639 = vpack.c.b16 %v1611, %v1610
        %v1640 = vpack.c.b16 %v1613, %v1612
        %v1641 = vpack.c.b16 %v1615, %v1614
        %v1642 = vpack.c.b16 %v1617, %v1616
        %v1643 = vpack.c.b16 %v1619, %v1618
        %v1644 = vpack.c.b16 %v1621, %v1620
        %v1645 = vpack.c.b16 %v1623, %v1622
        %v1646 = vpack.c.b16 %v1625, %v1624
        %v1647 = vpack.c.b16 %v1627, %v1626
        %v1648 = vpack.c.b16 %v1629, %v1628
        %v1649 = vpack.c.b16 %v1631, %v1630
        %v1650 = vpack.c.b16 %v1633, %v1632
        %v1651 = vpack.c.b16 %v1635, %v1634
        %1668 = vmatprep.subr.bf16.mxu0 0
        %1669 = vmatpush1.bf16.msra.mxu0 %v1636
        %1670 = vmatprep.subr.bf16.mxu0 0
        %1671 = vmatpush1.bf16.msra.mxu0 %v1637
        %1672 = vmatprep.subr.bf16.mxu0 0
        %1673 = vmatpush1.bf16.msra.mxu0 %v1638
        %1674 = vmatprep.subr.bf16.mxu0 0
        %1675 = vmatpush1.bf16.msra.mxu0 %v1639
        %1676 = vmatprep.subr.bf16.mxu0 0
        %1677 = vmatpush1.bf16.msra.mxu0 %v1640
        %1678 = vmatprep.subr.bf16.mxu0 0
        %1679 = vmatpush1.bf16.msra.mxu0 %v1641
        %1680 = vmatprep.subr.bf16.mxu0 0
        %1681 = vmatpush1.bf16.msra.mxu0 %v1642
        %1682 = vmatprep.subr.bf16.mxu0 0
        %1683 = vmatpush1.bf16.msra.mxu0 %v1643
        %1684 = vmatprep.subr.bf16.mxu0 0
        %1685 = vmatpush1.bf16.msra.mxu0 %v1644
        %1686 = vmatprep.subr.bf16.mxu0 0
        %1687 = vmatpush1.bf16.msra.mxu0 %v1645
        %1688 = vmatprep.subr.bf16.mxu0 0
        %1689 = vmatpush1.bf16.msra.mxu0 %v1646
        %1690 = vmatprep.subr.bf16.mxu0 0
        %1691 = vmatpush1.bf16.msra.mxu0 %v1647
        %1692 = vmatprep.subr.bf16.mxu0 0
        %1693 = vmatpush1.bf16.msra.mxu0 %v1648
        %1694 = vmatprep.subr.bf16.mxu0 0
        %1695 = vmatpush1.bf16.msra.mxu0 %v1649
        %1696 = vmatprep.subr.bf16.mxu0 0
        %1697 = vmatpush1.bf16.msra.mxu0 %v1650
        %1698 = vmatprep.subr.bf16.mxu0 0
        %1699 = vmatpush1.bf16.msra.mxu0 %v1651
        %1700 = vmatprep.mubr.bf16.mxu0 %v1539
        %1701 = vmatmul.mubr.bf16.gmra.mrb[0].mxu0 %v1538
        %v1702 = vpop.f32.mrb[0].mxu0
        %v1703 = vadd.f32 0.0, %v1702
        %v1704 = vpop.f32.mrb[0].mxu0
        %v1705 = vpop.f32.mrb[0].mxu0
        %v1706 = vpop.f32.mrb[0].mxu0
        %1707 = vdwg.mxu0
        %v1708 = vadd.f32 %v1537, %v1703
        %v1709 = vpack.c.bf16 %v502, %v502
        %v1710 = vpack.c.bf16 %v504, %v504
        %v1711 = vld [vmem:[%s3 + $0x380] sm:$0xf]
        %v1712 = vld [vmem:[%s3 + $0x384] sm:$0xf]
        %v1713 = vld [vmem:[%s3 + $0x388] sm:$0xf]
        %v1714 = vld [vmem:[%s3 + $0x38c] sm:$0xf]
        %v1715 = vld [vmem:[%s3 + $0x390] sm:$0xf]
        %v1716 = vld [vmem:[%s3 + $0x394] sm:$0xf]
        %v1717 = vld [vmem:[%s3 + $0x398] sm:$0xf]
        %v1718 = vld [vmem:[%s3 + $0x39c] sm:$0xf]
        %v1719 = vld [vmem:[%s3 + $0x3a0] sm:$0xf]
        %v1720 = vld [vmem:[%s3 + $0x3a4] sm:$0xf]
        %v1721 = vld [vmem:[%s3 + $0x3a8] sm:$0xf]
        %v1722 = vld [vmem:[%s3 + $0x3ac] sm:$0xf]
        %v1723 = vld [vmem:[%s3 + $0x3b0] sm:$0xf]
        %v1724 = vld [vmem:[%s3 + $0x3b4] sm:$0xf]
        %v1725 = vld [vmem:[%s3 + $0x3b8] sm:$0xf]
        %v1726 = vld [vmem:[%s3 + $0x3bc] sm:$0xf]
        %v1727 = vld [vmem:[%s3 + $0x3c0] sm:$0xf]
        %v1728 = vld [vmem:[%s3 + $0x3c4] sm:$0xf]
        %v1729 = vld [vmem:[%s3 + $0x3c8] sm:$0xf]
        %v1730 = vld [vmem:[%s3 + $0x3cc] sm:$0xf]
        %v1731 = vld [vmem:[%s3 + $0x3d0] sm:$0xf]
        %v1732 = vld [vmem:[%s3 + $0x3d4] sm:$0xf]
        %v1733 = vld [vmem:[%s3 + $0x3d8] sm:$0xf]
        %v1734 = vld [vmem:[%s3 + $0x3dc] sm:$0xf]
        %v1735 = vld [vmem:[%s3 + $0x3e0] sm:$0xf]
        %v1736 = vld [vmem:[%s3 + $0x3e4] sm:$0xf]
        %v1737 = vld [vmem:[%s3 + $0x3e8] sm:$0xf]
        %v1738 = vld [vmem:[%s3 + $0x3ec] sm:$0xf]
        %v1739 = vld [vmem:[%s3 + $0x3f0] sm:$0xf]
        %v1740 = vld [vmem:[%s3 + $0x3f4] sm:$0xf]
        %v1741 = vld [vmem:[%s3 + $0x3f8] sm:$0xf]
        %v1742 = vld [vmem:[%s3 + $0x3fc] sm:$0xf]
        %v1775 = vunpack.c.l.b16 %v1711
        %v1776 = vunpack.c.l.b16 %v1712
        %v1777 = vunpack.c.l.b16 %v1713
        %v1778 = vunpack.c.l.b16 %v1714
        %v1779 = vunpack.c.l.b16 %v1715
        %v1780 = vunpack.c.l.b16 %v1716
        %v1781 = vunpack.c.l.b16 %v1717
        %v1782 = vunpack.c.l.b16 %v1718
        %v1783 = vunpack.c.l.b16 %v1719
        %v1784 = vunpack.c.l.b16 %v1720
        %v1785 = vunpack.c.l.b16 %v1721
        %v1786 = vunpack.c.l.b16 %v1722
        %v1787 = vunpack.c.l.b16 %v1723
        %v1788 = vunpack.c.l.b16 %v1724
        %v1789 = vunpack.c.l.b16 %v1725
        %v1790 = vunpack.c.l.b16 %v1726
        %v1791 = vunpack.c.l.b16 %v1727
        %v1792 = vunpack.c.l.b16 %v1728
        %v1793 = vunpack.c.l.b16 %v1729
        %v1794 = vunpack.c.l.b16 %v1730
        %v1795 = vunpack.c.l.b16 %v1731
        %v1796 = vunpack.c.l.b16 %v1732
        %v1797 = vunpack.c.l.b16 %v1733
        %v1798 = vunpack.c.l.b16 %v1734
        %v1799 = vunpack.c.l.b16 %v1735
        %v1800 = vunpack.c.l.b16 %v1736
        %v1801 = vunpack.c.l.b16 %v1737
        %v1802 = vunpack.c.l.b16 %v1738
        %v1803 = vunpack.c.l.b16 %v1739
        %v1804 = vunpack.c.l.b16 %v1740
        %v1805 = vunpack.c.l.b16 %v1741
        %v1806 = vunpack.c.l.b16 %v1742
        %v1807 = vpack.c.b16 %v1776, %v1775
        %v1808 = vpack.c.b16 %v1778, %v1777
        %v1809 = vpack.c.b16 %v1780, %v1779
        %v1810 = vpack.c.b16 %v1782, %v1781
        %v1811 = vpack.c.b16 %v1784, %v1783
        %v1812 = vpack.c.b16 %v1786, %v1785
        %v1813 = vpack.c.b16 %v1788, %v1787
        %v1814 = vpack.c.b16 %v1790, %v1789
        %v1815 = vpack.c.b16 %v1792, %v1791
        %v1816 = vpack.c.b16 %v1794, %v1793
        %v1817 = vpack.c.b16 %v1796, %v1795
        %v1818 = vpack.c.b16 %v1798, %v1797
        %v1819 = vpack.c.b16 %v1800, %v1799
        %v1820 = vpack.c.b16 %v1802, %v1801
        %v1821 = vpack.c.b16 %v1804, %v1803
        %v1822 = vpack.c.b16 %v1806, %v1805
        %1839 = vmatprep.subr.bf16.mxu0 0
        %1840 = vmatpush1.bf16.msra.mxu0 %v1807
        %1841 = vmatprep.subr.bf16.mxu0 0
        %1842 = vmatpush1.bf16.msra.mxu0 %v1808
        %1843 = vmatprep.subr.bf16.mxu0 0
        %1844 = vmatpush1.bf16.msra.mxu0 %v1809
        %1845 = vmatprep.subr.bf16.mxu0 0
        %1846 = vmatpush1.bf16.msra.mxu0 %v1810
        %1847 = vmatprep.subr.bf16.mxu0 0
        %1848 = vmatpush1.bf16.msra.mxu0 %v1811
        %1849 = vmatprep.subr.bf16.mxu0 0
        %1850 = vmatpush1.bf16.msra.mxu0 %v1812
        %1851 = vmatprep.subr.bf16.mxu0 0
        %1852 = vmatpush1.bf16.msra.mxu0 %v1813
        %1853 = vmatprep.subr.bf16.mxu0 0
        %1854 = vmatpush1.bf16.msra.mxu0 %v1814
        %1855 = vmatprep.subr.bf16.mxu0 0
        %1856 = vmatpush1.bf16.msra.mxu0 %v1815
        %1857 = vmatprep.subr.bf16.mxu0 0
        %1858 = vmatpush1.bf16.msra.mxu0 %v1816
        %1859 = vmatprep.subr.bf16.mxu0 0
        %1860 = vmatpush1.bf16.msra.mxu0 %v1817
        %1861 = vmatprep.subr.bf16.mxu0 0
        %1862 = vmatpush1.bf16.msra.mxu0 %v1818
        %1863 = vmatprep.subr.bf16.mxu0 0
        %1864 = vmatpush1.bf16.msra.mxu0 %v1819
        %1865 = vmatprep.subr.bf16.mxu0 0
        %1866 = vmatpush1.bf16.msra.mxu0 %v1820
        %1867 = vmatprep.subr.bf16.mxu0 0
        %1868 = vmatpush1.bf16.msra.mxu0 %v1821
        %1869 = vmatprep.subr.bf16.mxu0 0
        %1870 = vmatpush1.bf16.msra.mxu0 %v1822
        %1871 = vmatprep.mubr.bf16.mxu0 %v1710
        %1872 = vmatmul.mubr.bf16.gmra.mrb[0].mxu0 %v1709
        %v1873 = vpop.f32.mrb[0].mxu0
        %v1874 = vadd.f32 0.0, %v1873
        %v1875 = vpop.f32.mrb[0].mxu0
        %v1876 = vpop.f32.mrb[0].mxu0
        %v1877 = vpop.f32.mrb[0].mxu0
        %1878 = vdwg.mxu0
        %v1879 = vadd.f32 %v1708, %v1874
        %v1880 = vpack.c.bf16 %v508, %v508
        %v1881 = vpack.c.bf16 %v510, %v510
        %v1882 = vld [vmem:[%s3 + $0x400] sm:$0xf]
        %v1883 = vld [vmem:[%s3 + $0x404] sm:$0xf]
        %v1884 = vld [vmem:[%s3 + $0x408] sm:$0xf]
        %v1885 = vld [vmem:[%s3 + $0x40c] sm:$0xf]
        %v1886 = vld [vmem:[%s3 + $0x410] sm:$0xf]
        %v1887 = vld [vmem:[%s3 + $0x414] sm:$0xf]
        %v1888 = vld [vmem:[%s3 + $0x418] sm:$0xf]
        %v1889 = vld [vmem:[%s3 + $0x41c] sm:$0xf]
        %v1890 = vld [vmem:[%s3 + $0x420] sm:$0xf]
        %v1891 = vld [vmem:[%s3 + $0x424] sm:$0xf]
        %v1892 = vld [vmem:[%s3 + $0x428] sm:$0xf]
        %v1893 = vld [vmem:[%s3 + $0x42c] sm:$0xf]
        %v1894 = vld [vmem:[%s3 + $0x430] sm:$0xf]
        %v1895 = vld [vmem:[%s3 + $0x434] sm:$0xf]
        %v1896 = vld [vmem:[%s3 + $0x438] sm:$0xf]
        %v1897 = vld [vmem:[%s3 + $0x43c] sm:$0xf]
        %v1898 = vld [vmem:[%s3 + $0x440] sm:$0xf]
        %v1899 = vld [vmem:[%s3 + $0x444] sm:$0xf]
        %v1900 = vld [vmem:[%s3 + $0x448] sm:$0xf]
        %v1901 = vld [vmem:[%s3 + $0x44c] sm:$0xf]
        %v1902 = vld [vmem:[%s3 + $0x450] sm:$0xf]
        %v1903 = vld [vmem:[%s3 + $0x454] sm:$0xf]
        %v1904 = vld [vmem:[%s3 + $0x458] sm:$0xf]
        %v1905 = vld [vmem:[%s3 + $0x45c] sm:$0xf]
        %v1906 = vld [vmem:[%s3 + $0x460] sm:$0xf]
        %v1907 = vld [vmem:[%s3 + $0x464] sm:$0xf]
        %v1908 = vld [vmem:[%s3 + $0x468] sm:$0xf]
        %v1909 = vld [vmem:[%s3 + $0x46c] sm:$0xf]
        %v1910 = vld [vmem:[%s3 + $0x470] sm:$0xf]
        %v1911 = vld [vmem:[%s3 + $0x474] sm:$0xf]
        %v1912 = vld [vmem:[%s3 + $0x478] sm:$0xf]
        %v1913 = vld [vmem:[%s3 + $0x47c] sm:$0xf]
        %v1946 = vunpack.c.l.b16 %v1882
        %v1947 = vunpack.c.l.b16 %v1883
        %v1948 = vunpack.c.l.b16 %v1884
        %v1949 = vunpack.c.l.b16 %v1885
        %v1950 = vunpack.c.l.b16 %v1886
        %v1951 = vunpack.c.l.b16 %v1887
        %v1952 = vunpack.c.l.b16 %v1888
        %v1953 = vunpack.c.l.b16 %v1889
        %v1954 = vunpack.c.l.b16 %v1890
        %v1955 = vunpack.c.l.b16 %v1891
        %v1956 = vunpack.c.l.b16 %v1892
        %v1957 = vunpack.c.l.b16 %v1893
        %v1958 = vunpack.c.l.b16 %v1894
        %v1959 = vunpack.c.l.b16 %v1895
        %v1960 = vunpack.c.l.b16 %v1896
        %v1961 = vunpack.c.l.b16 %v1897
        %v1962 = vunpack.c.l.b16 %v1898
        %v1963 = vunpack.c.l.b16 %v1899
        %v1964 = vunpack.c.l.b16 %v1900
        %v1965 = vunpack.c.l.b16 %v1901
        %v1966 = vunpack.c.l.b16 %v1902
        %v1967 = vunpack.c.l.b16 %v1903
        %v1968 = vunpack.c.l.b16 %v1904
        %v1969 = vunpack.c.l.b16 %v1905
        %v1970 = vunpack.c.l.b16 %v1906
        %v1971 = vunpack.c.l.b16 %v1907
        %v1972 = vunpack.c.l.b16 %v1908
        %v1973 = vunpack.c.l.b16 %v1909
        %v1974 = vunpack.c.l.b16 %v1910
        %v1975 = vunpack.c.l.b16 %v1911
        %v1976 = vunpack.c.l.b16 %v1912
        %v1977 = vunpack.c.l.b16 %v1913
        %v1978 = vpack.c.b16 %v1947, %v1946
        %v1979 = vpack.c.b16 %v1949, %v1948
        %v1980 = vpack.c.b16 %v1951, %v1950
        %v1981 = vpack.c.b16 %v1953, %v1952
        %v1982 = vpack.c.b16 %v1955, %v1954
        %v1983 = vpack.c.b16 %v1957, %v1956
        %v1984 = vpack.c.b16 %v1959, %v1958
        %v1985 = vpack.c.b16 %v1961, %v1960
        %v1986 = vpack.c.b16 %v1963, %v1962
        %v1987 = vpack.c.b16 %v1965, %v1964
        %v1988 = vpack.c.b16 %v1967, %v1966
        %v1989 = vpack.c.b16 %v1969, %v1968
        %v1990 = vpack.c.b16 %v1971, %v1970
        %v1991 = vpack.c.b16 %v1973, %v1972
        %v1992 = vpack.c.b16 %v1975, %v1974
        %v1993 = vpack.c.b16 %v1977, %v1976
        %2010 = vmatprep.subr.bf16.mxu0 0
        %2011 = vmatpush1.bf16.msra.mxu0 %v1978
        %2012 = vmatprep.subr.bf16.mxu0 0
        %2013 = vmatpush1.bf16.msra.mxu0 %v1979
        %2014 = vmatprep.subr.bf16.mxu0 0
        %2015 = vmatpush1.bf16.msra.mxu0 %v1980
        %2016 = vmatprep.subr.bf16.mxu0 0
        %2017 = vmatpush1.bf16.msra.mxu0 %v1981
        %2018 = vmatprep.subr.bf16.mxu0 0
        %2019 = vmatpush1.bf16.msra.mxu0 %v1982
        %2020 = vmatprep.subr.bf16.mxu0 0
        %2021 = vmatpush1.bf16.msra.mxu0 %v1983
        %2022 = vmatprep.subr.bf16.mxu0 0
        %2023 = vmatpush1.bf16.msra.mxu0 %v1984
        %2024 = vmatprep.subr.bf16.mxu0 0
        %2025 = vmatpush1.bf16.msra.mxu0 %v1985
        %2026 = vmatprep.subr.bf16.mxu0 0
        %2027 = vmatpush1.bf16.msra.mxu0 %v1986
        %2028 = vmatprep.subr.bf16.mxu0 0
        %2029 = vmatpush1.bf16.msra.mxu0 %v1987
        %2030 = vmatprep.subr.bf16.mxu0 0
        %2031 = vmatpush1.bf16.msra.mxu0 %v1988
        %2032 = vmatprep.subr.bf16.mxu0 0
        %2033 = vmatpush1.bf16.msra.mxu0 %v1989
        %2034 = vmatprep.subr.bf16.mxu0 0
        %2035 = vmatpush1.bf16.msra.mxu0 %v1990
        %2036 = vmatprep.subr.bf16.mxu0 0
        %2037 = vmatpush1.bf16.msra.mxu0 %v1991
        %2038 = vmatprep.subr.bf16.mxu0 0
        %2039 = vmatpush1.bf16.msra.mxu0 %v1992
        %2040 = vmatprep.subr.bf16.mxu0 0
        %2041 = vmatpush1.bf16.msra.mxu0 %v1993
        %2042 = vmatprep.mubr.bf16.mxu0 %v1881
        %2043 = vmatmul.mubr.bf16.gmra.mrb[0].mxu0 %v1880
        %v2044 = vpop.f32.mrb[0].mxu0
        %v2045 = vadd.f32 0.0, %v2044
        %v2046 = vpop.f32.mrb[0].mxu0
        %v2047 = vpop.f32.mrb[0].mxu0
        %v2048 = vpop.f32.mrb[0].mxu0
        %2049 = vdwg.mxu0
        %v2050 = vadd.f32 %v1879, %v2045
        %2052 = vrot.lane.b32.xlu0 %v2050, 121
        %v2053 = vpop.permute.xlu0 %2052
        %v2055 = vmax.f32 %v2050, %v2053
        %2056 = vrot.lane.b32.xlu0 %v2050, 114
        %v2057 = vpop.permute.xlu0 %2056
        %v2059 = vmax.f32 %v2055, %v2057
        %2060 = vrot.lane.b32.xlu0 %v2050, 107
        %v2061 = vpop.permute.xlu0 %2060
        %v2063 = vmax.f32 %v2059, %v2061
        %2064 = vrot.lane.b32.xlu0 %v2050, 100
        %v2065 = vpop.permute.xlu0 %2064
        %v2067 = vmax.f32 %v2063, %v2065
        %2068 = vrot.lane.b32.xlu0 %v2050, 93
        %v2069 = vpop.permute.xlu0 %2068
        %v2071 = vmax.f32 %v2067, %v2069
        %2072 = vrot.lane.b32.xlu0 %v2050, 86
        %v2073 = vpop.permute.xlu0 %2072
        %v2075 = vmax.f32 %v2071, %v2073
        %vm2076 = vcmask 56320
        %v2077 = vsel %vm2076, %v2075, -inf
        %2078 = vmax.xlane.f32.xlu0 %v2077
        %v2079 = vpop.xlane.xlu0 %2078
        %v2080 = vpack.c.bf16 %v2079, %v2079
        %v2082 = vsel %vm343, %v267, 0
        %v2085 = vsel %vm347, %v2080, 0
        %2087 = vmatprep.subr.bf16.mxu0 0
        %2088 = vmatpush1.bf16.msra.mxu0 %v2085
        %2089 = vmatprep.subr.bf16.mxu0 0
        %2090 = vmatpush1.bf16.msra.mxu0 0
        %2091 = vmatprep.subr.bf16.mxu0 0
        %2092 = vmatpush1.bf16.msra.mxu0 0
        %2093 = vmatprep.subr.bf16.mxu0 0
        %2094 = vmatpush1.bf16.msra.mxu0 0
        %2095 = vmatprep.subr.bf16.mxu0 0
        %2096 = vmatpush1.bf16.msra.mxu0 0
        %2097 = vmatprep.subr.bf16.mxu0 0
        %2098 = vmatpush1.bf16.msra.mxu0 0
        %2099 = vmatprep.subr.bf16.mxu0 0
        %2100 = vmatpush1.bf16.msra.mxu0 0
        %2101 = vmatprep.subr.bf16.mxu0 0
        %2102 = vmatpush1.bf16.msra.mxu0 0
        %2103 = vmatprep.subr.bf16.mxu0 0
        %2104 = vmatpush1.bf16.msra.mxu0 0
        %2105 = vmatprep.subr.bf16.mxu0 0
        %2106 = vmatpush1.bf16.msra.mxu0 0
        %2107 = vmatprep.subr.bf16.mxu0 0
        %2108 = vmatpush1.bf16.msra.mxu0 0
        %2109 = vmatprep.subr.bf16.mxu0 0
        %2110 = vmatpush1.bf16.msra.mxu0 0
        %2111 = vmatprep.subr.bf16.mxu0 0
        %2112 = vmatpush1.bf16.msra.mxu0 0
        %2113 = vmatprep.subr.bf16.mxu0 0
        %2114 = vmatpush1.bf16.msra.mxu0 0
        %2115 = vmatprep.subr.bf16.mxu0 0
        %2116 = vmatpush1.bf16.msra.mxu0 0
        %2117 = vmatprep.subr.bf16.mxu0 0
        %2118 = vmatpush1.bf16.msra.mxu0 0
        %2119 = vmatprep.mubr.bf16.mxu0 0
        %2120 = vmatmul.mubr.bf16.gmra.mrb[0].mxu0 %v2082
        %v2121 = vpop.f32.mrb[0].mxu0
        %v2122 = vadd.f32 0.0, %v2121
        %v2123 = vpop.f32.mrb[0].mxu0
        %v2124 = vpop.f32.mrb[0].mxu0
        %v2125 = vpop.f32.mrb[0].mxu0
        %2126 = vdwg.mxu0
        %v2127 = vmax.f32 %v2122, 0.0
        %v2128 = vpack.c.bf16 %v2127, %v2127
        %v2130 = vsel %vm343, %v269, 0
        %v2133 = vsel %vm347, %v2128, 0
        %2135 = vmatprep.subr.bf16.mxu0 0
        %2136 = vmatpush1.bf16.msra.mxu0 %v2133
        %2137 = vmatprep.subr.bf16.mxu0 0
        %2138 = vmatpush1.bf16.msra.mxu0 0
        %2139 = vmatprep.subr.bf16.mxu0 0
        %2140 = vmatpush1.bf16.msra.mxu0 0
        %2141 = vmatprep.subr.bf16.mxu0 0
        %2142 = vmatpush1.bf16.msra.mxu0 0
        %2143 = vmatprep.subr.bf16.mxu0 0
        %2144 = vmatpush1.bf16.msra.mxu0 0
        %2145 = vmatprep.subr.bf16.mxu0 0
        %2146 = vmatpush1.bf16.msra.mxu0 0
        %2147 = vmatprep.subr.bf16.mxu0 0
        %2148 = vmatpush1.bf16.msra.mxu0 0
        %2149 = vmatprep.subr.bf16.mxu0 0
        %2150 = vmatpush1.bf16.msra.mxu0 0
        %2151 = vmatprep.subr.bf16.mxu0 0
        %2152 = vmatpush1.bf16.msra.mxu0 0
        %2153 = vmatprep.subr.bf16.mxu0 0
        %2154 = vmatpush1.bf16.msra.mxu0 0
        %2155 = vmatprep.subr.bf16.mxu0 0
        %2156 = vmatpush1.bf16.msra.mxu0 0
        %2157 = vmatprep.subr.bf16.mxu0 0
        %2158 = vmatpush1.bf16.msra.mxu0 0
        %2159 = vmatprep.subr.bf16.mxu0 0
        %2160 = vmatpush1.bf16.msra.mxu0 0
        %2161 = vmatprep.subr.bf16.mxu0 0
        %2162 = vmatpush1.bf16.msra.mxu0 0
        %2163 = vmatprep.subr.bf16.mxu0 0
        %2164 = vmatpush1.bf16.msra.mxu0 0
        %2165 = vmatprep.subr.bf16.mxu0 0
        %2166 = vmatpush1.bf16.msra.mxu0 0
        %2167 = vmatprep.mubr.bf16.mxu0 0
        %2168 = vmatmul.mubr.bf16.gmra.mrb[0].mxu0 %v2130
        %v2169 = vpop.f32.mrb[0].mxu0
        %v2170 = vadd.f32 0.0, %v2169
        %v2171 = vpop.f32.mrb[0].mxu0
        %v2172 = vpop.f32.mrb[0].mxu0
        %v2173 = vpop.f32.mrb[0].mxu0
        %2174 = vdwg.mxu0
        %v2175 = vmax.f32 %v2170, 0.0
        %v2176 = vpack.c.bf16 %v2175, %v2175
        %v2178 = vsel %vm343, %v271, 0
        %v2181 = vsel %vm347, %v2176, 0
        %2183 = vmatprep.subr.bf16.mxu0 0
        %2184 = vmatpush1.bf16.msra.mxu0 %v2181
        %2185 = vmatprep.subr.bf16.mxu0 0
        %2186 = vmatpush1.bf16.msra.mxu0 0
        %2187 = vmatprep.subr.bf16.mxu0 0
        %2188 = vmatpush1.bf16.msra.mxu0 0
        %2189 = vmatprep.subr.bf16.mxu0 0
        %2190 = vmatpush1.bf16.msra.mxu0 0
        %2191 = vmatprep.subr.bf16.mxu0 0
        %2192 = vmatpush1.bf16.msra.mxu0 0
        %2193 = vmatprep.subr.bf16.mxu0 0
        %2194 = vmatpush1.bf16.msra.mxu0 0
        %2195 = vmatprep.subr.bf16.mxu0 0
        %2196 = vmatpush1.bf16.msra.mxu0 0
        %2197 = vmatprep.subr.bf16.mxu0 0
        %2198 = vmatpush1.bf16.msra.mxu0 0
        %2199 = vmatprep.subr.bf16.mxu0 0
        %2200 = vmatpush1.bf16.msra.mxu0 0
        %2201 = vmatprep.subr.bf16.mxu0 0
        %2202 = vmatpush1.bf16.msra.mxu0 0
        %2203 = vmatprep.subr.bf16.mxu0 0
        %2204 = vmatpush1.bf16.msra.mxu0 0
        %2205 = vmatprep.subr.bf16.mxu0 0
        %2206 = vmatpush1.bf16.msra.mxu0 0
        %2207 = vmatprep.subr.bf16.mxu0 0
        %2208 = vmatpush1.bf16.msra.mxu0 0
        %2209 = vmatprep.subr.bf16.mxu0 0
        %2210 = vmatpush1.bf16.msra.mxu0 0
        %2211 = vmatprep.subr.bf16.mxu0 0
        %2212 = vmatpush1.bf16.msra.mxu0 0
        %2213 = vmatprep.subr.bf16.mxu0 0
        %2214 = vmatpush1.bf16.msra.mxu0 0
        %2215 = vmatprep.mubr.bf16.mxu0 0
        %2216 = vmatmul.mubr.bf16.gmra.mrb[0].mxu0 %v2178
        %v2217 = vpop.f32.mrb[0].mxu0
        %v2218 = vadd.f32 0.0, %v2217
        %v2219 = vpop.f32.mrb[0].mxu0
        %v2220 = vpop.f32.mrb[0].mxu0
        %v2221 = vpop.f32.mrb[0].mxu0
        %2222 = vdwg.mxu0
        %v2223 = vld [vmem:[%s5] sm:$0x3]
        %v2224 = vunpack.c.l.bf16 %v2223
        %2226 = vset.pattern.permute.xlu0 0
        %2227 = vperm.xlu0 %2226, %v2218
        %v2228 = vpop.permute.xlu0 %2227
        %v2231 = vlaneseq
        %v2232 = vshrl.u32 %v2231, 7
        %v2233 = vsub.s32 0, %v2232
        %v2234 = vrot.slane %v2224, %v2233
        %v2235 = vlaneseq
        %v2236 = vshrl.u32 %v2235, 7
        %v2237 = vsub.s32 2, %v2236
        %v2238 = vrot.slane %v2224, %v2237
        %v2241 = vlaneseq
        %v2242 = vshrl.u32 %v2241, 7
        %v2243 = vsub.s32 0, %v2242
        %v2244 = vrot.slane %v2234, %v2243
        %v2245 = vlaneseq
        %v2246 = vshrl.u32 %v2245, 7
        %v2247 = vsub.s32 0, %v2246
        %v2248 = vrot.slane %v2238, %v2247
        %v2249 = vmul.f32 %v2228, %v2244
        %v2250 = vmul.f32 %v2228, %v2248
        %v2251 = vadd.f32 %v2249, %v389
        %v2252 = vadd.f32 %v2250, %v391
        %v2253 = vpack.c.bf16 %v2251, %v2251
        %v2254 = vpack.c.bf16 %v2252, %v2252
        %v2259 = vunpack.c.l.b16 %v253
        %v2260 = vunpack.c.l.b16 %v254
        %v2261 = vunpack.c.l.b16 %v255
        %v2262 = vunpack.c.l.b16 %v256
        %v2263 = vpack.c.b16 %v2260, %v2259
        %v2264 = vpack.c.b16 %v2262, %v2261
        %v2266 = vsel %vm343, %v2263, 0
        %v2269 = vsel %vm343, %v2264, 0
        %v2272 = vsel %vm347, %v2253, 0
        %v2275 = vsel %vm347, %v2254, 0
        %2277 = vmatprep.subr.bf16.mxu0 %v2275
        %2278 = vmatpush1.bf16.msra.mxu0 %v2272
        %2279 = vmatprep.subr.bf16.mxu0 0
        %2280 = vmatpush1.bf16.msra.mxu0 0
        %2281 = vmatprep.subr.bf16.mxu0 0
        %2282 = vmatpush1.bf16.msra.mxu0 0
        %2283 = vmatprep.subr.bf16.mxu0 0
        %2284 = vmatpush1.bf16.msra.mxu0 0
        %2285 = vmatprep.subr.bf16.mxu0 0
        %2286 = vmatpush1.bf16.msra.mxu0 0
        %2287 = vmatprep.subr.bf16.mxu0 0
        %2288 = vmatpush1.bf16.msra.mxu0 0
        %2289 = vmatprep.subr.bf16.mxu0 0
        %2290 = vmatpush1.bf16.msra.mxu0 0
        %2291 = vmatprep.subr.bf16.mxu0 0
        %2292 = vmatpush1.bf16.msra.mxu0 0
        %2293 = vmatprep.subr.bf16.mxu0 0
        %2294 = vmatpush1.bf16.msra.mxu0 0
        %2295 = vmatprep.subr.bf16.mxu0 0
        %2296 = vmatpush1.bf16.msra.mxu0 0
        %2297 = vmatprep.subr.bf16.mxu0 0
        %2298 = vmatpush1.bf16.msra.mxu0 0
        %2299 = vmatprep.subr.bf16.mxu0 0
        %2300 = vmatpush1.bf16.msra.mxu0 0
        %2301 = vmatprep.subr.bf16.mxu0 0
        %2302 = vmatpush1.bf16.msra.mxu0 0
        %2303 = vmatprep.subr.bf16.mxu0 0
        %2304 = vmatpush1.bf16.msra.mxu0 0
        %2305 = vmatprep.subr.bf16.mxu0 0
        %2306 = vmatpush1.bf16.msra.mxu0 0
        %2307 = vmatprep.subr.bf16.mxu0 0
        %2308 = vmatpush1.bf16.msra.mxu0 0
        %2309 = vmatprep.mubr.bf16.mxu0 0
        %2310 = vmatmul.mubr.bf16.gmra.mrb[0].mxu0 %v2266
        %v2311 = vpop.f32.mrb[0].mxu0
        %v2312 = vadd.f32 0.0, %v2311
        %v2313 = vpop.f32.mrb[0].mxu0
        %v2314 = vadd.f32 0.0, %v2313
        %v2315 = vpop.f32.mrb[0].mxu0
        %v2316 = vadd.f32 0.0, %v2315
        %v2317 = vpop.f32.mrb[0].mxu0
        %v2318 = vadd.f32 0.0, %v2317
        %2319 = vmatprep.mubr.bf16.mxu0 0
        %2320 = vmatmul.mubr.bf16.gmra.mrb[0].mxu0 %v2269
        %v2321 = vpop.f32.mrb[0].mxu0
        %v2322 = vadd.f32 0.0, %v2321
        %v2323 = vpop.f32.mrb[0].mxu0
        %v2324 = vadd.f32 0.0, %v2323
        %v2325 = vpop.f32.mrb[0].mxu0
        %v2326 = vadd.f32 0.0, %v2325
        %v2327 = vpop.f32.mrb[0].mxu0
        %v2328 = vadd.f32 0.0, %v2327
        %2329 = vdwg.mxu0
        %v2330 = vsub.f32 0.0, %v2312
        %v2331 = vsub.f32 0.0, %v2314
        %v2332 = vsub.f32 0.0, %v2316
        %v2333 = vsub.f32 0.0, %v2318
        %v2334 = vsub.f32 0.0, %v2322
        %v2335 = vsub.f32 0.0, %v2324
        %v2336 = vsub.f32 0.0, %v2326
        %v2337 = vsub.f32 0.0, %v2328
        %v2338 = vmul.f32 %v2330, 1.442695
        %v2339 = vpow.pop %v2338
        %v2340 = vmul.f32 %v2331, 1.442695
        %v2341 = vpow.pop %v2340
        %v2342 = vmul.f32 %v2332, 1.442695
        %v2343 = vpow.pop %v2342
        %v2344 = vmul.f32 %v2333, 1.442695
        %v2345 = vpow.pop %v2344
        %v2346 = vmul.f32 %v2334, 1.442695
        %v2347 = vpow.pop %v2346
        %v2348 = vmul.f32 %v2335, 1.442695
        %v2349 = vpow.pop %v2348
        %v2350 = vmul.f32 %v2336, 1.442695
        %v2351 = vpow.pop %v2350
        %v2352 = vmul.f32 %v2337, 1.442695
        %v2353 = vpow.pop %v2352
        %v2354 = vadd.f32 %v2339, 1.0
        %v2355 = vadd.f32 %v2341, 1.0
        %v2356 = vadd.f32 %v2343, 1.0
        %v2357 = vadd.f32 %v2345, 1.0
        %v2358 = vadd.f32 %v2347, 1.0
        %v2359 = vadd.f32 %v2349, 1.0
        %v2360 = vadd.f32 %v2351, 1.0
        %v2361 = vadd.f32 %v2353, 1.0
        %v2362 = vrcp.pop %v2354
        %v2363 = vmul.f32 1.0, %v2362
        %v2364 = vrcp.pop %v2355
        %v2365 = vmul.f32 1.0, %v2364
        %v2366 = vrcp.pop %v2356
        %v2367 = vmul.f32 1.0, %v2366
        %v2368 = vrcp.pop %v2357
        %v2369 = vmul.f32 1.0, %v2368
        %v2370 = vrcp.pop %v2358
        %v2371 = vmul.f32 1.0, %v2370
        %v2372 = vrcp.pop %v2359
        %v2373 = vmul.f32 1.0, %v2372
        %v2374 = vrcp.pop %v2360
        %v2375 = vmul.f32 1.0, %v2374
        %v2376 = vrcp.pop %v2361
        %v2377 = vmul.f32 1.0, %v2376
        %2378 = vst [vmem:[%s244] sm:$0xff] %v2363
        %2379 = vst [vmem:[%s244 + $0x8] sm:$0xff] %v2365
        %2380 = vst [vmem:[%s244 + $0x10] sm:$0xff] %v2367
        %2381 = vst [vmem:[%s244 + $0x18] sm:$0xff] %v2369
        %2382 = vst [vmem:[%s244 + $0x20] sm:$0xff] %v2371
        %2383 = vst [vmem:[%s244 + $0x28] sm:$0xff] %v2373
        %2384 = vst [vmem:[%s244 + $0x30] sm:$0xff] %v2375
        %2385 = vst [vmem:[%s244 + $0x38] sm:$0xff] %v2377
        %s2386 = sand.u32 %s159, 1
        %s2387 = scalar_lea.sflag [#allocation3], %s2386
        %s2388 = sand.u32 %s159, 1
        %s2389 = smul.addr %s2388, 64
        %s2390 = scalar_lea.vmem [#allocation2], %s2389
        // Predicated region
        $region45: #{tpu_custom_call.1} parent=43 // pred_check
          %p2391 = pneg %p169
        $region46: #{tpu_custom_call.1} parent=43 // pred_check_branch
          %2393 = sbr.rel (%p2391) target = $region48
        $region47: #{tpu_custom_call.1} parent=43 // pred_region
          %s2395 = ssub.s32 1024, 1024
          %2396 = vsyncadd %s2387, %s2395
          %s2397 = smul.addr %s20, 8
          %s2398 = smul.addr %s2397, 128
          %s2399 = scalar_lea.hbm %s6, %s2398
          %s2400 = sshll.u32 %s2390, 4
          %s2401 = int_to_ptr.vmem [resolvable:$true] %s2400
          %2406 = dma.vmem_to_hbm [thread:$0]  %s2401, 1024, %s2399, %s2387, 256, 256, 16
        $region48: #{tpu_custom_call.1} parent=43 // pred_fallthru
          _
      $region44: #{tpu_custom_call.1} parent=5 // pred_fallthru
        _
      %p2407 = scmp.le.s32.totalorder 2, %s15
      // Predicated region
      $region49: #{tpu_custom_call.1} parent=5 // pred_check
        %p2408 = pneg %p2407
      $region50: #{tpu_custom_call.1} parent=5 // pred_check_branch
        %2410 = sbr.rel (%p2408) target = $region52
      $region51: #{tpu_custom_call.1} parent=5 // pred_region
        %s2411 = ssub.s32 %s15, 2
        // Predicated region
        $region53: #{tpu_custom_call.1} parent=51 // pred_check
          %p2412 = pneg %p175
        $region54: #{tpu_custom_call.1} parent=51 // pred_check_branch
          %2414 = sbr.rel (%p2412) target = $region56
        $region55: #{tpu_custom_call.1} parent=51 // pred_region
          %s2415 = sand.u32 %s160, 1
          %s2416 = scalar_lea.sflag [#allocation3], %s2415
          %s2417 = sand.u32 %s160, 1
          %s2418 = smul.addr %s2417, 64
          %s2419 = scalar_lea.vmem [#allocation2], %s2418
          %2420 = dma.done %s2416, 1024
        $region56: #{tpu_custom_call.1} parent=51 // pred_fallthru
          _
      $region52: #{tpu_custom_call.1} parent=5 // pred_fallthru
        _
    $region6: #{tpu_custom_call.1} parent=1 // loop_footer
      %s19 = sadd.s32 1, %s15
    $region7: #{tpu_custom_call.1} parent=1 // loop_footer_branch
      %14 = sbr.rel target = $region3
    $region8: #{tpu_custom_call.1} parent=1 // loop_exit
      _
    %2421 = vsyncpa [#allocation3], 1
    %s2422 = scalar_lea.sflag [#allocation3], 1
    %2423 = vsyncpa %s2422, 1

// kernel: tpu_custom_call.1
$region0: #{tpu_custom_call.1}
  #allocation0 [shape = 'u32[]', space=smem, size = 0x4, offset = 0x4, fixed_abs, tag = 'smem constant byte address 0x4 - core index']
  #allocation1 [shape = 'u32[144,128]{1,0:T(1,128)}', space=vmem, size = 0x12000, scoped, tag = 'internal scratch']
  %s0 = inlined_call_operand.vmem [shape: bf16[2,32,256], index: 0, kind: input, shape index: {}]
  %s1 = inlined_call_operand.vmem [shape: bf16[64,32], index: 1, kind: input, shape index: {}]
  %s2 = inlined_call_operand.vmem [shape: bf16[4,72,8], index: 2, kind: input, shape index: {}]
  %s3 = inlined_call_operand.vmem [shape: bf16[2304,49], index: 3, kind: input, shape index: {}]
  %s4 = inlined_call_operand.vmem [shape: bf16[9,1], index: 4, kind: input, shape index: {}]
  %s5 = inlined_call_operand.vmem [shape: bf16[1,256], index: 5, kind: input, shape index: {}]
  %s6 = inlined_call_operand.hbm [shape: f32[2,32,256], index: 6, kind: output, shape index: {}]
  %s7 = sld [smem:[#allocation0]]
  $region57: #{tpu_custom_call.1} parent=0
    _
  %s9 = ssub.s32 1, %s7
  %s10 = scalar_select 0, %s9, %s7
  $region1: #{tpu_custom_call.1} parent=0
    #allocation2 [shape = 'u8[65536]{0}', space=vmem, size = 0x10000, scoped, tag = 'output window, operand 0']
    #allocation3 [shape = 's32[2]{0}', space=sflag, size = 0x8, scoped, tag = 'scoped memory for tpu_custom_call.1']
    %11 = vsyncpa [#allocation3], 0
    %s12 = scalar_lea.sflag [#allocation3], 1
    %13 = vsyncpa %s12, 0
    loop: start=0, step=1, limit=4
    $region2: #{tpu_custom_call.1} parent=1 // loop_pre_header
      _
    $region3: #{tpu_custom_call.1} parent=1 // loop_header
      %s15 = sphi 0, %s19
      %p16 = scmp.ge.s32.totalorder %s15, 4
      %s25 = sphi 0, %s27
      %s28 = sphi 0, %s25
      %s29 = sphi 0, %s28
      %s45 = sphi 0, %s29
      %s49 = sphi 0, %s49
      %s51 = sphi 0, %s49
      %s52 = sphi 0, %s51
      %s66 = sphi 0, %s52
      %s70 = sphi 0, %s70
      %s72 = sphi 0, %s70
      %s73 = sphi 0, %s72
      %s87 = sphi 0, %s73
      %s91 = sphi 0, %s91
      %s93 = sphi 0, %s91
      %s94 = sphi 0, %s93
      %s108 = sphi 0, %s94
      %s112 = sphi 0, %s112
      %s114 = sphi 0, %s112
      %s115 = sphi 0, %s114
      %s129 = sphi 0, %s115
      %s133 = sphi 0, %s133
      %s135 = sphi 0, %s133
      %s136 = sphi 0, %s135
      %s150 = sphi 0, %s136
      %s156 = sphi 0, %s158
      %s159 = sphi 0, %s156
      %s160 = sphi 0, %s159
      %s176 = sphi 0, %s160
    $region4: #{tpu_custom_call.1} parent=1 // loop_header_branch
      %18 = sbr.rel (%p16) target = $region8
    $region5: #{tpu_custom_call.1} parent=1 // loop_body
      %s20 = ssub.s32 %s15, 1
      %s21 = ssub.s32 %s15, 2
      %s22 = sadd.s32 %s15, 1
      %s23 = ssub.s32 %s15, %s22
      %p24 = scmp.eq.s32.totalorder %s23, 0
      %s26 = sadd.s32 %s25, 1
      %s27 = scalar_select %p24, %s25, %s26
      %p30 = pneg %p24
      %p31 = scmp.eq.s32.totalorder %s15, 1
      %p32 = por %p30, %p31
      %p33 = scmp.ne.s32.totalorder %s25, %s28
      %p34 = scmp.eq.s32.totalorder %s15, 0
      %p35 = por %p33, %p34
      %p36 = scmp.ne.s32.totalorder %s25, %s28
      %p37 = scmp.eq.s32.totalorder %s20, 1
      %p38 = por %p36, %p37
      %p39 = scmp.ne.s32.totalorder %s28, %s29
      %p40 = scmp.eq.s32.totalorder %s20, 0
      %p41 = por %p39, %p40
      %p42 = scmp.ne.s32.totalorder %s28, %s29
      %p43 = scmp.eq.s32.totalorder %s21, 1
      %p44 = por %p42, %p43
      %p46 = scmp.ne.s32.totalorder %s29, %s45
      %p47 = scmp.eq.s32.totalorder %s21, 0
      %p48 = por %p46, %p47
      %s50 = sadd.s32 %s49, 1
      %p53 = scmp.eq.s32.totalorder %s15, 1
      %p54 = scmp.ne.s32.totalorder %s49, %s51
      %p55 = scmp.eq.s32.totalorder %s15, 0
      %p56 = por %p54, %p55
      %p57 = scmp.ne.s32.totalorder %s49, %s51
      %p58 = scmp.eq.s32.totalorder %s20, 1
      %p59 = por %p57, %p58
      %p60 = scmp.ne.s32.totalorder %s51, %s52
      %p61 = scmp.eq.s32.totalorder %s20, 0
      %p62 = por %p60, %p61
      %p63 = scmp.ne.s32.totalorder %s51, %s52
      %p64 = scmp.eq.s32.totalorder %s21, 1
      %p65 = por %p63, %p64
      %p67 = scmp.ne.s32.totalorder %s52, %s66
      %p68 = scmp.eq.s32.totalorder %s21, 0
      %p69 = por %p67, %p68
      %s71 = sadd.s32 %s70, 1
      %p74 = scmp.eq.s32.totalorder %s15, 1
      %p75 = scmp.ne.s32.totalorder %s70, %s72
      %p76 = scmp.eq.s32.totalorder %s15, 0
      %p77 = por %p75, %p76
      %p78 = scmp.ne.s32.totalorder %s70, %s72
      %p79 = scmp.eq.s32.totalorder %s20, 1
      %p80 = por %p78, %p79
      %p81 = scmp.ne.s32.totalorder %s72, %s73
      %p82 = scmp.eq.s32.totalorder %s20, 0
      %p83 = por %p81, %p82
      %p84 = scmp.ne.s32.totalorder %s72, %s73
      %p85 = scmp.eq.s32.totalorder %s21, 1
      %p86 = por %p84, %p85
      %p88 = scmp.ne.s32.totalorder %s73, %s87
      %p89 = scmp.eq.s32.totalorder %s21, 0
      %p90 = por %p88, %p89
      %s92 = sadd.s32 %s91, 1
      %p95 = scmp.eq.s32.totalorder %s15, 1
      %p96 = scmp.ne.s32.totalorder %s91, %s93
      %p97 = scmp.eq.s32.totalorder %s15, 0
      %p98 = por %p96, %p97
      %p99 = scmp.ne.s32.totalorder %s91, %s93
      %p100 = scmp.eq.s32.totalorder %s20, 1
      %p101 = por %p99, %p100
      %p102 = scmp.ne.s32.totalorder %s93, %s94
      %p103 = scmp.eq.s32.totalorder %s20, 0
      %p104 = por %p102, %p103
      %p105 = scmp.ne.s32.totalorder %s93, %s94
      %p106 = scmp.eq.s32.totalorder %s21, 1
      %p107 = por %p105, %p106
      %p109 = scmp.ne.s32.totalorder %s94, %s108
      %p110 = scmp.eq.s32.totalorder %s21, 0
      %p111 = por %p109, %p110
      %s113 = sadd.s32 %s112, 1
      %p116 = scmp.eq.s32.totalorder %s15, 1
      %p117 = scmp.ne.s32.totalorder %s112, %s114
      %p118 = scmp.eq.s32.totalorder %s15, 0
      %p119 = por %p117, %p118
      %p120 = scmp.ne.s32.totalorder %s112, %s114
      %p121 = scmp.eq.s32.totalorder %s20, 1
      %p122 = por %p120, %p121
      %p123 = scmp.ne.s32.totalorder %s114, %s115
      %p124 = scmp.eq.s32.totalorder %s20, 0
      %p125 = por %p123, %p124
      %p126 = scmp.ne.s32.totalorder %s114, %s115
      %p127 = scmp.eq.s32.totalorder %s21, 1
      %p128 = por %p126, %p127
      %p130 = scmp.ne.s32.totalorder %s115, %s129
      %p131 = scmp.eq.s32.totalorder %s21, 0
      %p132 = por %p130, %p131
      %s134 = sadd.s32 %s133, 1
      %p137 = scmp.eq.s32.totalorder %s15, 1
      %p138 = scmp.ne.s32.totalorder %s133, %s135
      %p139 = scmp.eq.s32.totalorder %s15, 0
      %p140 = por %p138, %p139
      %p141 = scmp.ne.s32.totalorder %s133, %s135
      %p142 = scmp.eq.s32.totalorder %s20, 1
      %p143 = por %p141, %p142
      %p144 = scmp.ne.s32.totalorder %s135, %s136
      %p145 = scmp.eq.s32.totalorder %s20, 0
      %p146 = por %p144, %p145
      %p147 = scmp.ne.s32.totalorder %s135, %s136
      %p148 = scmp.eq.s32.totalorder %s21, 1
      %p149 = por %p147, %p148
      %p151 = scmp.ne.s32.totalorder %s136, %s150
      %p152 = scmp.eq.s32.totalorder %s21, 0
      %p153 = por %p151, %p152
      %s154 = ssub.s32 %s15, %s22
      %p155 = scmp.eq.s32.totalorder %s154, 0
      %s157 = sadd.s32 %s156, 1
      %s158 = scalar_select %p155, %s156, %s157
      %p161 = pneg %p155
      %p162 = scmp.eq.s32.totalorder %s15, 1
      %p163 = por %p161, %p162
      %p164 = scmp.ne.s32.totalorder %s156, %s159
      %p165 = scmp.eq.s32.totalorder %s15, 0
      %p166 = por %p164, %p165
      %p167 = scmp.ne.s32.totalorder %s156, %s159
      %p168 = scmp.eq.s32.totalorder %s20, 1
      %p169 = por %p167, %p168
      %p170 = scmp.ne.s32.totalorder %s159, %s160
      %p171 = scmp.eq.s32.totalorder %s20, 0
      %p172 = por %p170, %p171
      %p173 = scmp.ne.s32.totalorder %s159, %s160
      %p174 = scmp.eq.s32.totalorder %s21, 1
      %p175 = por %p173, %p174
      %p177 = scmp.ne.s32.totalorder %s160, %s176
      %p178 = scmp.eq.s32.totalorder %s21, 0
      %p179 = por %p177, %p178
      %p180 = scmp.le.s32.totalorder 1, %s15
      %p181 = scmp.lt.s32.totalorder %s15, 3
      %p182 = pnand %p180, %p181
      %p183 = pneg %p182
      // Predicated region
      $region9: #{tpu_custom_call.1} parent=5 // pred_check
        _
      $region10: #{tpu_custom_call.1} parent=5 // pred_check_branch
        %185 = sbr.rel (%p182) target = $region12
      $region11: #{tpu_custom_call.1} parent=5 // pred_region
        %s186 = ssub.s32 %s15, 1
        // Predicated region
        $region13: #{tpu_custom_call.1} parent=11 // pred_check
          %p187 = pneg %p62
        $region14: #{tpu_custom_call.1} parent=11 // pred_check_branch
          %189 = sbr.rel (%p187) target = $region16
        $region15: #{tpu_custom_call.1} parent=11 // pred_region
          _
        $region16: #{tpu_custom_call.1} parent=11 // pred_fallthru
          _
        // Predicated region
        $region17: #{tpu_custom_call.1} parent=11 // pred_check
          %p190 = pneg %p83
        $region18: #{tpu_custom_call.1} parent=11 // pred_check_branch
          %192 = sbr.rel (%p190) target = $region20
        $region19: #{tpu_custom_call.1} parent=11 // pred_region
          _
        $region20: #{tpu_custom_call.1} parent=11 // pred_fallthru
          _
        // Predicated region
        $region21: #{tpu_custom_call.1} parent=11 // pred_check
          %p193 = pneg %p104
        $region22: #{tpu_custom_call.1} parent=11 // pred_check_branch
          %195 = sbr.rel (%p193) target = $region24
        $region23: #{tpu_custom_call.1} parent=11 // pred_region
          _
        $region24: #{tpu_custom_call.1} parent=11 // pred_fallthru
          _
        // Predicated region
        $region25: #{tpu_custom_call.1} parent=11 // pred_check
          %p196 = pneg %p125
        $region26: #{tpu_custom_call.1} parent=11 // pred_check_branch
          %198 = sbr.rel (%p196) target = $region28
        $region27: #{tpu_custom_call.1} parent=11 // pred_region
          _
        $region28: #{tpu_custom_call.1} parent=11 // pred_fallthru
          _
        // Predicated region
        $region29: #{tpu_custom_call.1} parent=11 // pred_check
          %p199 = pneg %p146
        $region30: #{tpu_custom_call.1} parent=11 // pred_check_branch
          %201 = sbr.rel (%p199) target = $region32
        $region31: #{tpu_custom_call.1} parent=11 // pred_region
          _
        $region32: #{tpu_custom_call.1} parent=11 // pred_fallthru
          _
      $region12: #{tpu_custom_call.1} parent=5 // pred_fallthru
        _
      %p202 = scmp.lt.s32.totalorder %s15, 2
      // Predicated region
      $region33: #{tpu_custom_call.1} parent=5 // pred_check
        %p203 = pneg %p202
      $region34: #{tpu_custom_call.1} parent=5 // pred_check_branch
        %205 = sbr.rel (%p203) target = $region36
      $region35: #{tpu_custom_call.1} parent=5 // pred_region
        // Predicated region
        $region37: #{tpu_custom_call.1} parent=35 // pred_check
          %p206 = pneg %p35
        $region38: #{tpu_custom_call.1} parent=35 // pred_check_branch
          %208 = sbr.rel (%p206) target = $region40
        $region39: #{tpu_custom_call.1} parent=35 // pred_region
          %p209 = scmp.lt.s32.totalorder %s15, 1
          %s210 = scalar_select %p209, %s15, 1
          %s211 = smul.addr %s210, 8
          %s212 = smul.addr %s211, 4
          %s213 = scalar_lea.vmem %s0, %s212
        $region40: #{tpu_custom_call.1} parent=35 // pred_fallthru
          _
      $region36: #{tpu_custom_call.1} parent=5 // pred_fallthru
        _
      %p214 = scmp.le.s32.totalorder 1, %s15
      %p215 = scmp.lt.s32.totalorder %s15, 3
      %p216 = pnand %p214, %p215
      %p217 = pneg %p216
      // Predicated region
      $region41: #{tpu_custom_call.1} parent=5 // pred_check
        _
      $region42: #{tpu_custom_call.1} parent=5 // pred_check_branch
        %219 = sbr.rel (%p216) target = $region44
      $region43: #{tpu_custom_call.1} parent=5 // pred_region
        %s220 = ssub.s32 %s15, 1
        %p221 = scmp.lt.s32.totalorder %s20, 1
        %s222 = scalar_select %p221, %s20, 1
        %s223 = smul.addr %s222, 8
        %s224 = smul.addr %s223, 4
        %s225 = scalar_lea.vmem %s0, %s224
        %p226 = pneg %p41
        %p227 = pneg %p38
        %p228 = pneg %p62
        %p229 = pneg %p59
        %p230 = pneg %p83
        %p231 = pneg %p80
        %p232 = pneg %p104
        %p233 = pneg %p101
        %p234 = pneg %p125
        %p235 = pneg %p122
        %p236 = pneg %p146
        %p237 = pneg %p143
        %p238 = pneg %p172
        %p239 = pneg %p169
        %s240 = sand.u32 %s159, 1
        %s241 = scalar_lea.sflag [#allocation3], %s240
        %s242 = sand.u32 %s159, 1
        %s243 = smul.addr %s242, 64
        %s244 = scalar_lea.vmem [#allocation2], %s243
        %p245 = scmp.lt.s32.totalorder %s20, 1
        %s246 = scalar_select %p245, %s20, 1
        %s247 = smul.addr %s246, 8
        %s248 = smul.addr %s247, 4
        %s249 = scalar_lea.vmem %s0, %s248
        %v251 = vld [vmem:[%s1] sm:$0xf]
        %v252 = vld [vmem:[%s1 + $0x8] sm:$0xf]
        %v253 = vld [vmem:[%s1 + $0x10] sm:$0xf]
        %v254 = vld [vmem:[%s1 + $0x14] sm:$0xf]
        %v255 = vld [vmem:[%s1 + $0x18] sm:$0xf]
        %v256 = vld [vmem:[%s1 + $0x1c] sm:$0xf]
        %v257 = vld [vmem:[%s2] sm:$0xf]
        %v258 = vld [vmem:[%s2 + $0x4] sm:$0xf]
        %v259 = vld [vmem:[%s2 + $0x8] sm:$0xf]
        %v260 = vld [vmem:[%s2 + $0xc] sm:$0xf]
        %v261 = vld [vmem:[%s2 + $0x10] sm:$0xf]
        %v262 = vld [vmem:[%s2 + $0x14] sm:$0xf]
        %v263 = vld [vmem:[%s2 + $0x18] sm:$0xf]
        %v264 = vld [vmem:[%s2 + $0x1c] sm:$0xf]
        %v265 = vld [vmem:[%s2 + $0x20] sm:$0xf]
        %s266 = scalar_lea.vmem %s2, 36
        %v267 = vld [vmem:[%s266 + $0x10] sm:$0xf]
        %s268 = scalar_lea.vmem %s2, 72
        %v269 = vld [vmem:[%s268 + $0x10] sm:$0xf]
        %s270 = scalar_lea.vmem %s2, 108
        %v271 = vld [vmem:[%s270 + $0x10] sm:$0xf]
        %v272 = vld [vmem:[%s249] sm:$0xff]
        %v273 = vld [vmem:[%s249 + $0x8] sm:$0xff]
        %v274 = vld [vmem:[%s249 + $0x10] sm:$0xff]
        %v275 = vld [vmem:[%s249 + $0x18] sm:$0xff]
        %v280 = vunpack.c.l.b16 %v272
        %v281 = vunpack.c.h.b16 %v272
        %v282 = vunpack.c.l.b16 %v273
        %v283 = vunpack.c.h.b16 %v273
        %v284 = vunpack.c.l.b16 %v274
        %v285 = vunpack.c.h.b16 %v274
        %v286 = vunpack.c.l.b16 %v275
        %v287 = vunpack.c.h.b16 %v275
        %v288 = vpack.c.b16 %v282, %v280
        %v289 = vpack.c.b16 %v283, %v281
        %v290 = vpack.c.b16 %v286, %v284
        %v291 = vpack.c.b16 %v287, %v285
        %vm296 = vcmask 261120
        %v298 = vsel %vm296, %v251, 0
        %300 = vmatprep.subr.bf16.mxu0 %v289
        %301 = vmatpush1.bf16.msra.mxu0 %v288
        %302 = vmatprep.subr.bf16.mxu0 %v291
        %303 = vmatpush1.bf16.msra.mxu0 %v290
        %304 = vmatprep.subr.bf16.mxu0 0
        %305 = vmatpush1.bf16.msra.mxu0 0
        %306 = vmatprep.subr.bf16.mxu0 0
        %307 = vmatpush1.bf16.msra.mxu0 0
        %308 = vmatprep.subr.bf16.mxu0 0
        %309 = vmatpush1.bf16.msra.mxu0 0
        %310 = vmatprep.subr.bf16.mxu0 0
        %311 = vmatpush1.bf16.msra.mxu0 0
        %312 = vmatprep.subr.bf16.mxu0 0
        %313 = vmatpush1.bf16.msra.mxu0 0
        %314 = vmatprep.subr.bf16.mxu0 0
        %315 = vmatpush1.bf16.msra.mxu0 0
        %316 = vmatprep.subr.bf16.mxu0 0
        %317 = vmatpush1.bf16.msra.mxu0 0
        %318 = vmatprep.subr.bf16.mxu0 0
        %319 = vmatpush1.bf16.msra.mxu0 0
        %320 = vmatprep.subr.bf16.mxu0 0
        %321 = vmatpush1.bf16.msra.mxu0 0
        %322 = vmatprep.subr.bf16.mxu0 0
        %323 = vmatpush1.bf16.msra.mxu0 0
        %324 = vmatprep.subr.bf16.mxu0 0
        %325 = vmatpush1.bf16.msra.mxu0 0
        %326 = vmatprep.subr.bf16.mxu0 0
        %327 = vmatpush1.bf16.msra.mxu0 0
        %328 = vmatprep.subr.bf16.mxu0 0
        %329 = vmatpush1.bf16.msra.mxu0 0
        %330 = vmatprep.subr.bf16.mxu0 0
        %331 = vmatpush1.bf16.msra.mxu0 0
        %332 = vmatprep.mubr.bf16.mxu0 0
        %333 = vmatmul.mubr.bf16.gmra.mrb[0].mxu0 %v298
        %v334 = vpop.f32.mrb[0].mxu0
        %v335 = vadd.f32 0.0, %v334
        %v336 = vpop.f32.mrb[0].mxu0
        %v337 = vadd.f32 0.0, %v336
        %v338 = vpop.f32.mrb[0].mxu0
        %v339 = vpop.f32.mrb[0].mxu0
        %340 = vdwg.mxu0
        %v341 = vpack.c.bf16 %v335, %v335
        %v342 = vpack.c.bf16 %v337, %v337
        %vm343 = vcmask 64512
        %v345 = vsel %vm343, %v252, 0
        %vm347 = vcmask 1043456
        %v349 = vsel %vm347, %v341, 0
        %v352 = vsel %vm347, %v342, 0
        %354 = vmatprep.subr.bf16.mxu0 %v352
        %355 = vmatpush1.bf16.msra.mxu0 %v349
        %356 = vmatprep.subr.bf16.mxu0 0
        %357 = vmatpush1.bf16.msra.mxu0 0
        %358 = vmatprep.subr.bf16.mxu0 0
        %359 = vmatpush1.bf16.msra.mxu0 0
        %360 = vmatprep.subr.bf16.mxu0 0
        %361 = vmatpush1.bf16.msra.mxu0 0
        %362 = vmatprep.subr.bf16.mxu0 0
        %363 = vmatpush1.bf16.msra.mxu0 0
        %364 = vmatprep.subr.bf16.mxu0 0
        %365 = vmatpush1.bf16.msra.mxu0 0
        %366 = vmatprep.subr.bf16.mxu0 0
        %367 = vmatpush1.bf16.msra.mxu0 0
        %368 = vmatprep.subr.bf16.mxu0 0
        %369 = vmatpush1.bf16.msra.mxu0 0
        %370 = vmatprep.subr.bf16.mxu0 0
        %371 = vmatpush1.bf16.msra.mxu0 0
        %372 = vmatprep.subr.bf16.mxu0 0
        %373 = vmatpush1.bf16.msra.mxu0 0
        %374 = vmatprep.subr.bf16.mxu0 0
        %375 = vmatpush1.bf16.msra.mxu0 0
        %376 = vmatprep.subr.bf16.mxu0 0
        %377 = vmatpush1.bf16.msra.mxu0 0
        %378 = vmatprep.subr.bf16.mxu0 0
        %379 = vmatpush1.bf16.msra.mxu0 0
        %380 = vmatprep.subr.bf16.mxu0 0
        %381 = vmatpush1.bf16.msra.mxu0 0
        %382 = vmatprep.subr.bf16.mxu0 0
        %383 = vmatpush1.bf16.msra.mxu0 0
        %384 = vmatprep.subr.bf16.mxu0 0
        %385 = vmatpush1.bf16.msra.mxu0 0
        %386 = vmatprep.mubr.bf16.mxu0 0
        %387 = vmatmul.mubr.bf16.gmra.mrb[0].mxu0 %v345
        %v388 = vpop.f32.mrb[0].mxu0
        %v389 = vadd.f32 0.0, %v388
        %v390 = vpop.f32.mrb[0].mxu0
        %v391 = vadd.f32 0.0, %v390
        %v392 = vpop.f32.mrb[0].mxu0
        %v393 = vpop.f32.mrb[0].mxu0
        %394 = vdwg.mxu0
        %v404 = vunpack.c.l.b16 %v257
        %v405 = vunpack.c.l.b16 %v258
        %v406 = vunpack.c.l.b16 %v259
        %v407 = vunpack.c.l.b16 %v260
        %v408 = vunpack.c.l.b16 %v261
        %v409 = vunpack.c.l.b16 %v262
        %v410 = vunpack.c.l.b16 %v263
        %v411 = vunpack.c.l.b16 %v264
        %v412 = vunpack.c.l.b16 %v265
        %v413 = vpack.c.b16 %v405, %v404
        %v414 = vpack.c.b16 %v407, %v406
        %v415 = vpack.c.b16 %v409, %v408
        %v416 = vpack.c.b16 %v411, %v410
        %v417 = vpack.c.b16 %v412, %v412
        %v419 = vsel %vm343, %v413, 0
        %v422 = vsel %vm343, %v414, 0
        %v425 = vsel %vm343, %v415, 0
        %v428 = vsel %vm343, %v416, 0
        %v431 = vsel %vm343, %v417, 0
        %433 = vmatprep.subr.bf16.mxu0 %v352
        %434 = vmatpush1.bf16.msra.mxu0 %v349
        %435 = vmatprep.subr.bf16.mxu0 0
        %436 = vmatpush1.bf16.msra.mxu0 0
        %437 = vmatprep.subr.bf16.mxu0 0
        %438 = vmatpush1.bf16.msra.mxu0 0
        %439 = vmatprep.subr.bf16.mxu0 0
        %440 = vmatpush1.bf16.msra.mxu0 0
        %441 = vmatprep.subr.bf16.mxu0 0
        %442 = vmatpush1.bf16.msra.mxu0 0
        %443 = vmatprep.subr.bf16.mxu0 0
        %444 = vmatpush1.bf16.msra.mxu0 0
        %445 = vmatprep.subr.bf16.mxu0 0
        %446 = vmatpush1.bf16.msra.mxu0 0
        %447 = vmatprep.subr.bf16.mxu0 0
        %448 = vmatpush1.bf16.msra.mxu0 0
        %449 = vmatprep.subr.bf16.mxu0 0
        %450 = vmatpush1.bf16.msra.mxu0 0
        %451 = vmatprep.subr.bf16.mxu0 0
        %452 = vmatpush1.bf16.msra.mxu0 0
        %453 = vmatprep.subr.bf16.mxu0 0
        %454 = vmatpush1.bf16.msra.mxu0 0
        %455 = vmatprep.subr.bf16.mxu0 0
        %456 = vmatpush1.bf16.msra.mxu0 0
        %457 = vmatprep.subr.bf16.mxu0 0
        %458 = vmatpush1.bf16.msra.mxu0 0
        %459 = vmatprep.subr.bf16.mxu0 0
        %460 = vmatpush1.bf16.msra.mxu0 0
        %461 = vmatprep.subr.bf16.mxu0 0
        %462 = vmatpush1.bf16.msra.mxu0 0
        %463 = vmatprep.subr.bf16.mxu0 0
        %464 = vmatpush1.bf16.msra.mxu0 0
        %465 = vmatprep.mubr.bf16.mxu0 0
        %466 = vmatmul.mubr.bf16.gmra.mrb[0].mxu0 %v419
        %v467 = vpop.f32.mrb[0].mxu0
        %v468 = vadd.f32 0.0, %v467
        %v469 = vpop.f32.mrb[0].mxu0
        %v470 = vadd.f32 0.0, %v469
        %v471 = vpop.f32.mrb[0].mxu0
        %v472 = vadd.f32 0.0, %v471
        %v473 = vpop.f32.mrb[0].mxu0
        %v474 = vadd.f32 0.0, %v473
        %475 = vmatprep.mubr.bf16.mxu0 0
        %476 = vmatmul.mubr.bf16.gmra.mrb[0].mxu0 %v422
        %v477 = vpop.f32.mrb[0].mxu0
        %v478 = vadd.f32 0.0, %v477
        %v479 = vpop.f32.mrb[0].mxu0
        %v480 = vadd.f32 0.0, %v479
        %v481 = vpop.f32.mrb[0].mxu0
        %v482 = vadd.f32 0.0, %v481
        %v483 = vpop.f32.mrb[0].mxu0
        %v484 = vadd.f32 0.0, %v483
        %485 = vmatprep.mubr.bf16.mxu0 0
        %486 = vmatmul.mubr.bf16.gmra.mrb[0].mxu0 %v425
        %v487 = vpop.f32.mrb[0].mxu0
        %v488 = vadd.f32 0.0, %v487
        %v489 = vpop.f32.mrb[0].mxu0
        %v490 = vadd.f32 0.0, %v489
        %v491 = vpop.f32.mrb[0].mxu0
        %v492 = vadd.f32 0.0, %v491
        %v493 = vpop.f32.mrb[0].mxu0
        %v494 = vadd.f32 0.0, %v493
        %495 = vmatprep.mubr.bf16.mxu0 0
        %496 = vmatmul.mubr.bf16.gmra.mrb[0].mxu0 %v428
        %v497 = vpop.f32.mrb[0].mxu0
        %v498 = vadd.f32 0.0, %v497
        %v499 = vpop.f32.mrb[0].mxu0
        %v500 = vadd.f32 0.0, %v499
        %v501 = vpop.f32.mrb[0].mxu0
        %v502 = vadd.f32 0.0, %v501
        %v503 = vpop.f32.mrb[0].mxu0
        %v504 = vadd.f32 0.0, %v503
        %505 = vmatprep.mubr.bf16.mxu0 0
        %506 = vmatmul.mubr.bf16.gmra.mrb[0].mxu0 %v431
        %v507 = vpop.f32.mrb[0].mxu0
        %v508 = vadd.f32 0.0, %v507
        %v509 = vpop.f32.mrb[0].mxu0
        %v510 = vadd.f32 0.0, %v509
        %v511 = vpop.f32.mrb[0].mxu0
        %v512 = vpop.f32.mrb[0].mxu0
        %513 = vdwg.mxu0
        %v514 = vpack.c.bf16 %v468, %v468
        %v515 = vpack.c.bf16 %v470, %v470
        %v516 = vld [vmem:[%s3] sm:$0xf]
        %v517 = vld [vmem:[%s3 + $0x4] sm:$0xf]
        %v518 = vld [vmem:[%s3 + $0x8] sm:$0xf]
        %v519 = vld [vmem:[%s3 + $0xc] sm:$0xf]
        %v520 = vld [vmem:[%s3 + $0x10] sm:$0xf]
        %v521 = vld [vmem:[%s3 + $0x14] sm:$0xf]
        %v522 = vld [vmem:[%s3 + $0x18] sm:$0xf]
        %v523 = vld [vmem:[%s3 + $0x1c] sm:$0xf]
        %v524 = vld [vmem:[%s3 + $0x20] sm:$0xf]
        %v525 = vld [vmem:[%s3 + $0x24] sm:$0xf]
        %v526 = vld [vmem:[%s3 + $0x28] sm:$0xf]
        %v527 = vld [vmem:[%s3 + $0x2c] sm:$0xf]
        %v528 = vld [vmem:[%s3 + $0x30] sm:$0xf]
        %v529 = vld [vmem:[%s3 + $0x34] sm:$0xf]
        %v530 = vld [vmem:[%s3 + $0x38] sm:$0xf]
        %v531 = vld [vmem:[%s3 + $0x3c] sm:$0xf]
        %v532 = vld [vmem:[%s3 + $0x40] sm:$0xf]
        %v533 = vld [vmem:[%s3 + $0x44] sm:$0xf]
        %v534 = vld [vmem:[%s3 + $0x48] sm:$0xf]
        %v535 = vld [vmem:[%s3 + $0x4c] sm:$0xf]
        %v536 = vld [vmem:[%s3 + $0x50] sm:$0xf]
        %v537 = vld [vmem:[%s3 + $0x54] sm:$0xf]
        %v538 = vld [vmem:[%s3 + $0x58] sm:$0xf]
        %v539 = vld [vmem:[%s3 + $0x5c] sm:$0xf]
        %v540 = vld [vmem:[%s3 + $0x60] sm:$0xf]
        %v541 = vld [vmem:[%s3 + $0x64] sm:$0xf]
        %v542 = vld [vmem:[%s3 + $0x68] sm:$0xf]
        %v543 = vld [vmem:[%s3 + $0x6c] sm:$0xf]
        %v544 = vld [vmem:[%s3 + $0x70] sm:$0xf]
        %v545 = vld [vmem:[%s3 + $0x74] sm:$0xf]
        %v546 = vld [vmem:[%s3 + $0x78] sm:$0xf]
        %v547 = vld [vmem:[%s3 + $0x7c] sm:$0xf]
        %v548 = vpack.c.bf16 %v472, %v472
        %v549 = vpack.c.bf16 %v474, %v474
        %v550 = vld [vmem:[%s3 + $0x80] sm:$0xf]
        %v551 = vld [vmem:[%s3 + $0x84] sm:$0xf]
        %v552 = vld [vmem:[%s3 + $0x88] sm:$0xf]
        %v553 = vld [vmem:[%s3 + $0x8c] sm:$0xf]
        %v554 = vld [vmem:[%s3 + $0x90] sm:$0xf]
        %v555 = vld [vmem:[%s3 + $0x94] sm:$0xf]
        %v556 = vld [vmem:[%s3 + $0x98] sm:$0xf]
        %v557 = vld [vmem:[%s3 + $0x9c] sm:$0xf]
        %v558 = vld [vmem:[%s3 + $0xa0] sm:$0xf]
        %v559 = vld [vmem:[%s3 + $0xa4] sm:$0xf]
        %v560 = vld [vmem:[%s3 + $0xa8] sm:$0xf]
        %v561 = vld [vmem:[%s3 + $0xac] sm:$0xf]
        %v562 = vld [vmem:[%s3 + $0xb0] sm:$0xf]
        %v563 = vld [vmem:[%s3 + $0xb4] sm:$0xf]
        %v564 = vld [vmem:[%s3 + $0xb8] sm:$0xf]
        %v565 = vld [vmem:[%s3 + $0xbc] sm:$0xf]
        %v566 = vld [vmem:[%s3 + $0xc0] sm:$0xf]
        %v567 = vld [vmem:[%s3 + $0xc4] sm:$0xf]
        %v568 = vld [vmem:[%s3 + $0xc8] sm:$0xf]
        %v569 = vld [vmem:[%s3 + $0xcc] sm:$0xf]
        %v570 = vld [vmem:[%s3 + $0xd0] sm:$0xf]
        %v571 = vld [vmem:[%s3 + $0xd4] sm:$0xf]
        %v572 = vld [vmem:[%s3 + $0xd8] sm:$0xf]
        %v573 = vld [vmem:[%s3 + $0xdc] sm:$0xf]
        %v574 = vld [vmem:[%s3 + $0xe0] sm:$0xf]
        %v575 = vld [vmem:[%s3 + $0xe4] sm:$0xf]
        %v576 = vld [vmem:[%s3 + $0xe8] sm:$0xf]
        %v577 = vld [vmem:[%s3 + $0xec] sm:$0xf]
        %v578 = vld [vmem:[%s3 + $0xf0] sm:$0xf]
        %v579 = vld [vmem:[%s3 + $0xf4] sm:$0xf]
        %v580 = vld [vmem:[%s3 + $0xf8] sm:$0xf]
        %v581 = vld [vmem:[%s3 + $0xfc] sm:$0xf]
        %v614 = vunpack.c.l.b16 %v550
        %v615 = vunpack.c.l.b16 %v551
        %v616 = vunpack.c.l.b16 %v552
        %v617 = vunpack.c.l.b16 %v553
        %v618 = vunpack.c.l.b16 %v554
        %v619 = vunpack.c.l.b16 %v555
        %v620 = vunpack.c.l.b16 %v556
        %v621 = vunpack.c.l.b16 %v557
        %v622 = vunpack.c.l.b16 %v558
        %v623 = vunpack.c.l.b16 %v559
        %v624 = vunpack.c.l.b16 %v560
        %v625 = vunpack.c.l.b16 %v561
        %v626 = vunpack.c.l.b16 %v562
        %v627 = vunpack.c.l.b16 %v563
        %v628 = vunpack.c.l.b16 %v564
        %v629 = vunpack.c.l.b16 %v565
        %v630 = vunpack.c.l.b16 %v566
        %v631 = vunpack.c.l.b16 %v567
        %v632 = vunpack.c.l.b16 %v568
        %v633 = vunpack.c.l.b16 %v569
        %v634 = vunpack.c.l.b16 %v570
        %v635 = vunpack.c.l.b16 %v571
        %v636 = vunpack.c.l.b16 %v572
        %v637 = vunpack.c.l.b16 %v573
        %v638 = vunpack.c.l.b16 %v574
        %v639 = vunpack.c.l.b16 %v575
        %v640 = vunpack.c.l.b16 %v576
        %v641 = vunpack.c.l.b16 %v577
        %v642 = vunpack.c.l.b16 %v578
        %v643 = vunpack.c.l.b16 %v579
        %v644 = vunpack.c.l.b16 %v580
        %v645 = vunpack.c.l.b16 %v581
        %v646 = vpack.c.b16 %v615, %v614
        %v647 = vpack.c.b16 %v617, %v616
        %v648 = vpack.c.b16 %v619, %v618
        %v649 = vpack.c.b16 %v621, %v620
        %v650 = vpack.c.b16 %v623, %v622
        %v651 = vpack.c.b16 %v625, %v624
        %v652 = vpack.c.b16 %v627, %v626
        %v653 = vpack.c.b16 %v629, %v628
        %v654 = vpack.c.b16 %v631, %v630
        %v655 = vpack.c.b16 %v633, %v632
        %v656 = vpack.c.b16 %v635, %v634
        %v657 = vpack.c.b16 %v637, %v636
        %v658 = vpack.c.b16 %v639, %v638
        %v659 = vpack.c.b16 %v641, %v640
        %v660 = vpack.c.b16 %v643, %v642
        %v661 = vpack.c.b16 %v645, %v644
        %678 = vmatprep.subr.bf16.mxu0 0
        %679 = vmatpush1.bf16.msra.mxu0 %v646
        %680 = vmatprep.subr.bf16.mxu0 0
        %681 = vmatpush1.bf16.msra.mxu0 %v647
        %682 = vmatprep.subr.bf16.mxu0 0
        %683 = vmatpush1.bf16.msra.mxu0 %v648
        %684 = vmatprep.subr.bf16.mxu0 0
        %685 = vmatpush1.bf16.msra.mxu0 %v649
        %686 = vmatprep.subr.bf16.mxu0 0
        %687 = vmatpush1.bf16.msra.mxu0 %v650
        %688 = vmatprep.subr.bf16.mxu0 0
        %689 = vmatpush1.bf16.msra.mxu0 %v651
        %690 = vmatprep.subr.bf16.mxu0 0
        %691 = vmatpush1.bf16.msra.mxu0 %v652
        %692 = vmatprep.subr.bf16.mxu0 0
        %693 = vmatpush1.bf16.msra.mxu0 %v653
        %694 = vmatprep.subr.bf16.mxu0 0
        %695 = vmatpush1.bf16.msra.mxu0 %v654
        %696 = vmatprep.subr.bf16.mxu0 0
        %697 = vmatpush1.bf16.msra.mxu0 %v655
        %698 = vmatprep.subr.bf16.mxu0 0
        %699 = vmatpush1.bf16.msra.mxu0 %v656
        %700 = vmatprep.subr.bf16.mxu0 0
        %701 = vmatpush1.bf16.msra.mxu0 %v657
        %702 = vmatprep.subr.bf16.mxu0 0
        %703 = vmatpush1.bf16.msra.mxu0 %v658
        %704 = vmatprep.subr.bf16.mxu0 0
        %705 = vmatpush1.bf16.msra.mxu0 %v659
        %706 = vmatprep.subr.bf16.mxu0 0
        %707 = vmatpush1.bf16.msra.mxu0 %v660
        %708 = vmatprep.subr.bf16.mxu0 0
        %709 = vmatpush1.bf16.msra.mxu0 %v661
        %710 = vmatprep.mubr.bf16.mxu0 %v549
        %711 = vmatmul.mubr.bf16.gmra.mrb[0].mxu0 %v548
        %v712 = vpop.f32.mrb[0].mxu0
        %v713 = vadd.f32 0.0, %v712
        %v714 = vpop.f32.mrb[0].mxu0
        %v715 = vpop.f32.mrb[0].mxu0
        %v716 = vpop.f32.mrb[0].mxu0
        %717 = vdwg.mxu0
        %v750 = vunpack.c.l.b16 %v516
        %v751 = vunpack.c.l.b16 %v517
        %v752 = vunpack.c.l.b16 %v518
        %v753 = vunpack.c.l.b16 %v519
        %v754 = vunpack.c.l.b16 %v520
        %v755 = vunpack.c.l.b16 %v521
        %v756 = vunpack.c.l.b16 %v522
        %v757 = vunpack.c.l.b16 %v523
        %v758 = vunpack.c.l.b16 %v524
        %v759 = vunpack.c.l.b16 %v525
        %v760 = vunpack.c.l.b16 %v526
        %v761 = vunpack.c.l.b16 %v527
        %v762 = vunpack.c.l.b16 %v528
        %v763 = vunpack.c.l.b16 %v529
        %v764 = vunpack.c.l.b16 %v530
        %v765 = vunpack.c.l.b16 %v531
        %v766 = vunpack.c.l.b16 %v532
        %v767 = vunpack.c.l.b16 %v533
        %v768 = vunpack.c.l.b16 %v534
        %v769 = vunpack.c.l.b16 %v535
        %v770 = vunpack.c.l.b16 %v536
        %v771 = vunpack.c.l.b16 %v537
        %v772 = vunpack.c.l.b16 %v538
        %v773 = vunpack.c.l.b16 %v539
        %v774 = vunpack.c.l.b16 %v540
        %v775 = vunpack.c.l.b16 %v541
        %v776 = vunpack.c.l.b16 %v542
        %v777 = vunpack.c.l.b16 %v543
        %v778 = vunpack.c.l.b16 %v544
        %v779 = vunpack.c.l.b16 %v545
        %v780 = vunpack.c.l.b16 %v546
        %v781 = vunpack.c.l.b16 %v547
        %v782 = vpack.c.b16 %v751, %v750
        %v783 = vpack.c.b16 %v753, %v752
        %v784 = vpack.c.b16 %v755, %v754
        %v785 = vpack.c.b16 %v757, %v756
        %v786 = vpack.c.b16 %v759, %v758
        %v787 = vpack.c.b16 %v761, %v760
        %v788 = vpack.c.b16 %v763, %v762
        %v789 = vpack.c.b16 %v765, %v764
        %v790 = vpack.c.b16 %v767, %v766
        %v791 = vpack.c.b16 %v769, %v768
        %v792 = vpack.c.b16 %v771, %v770
        %v793 = vpack.c.b16 %v773, %v772
        %v794 = vpack.c.b16 %v775, %v774
        %v795 = vpack.c.b16 %v777, %v776
        %v796 = vpack.c.b16 %v779, %v778
        %v797 = vpack.c.b16 %v781, %v780
        %814 = vmatprep.subr.bf16.mxu0 0
        %815 = vmatpush1.bf16.msra.mxu0 %v782
        %816 = vmatprep.subr.bf16.mxu0 0
        %817 = vmatpush1.bf16.msra.mxu0 %v783
        %818 = vmatprep.subr.bf16.mxu0 0
        %819 = vmatpush1.bf16.msra.mxu0 %v784
        %820 = vmatprep.subr.bf16.mxu0 0
        %821 = vmatpush1.bf16.msra.mxu0 %v785
        %822 = vmatprep.subr.bf16.mxu0 0
        %823 = vmatpush1.bf16.msra.mxu0 %v786
        %824 = vmatprep.subr.bf16.mxu0 0
        %825 = vmatpush1.bf16.msra.mxu0 %v787
        %826 = vmatprep.subr.bf16.mxu0 0
        %827 = vmatpush1.bf16.msra.mxu0 %v788
        %828 = vmatprep.subr.bf16.mxu0 0
        %829 = vmatpush1.bf16.msra.mxu0 %v789
        %830 = vmatprep.subr.bf16.mxu0 0
        %831 = vmatpush1.bf16.msra.mxu0 %v790
        %832 = vmatprep.subr.bf16.mxu0 0
        %833 = vmatpush1.bf16.msra.mxu0 %v791
        %834 = vmatprep.subr.bf16.mxu0 0
        %835 = vmatpush1.bf16.msra.mxu0 %v792
        %836 = vmatprep.subr.bf16.mxu0 0
        %837 = vmatpush1.bf16.msra.mxu0 %v793
        %838 = vmatprep.subr.bf16.mxu0 0
        %839 = vmatpush1.bf16.msra.mxu0 %v794
        %840 = vmatprep.subr.bf16.mxu0 0
        %841 = vmatpush1.bf16.msra.mxu0 %v795
        %842 = vmatprep.subr.bf16.mxu0 0
        %843 = vmatpush1.bf16.msra.mxu0 %v796
        %844 = vmatprep.subr.bf16.mxu0 0
        %845 = vmatpush1.bf16.msra.mxu0 %v797
        %846 = vmatprep.mubr.bf16.mxu0 %v515
        %847 = vmatmul.mubr.bf16.gmra.mrb[0].mxu0 %v514
        %v848 = vpop.f32.mrb[0].mxu0
        %v849 = vadd.f32 %v713, %v848
        %v850 = vpop.f32.mrb[0].mxu0
        %v851 = vpop.f32.mrb[0].mxu0
        %v852 = vpop.f32.mrb[0].mxu0
        %853 = vdwg.mxu0
        %v854 = vpack.c.bf16 %v478, %v478
        %v855 = vpack.c.bf16 %v480, %v480
        %v856 = vld [vmem:[%s3 + $0x100] sm:$0xf]
        %v857 = vld [vmem:[%s3 + $0x104] sm:$0xf]
        %v858 = vld [vmem:[%s3 + $0x108] sm:$0xf]
        %v859 = vld [vmem:[%s3 + $0x10c] sm:$0xf]
        %v860 = vld [vmem:[%s3 + $0x110] sm:$0xf]
        %v861 = vld [vmem:[%s3 + $0x114] sm:$0xf]
        %v862 = vld [vmem:[%s3 + $0x118] sm:$0xf]
        %v863 = vld [vmem:[%s3 + $0x11c] sm:$0xf]
        %v864 = vld [vmem:[%s3 + $0x120] sm:$0xf]
        %v865 = vld [vmem:[%s3 + $0x124] sm:$0xf]
        %v866 = vld [vmem:[%s3 + $0x128] sm:$0xf]
        %v867 = vld [vmem:[%s3 + $0x12c] sm:$0xf]
        %v868 = vld [vmem:[%s3 + $0x130] sm:$0xf]
        %v869 = vld [vmem:[%s3 + $0x134] sm:$0xf]
        %v870 = vld [vmem:[%s3 + $0x138] sm:$0xf]
        %v871 = vld [vmem:[%s3 + $0x13c] sm:$0xf]
        %v872 = vld [vmem:[%s3 + $0x140] sm:$0xf]
        %v873 = vld [vmem:[%s3 + $0x144] sm:$0xf]
        %v874 = vld [vmem:[%s3 + $0x148] sm:$0xf]
        %v875 = vld [vmem:[%s3 + $0x14c] sm:$0xf]
        %v876 = vld [vmem:[%s3 + $0x150] sm:$0xf]
        %v877 = vld [vmem:[%s3 + $0x154] sm:$0xf]
        %v878 = vld [vmem:[%s3 + $0x158] sm:$0xf]
        %v879 = vld [vmem:[%s3 + $0x15c] sm:$0xf]
        %v880 = vld [vmem:[%s3 + $0x160] sm:$0xf]
        %v881 = vld [vmem:[%s3 + $0x164] sm:$0xf]
        %v882 = vld [vmem:[%s3 + $0x168] sm:$0xf]
        %v883 = vld [vmem:[%s3 + $0x16c] sm:$0xf]
        %v884 = vld [vmem:[%s3 + $0x170] sm:$0xf]
        %v885 = vld [vmem:[%s3 + $0x174] sm:$0xf]
        %v886 = vld [vmem:[%s3 + $0x178] sm:$0xf]
        %v887 = vld [vmem:[%s3 + $0x17c] sm:$0xf]
        %v920 = vunpack.c.l.b16 %v856
        %v921 = vunpack.c.l.b16 %v857
        %v922 = vunpack.c.l.b16 %v858
        %v923 = vunpack.c.l.b16 %v859
        %v924 = vunpack.c.l.b16 %v860
        %v925 = vunpack.c.l.b16 %v861
        %v926 = vunpack.c.l.b16 %v862
        %v927 = vunpack.c.l.b16 %v863
        %v928 = vunpack.c.l.b16 %v864
        %v929 = vunpack.c.l.b16 %v865
        %v930 = vunpack.c.l.b16 %v866
        %v931 = vunpack.c.l.b16 %v867
        %v932 = vunpack.c.l.b16 %v868
        %v933 = vunpack.c.l.b16 %v869
        %v934 = vunpack.c.l.b16 %v870
        %v935 = vunpack.c.l.b16 %v871
        %v936 = vunpack.c.l.b16 %v872
        %v937 = vunpack.c.l.b16 %v873
        %v938 = vunpack.c.l.b16 %v874
        %v939 = vunpack.c.l.b16 %v875
        %v940 = vunpack.c.l.b16 %v876
        %v941 = vunpack.c.l.b16 %v877
        %v942 = vunpack.c.l.b16 %v878
        %v943 = vunpack.c.l.b16 %v879
        %v944 = vunpack.c.l.b16 %v880
        %v945 = vunpack.c.l.b16 %v881
        %v946 = vunpack.c.l.b16 %v882
        %v947 = vunpack.c.l.b16 %v883
        %v948 = vunpack.c.l.b16 %v884
        %v949 = vunpack.c.l.b16 %v885
        %v950 = vunpack.c.l.b16 %v886
        %v951 = vunpack.c.l.b16 %v887
        %v952 = vpack.c.b16 %v921, %v920
        %v953 = vpack.c.b16 %v923, %v922
        %v954 = vpack.c.b16 %v925, %v924
        %v955 = vpack.c.b16 %v927, %v926
        %v956 = vpack.c.b16 %v929, %v928
        %v957 = vpack.c.b16 %v931, %v930
        %v958 = vpack.c.b16 %v933, %v932
        %v959 = vpack.c.b16 %v935, %v934
        %v960 = vpack.c.b16 %v937, %v936
        %v961 = vpack.c.b16 %v939, %v938
        %v962 = vpack.c.b16 %v941, %v940
        %v963 = vpack.c.b16 %v943, %v942
        %v964 = vpack.c.b16 %v945, %v944
        %v965 = vpack.c.b16 %v947, %v946
        %v966 = vpack.c.b16 %v949, %v948
        %v967 = vpack.c.b16 %v951, %v950
        %984 = vmatprep.subr.bf16.mxu0 0
        %985 = vmatpush1.bf16.msra.mxu0 %v952
        %986 = vmatprep.subr.bf16.mxu0 0
        %987 = vmatpush1.bf16.msra.mxu0 %v953
        %988 = vmatprep.subr.bf16.mxu0 0
        %989 = vmatpush1.bf16.msra.mxu0 %v954
        %990 = vmatprep.subr.bf16.mxu0 0
        %991 = vmatpush1.bf16.msra.mxu0 %v955
        %992 = vmatprep.subr.bf16.mxu0 0
        %993 = vmatpush1.bf16.msra.mxu0 %v956
        %994 = vmatprep.subr.bf16.mxu0 0
        %995 = vmatpush1.bf16.msra.mxu0 %v957
        %996 = vmatprep.subr.bf16.mxu0 0
        %997 = vmatpush1.bf16.msra.mxu0 %v958
        %998 = vmatprep.subr.bf16.mxu0 0
        %999 = vmatpush1.bf16.msra.mxu0 %v959
        %1000 = vmatprep.subr.bf16.mxu0 0
        %1001 = vmatpush1.bf16.msra.mxu0 %v960
        %1002 = vmatprep.subr.bf16.mxu0 0
        %1003 = vmatpush1.bf16.msra.mxu0 %v961
        %1004 = vmatprep.subr.bf16.mxu0 0
        %1005 = vmatpush1.bf16.msra.mxu0 %v962
        %1006 = vmatprep.subr.bf16.mxu0 0
        %1007 = vmatpush1.bf16.msra.mxu0 %v963
        %1008 = vmatprep.subr.bf16.mxu0 0
        %1009 = vmatpush1.bf16.msra.mxu0 %v964
        %1010 = vmatprep.subr.bf16.mxu0 0
        %1011 = vmatpush1.bf16.msra.mxu0 %v965
        %1012 = vmatprep.subr.bf16.mxu0 0
        %1013 = vmatpush1.bf16.msra.mxu0 %v966
        %1014 = vmatprep.subr.bf16.mxu0 0
        %1015 = vmatpush1.bf16.msra.mxu0 %v967
        %1016 = vmatprep.mubr.bf16.mxu0 %v855
        %1017 = vmatmul.mubr.bf16.gmra.mrb[0].mxu0 %v854
        %v1018 = vpop.f32.mrb[0].mxu0
        %v1019 = vadd.f32 0.0, %v1018
        %v1020 = vpop.f32.mrb[0].mxu0
        %v1021 = vpop.f32.mrb[0].mxu0
        %v1022 = vpop.f32.mrb[0].mxu0
        %1023 = vdwg.mxu0
        %v1024 = vadd.f32 %v849, %v1019
        %v1025 = vpack.c.bf16 %v482, %v482
        %v1026 = vpack.c.bf16 %v484, %v484
        %v1027 = vld [vmem:[%s3 + $0x180] sm:$0xf]
        %v1028 = vld [vmem:[%s3 + $0x184] sm:$0xf]
        %v1029 = vld [vmem:[%s3 + $0x188] sm:$0xf]
        %v1030 = vld [vmem:[%s3 + $0x18c] sm:$0xf]
        %v1031 = vld [vmem:[%s3 + $0x190] sm:$0xf]
        %v1032 = vld [vmem:[%s3 + $0x194] sm:$0xf]
        %v1033 = vld [vmem:[%s3 + $0x198] sm:$0xf]
        %v1034 = vld [vmem:[%s3 + $0x19c] sm:$0xf]
        %v1035 = vld [vmem:[%s3 + $0x1a0] sm:$0xf]
        %v1036 = vld [vmem:[%s3 + $0x1a4] sm:$0xf]
        %v1037 = vld [vmem:[%s3 + $0x1a8] sm:$0xf]
        %v1038 = vld [vmem:[%s3 + $0x1ac] sm:$0xf]
        %v1039 = vld [vmem:[%s3 + $0x1b0] sm:$0xf]
        %v1040 = vld [vmem:[%s3 + $0x1b4] sm:$0xf]
        %v1041 = vld [vmem:[%s3 + $0x1b8] sm:$0xf]
        %v1042 = vld [vmem:[%s3 + $0x1bc] sm:$0xf]
        %v1043 = vld [vmem:[%s3 + $0x1c0] sm:$0xf]
        %v1044 = vld [vmem:[%s3 + $0x1c4] sm:$0xf]
        %v1045 = vld [vmem:[%s3 + $0x1c8] sm:$0xf]
        %v1046 = vld [vmem:[%s3 + $0x1cc] sm:$0xf]
        %v1047 = vld [vmem:[%s3 + $0x1d0] sm:$0xf]
        %v1048 = vld [vmem:[%s3 + $0x1d4] sm:$0xf]
        %v1049 = vld [vmem:[%s3 + $0x1d8] sm:$0xf]
        %v1050 = vld [vmem:[%s3 + $0x1dc] sm:$0xf]
        %v1051 = vld [vmem:[%s3 + $0x1e0] sm:$0xf]
        %v1052 = vld [vmem:[%s3 + $0x1e4] sm:$0xf]
        %v1053 = vld [vmem:[%s3 + $0x1e8] sm:$0xf]
        %v1054 = vld [vmem:[%s3 + $0x1ec] sm:$0xf]
        %v1055 = vld [vmem:[%s3 + $0x1f0] sm:$0xf]
        %v1056 = vld [vmem:[%s3 + $0x1f4] sm:$0xf]
        %v1057 = vld [vmem:[%s3 + $0x1f8] sm:$0xf]
        %v1058 = vld [vmem:[%s3 + $0x1fc] sm:$0xf]
        %v1091 = vunpack.c.l.b16 %v1027
        %v1092 = vunpack.c.l.b16 %v1028
        %v1093 = vunpack.c.l.b16 %v1029
        %v1094 = vunpack.c.l.b16 %v1030
        %v1095 = vunpack.c.l.b16 %v1031
        %v1096 = vunpack.c.l.b16 %v1032
        %v1097 = vunpack.c.l.b16 %v1033
        %v1098 = vunpack.c.l.b16 %v1034
        %v1099 = vunpack.c.l.b16 %v1035
        %v1100 = vunpack.c.l.b16 %v1036
        %v1101 = vunpack.c.l.b16 %v1037
        %v1102 = vunpack.c.l.b16 %v1038
        %v1103 = vunpack.c.l.b16 %v1039
        %v1104 = vunpack.c.l.b16 %v1040
        %v1105 = vunpack.c.l.b16 %v1041
        %v1106 = vunpack.c.l.b16 %v1042
        %v1107 = vunpack.c.l.b16 %v1043
        %v1108 = vunpack.c.l.b16 %v1044
        %v1109 = vunpack.c.l.b16 %v1045
        %v1110 = vunpack.c.l.b16 %v1046
        %v1111 = vunpack.c.l.b16 %v1047
        %v1112 = vunpack.c.l.b16 %v1048
        %v1113 = vunpack.c.l.b16 %v1049
        %v1114 = vunpack.c.l.b16 %v1050
        %v1115 = vunpack.c.l.b16 %v1051
        %v1116 = vunpack.c.l.b16 %v1052
        %v1117 = vunpack.c.l.b16 %v1053
        %v1118 = vunpack.c.l.b16 %v1054
        %v1119 = vunpack.c.l.b16 %v1055
        %v1120 = vunpack.c.l.b16 %v1056
        %v1121 = vunpack.c.l.b16 %v1057
        %v1122 = vunpack.c.l.b16 %v1058
        %v1123 = vpack.c.b16 %v1092, %v1091
        %v1124 = vpack.c.b16 %v1094, %v1093
        %v1125 = vpack.c.b16 %v1096, %v1095
        %v1126 = vpack.c.b16 %v1098, %v1097
        %v1127 = vpack.c.b16 %v1100, %v1099
        %v1128 = vpack.c.b16 %v1102, %v1101
        %v1129 = vpack.c.b16 %v1104, %v1103
        %v1130 = vpack.c.b16 %v1106, %v1105
        %v1131 = vpack.c.b16 %v1108, %v1107
        %v1132 = vpack.c.b16 %v1110, %v1109
        %v1133 = vpack.c.b16 %v1112, %v1111
        %v1134 = vpack.c.b16 %v1114, %v1113
        %v1135 = vpack.c.b16 %v1116, %v1115
        %v1136 = vpack.c.b16 %v1118, %v1117
        %v1137 = vpack.c.b16 %v1120, %v1119
        %v1138 = vpack.c.b16 %v1122, %v1121
        %1155 = vmatprep.subr.bf16.mxu0 0
        %1156 = vmatpush1.bf16.msra.mxu0 %v1123
        %1157 = vmatprep.subr.bf16.mxu0 0
        %1158 = vmatpush1.bf16.msra.mxu0 %v1124
        %1159 = vmatprep.subr.bf16.mxu0 0
        %1160 = vmatpush1.bf16.msra.mxu0 %v1125
        %1161 = vmatprep.subr.bf16.mxu0 0
        %1162 = vmatpush1.bf16.msra.mxu0 %v1126
        %1163 = vmatprep.subr.bf16.mxu0 0
        %1164 = vmatpush1.bf16.msra.mxu0 %v1127
        %1165 = vmatprep.subr.bf16.mxu0 0
        %1166 = vmatpush1.bf16.msra.mxu0 %v1128
        %1167 = vmatprep.subr.bf16.mxu0 0
        %1168 = vmatpush1.bf16.msra.mxu0 %v1129
        %1169 = vmatprep.subr.bf16.mxu0 0
        %1170 = vmatpush1.bf16.msra.mxu0 %v1130
        %1171 = vmatprep.subr.bf16.mxu0 0
        %1172 = vmatpush1.bf16.msra.mxu0 %v1131
        %1173 = vmatprep.subr.bf16.mxu0 0
        %1174 = vmatpush1.bf16.msra.mxu0 %v1132
        %1175 = vmatprep.subr.bf16.mxu0 0
        %1176 = vmatpush1.bf16.msra.mxu0 %v1133
        %1177 = vmatprep.subr.bf16.mxu0 0
        %1178 = vmatpush1.bf16.msra.mxu0 %v1134
        %1179 = vmatprep.subr.bf16.mxu0 0
        %1180 = vmatpush1.bf16.msra.mxu0 %v1135
        %1181 = vmatprep.subr.bf16.mxu0 0
        %1182 = vmatpush1.bf16.msra.mxu0 %v1136
        %1183 = vmatprep.subr.bf16.mxu0 0
        %1184 = vmatpush1.bf16.msra.mxu0 %v1137
        %1185 = vmatprep.subr.bf16.mxu0 0
        %1186 = vmatpush1.bf16.msra.mxu0 %v1138
        %1187 = vmatprep.mubr.bf16.mxu0 %v1026
        %1188 = vmatmul.mubr.bf16.gmra.mrb[0].mxu0 %v1025
        %v1189 = vpop.f32.mrb[0].mxu0
        %v1190 = vadd.f32 0.0, %v1189
        %v1191 = vpop.f32.mrb[0].mxu0
        %v1192 = vpop.f32.mrb[0].mxu0
        %v1193 = vpop.f32.mrb[0].mxu0
        %1194 = vdwg.mxu0
        %v1195 = vadd.f32 %v1024, %v1190
        %v1196 = vpack.c.bf16 %v488, %v488
        %v1197 = vpack.c.bf16 %v490, %v490
        %v1198 = vld [vmem:[%s3 + $0x200] sm:$0xf]
        %v1199 = vld [vmem:[%s3 + $0x204] sm:$0xf]
        %v1200 = vld [vmem:[%s3 + $0x208] sm:$0xf]
        %v1201 = vld [vmem:[%s3 + $0x20c] sm:$0xf]
        %v1202 = vld [vmem:[%s3 + $0x210] sm:$0xf]
        %v1203 = vld [vmem:[%s3 + $0x214] sm:$0xf]
        %v1204 = vld [vmem:[%s3 + $0x218] sm:$0xf]
        %v1205 = vld [vmem:[%s3 + $0x21c] sm:$0xf]
        %v1206 = vld [vmem:[%s3 + $0x220] sm:$0xf]
        %v1207 = vld [vmem:[%s3 + $0x224] sm:$0xf]
        %v1208 = vld [vmem:[%s3 + $0x228] sm:$0xf]
        %v1209 = vld [vmem:[%s3 + $0x22c] sm:$0xf]
        %v1210 = vld [vmem:[%s3 + $0x230] sm:$0xf]
        %v1211 = vld [vmem:[%s3 + $0x234] sm:$0xf]
        %v1212 = vld [vmem:[%s3 + $0x238] sm:$0xf]
        %v1213 = vld [vmem:[%s3 + $0x23c] sm:$0xf]
        %v1214 = vld [vmem:[%s3 + $0x240] sm:$0xf]
        %v1215 = vld [vmem:[%s3 + $0x244] sm:$0xf]
        %v1216 = vld [vmem:[%s3 + $0x248] sm:$0xf]
        %v1217 = vld [vmem:[%s3 + $0x24c] sm:$0xf]
        %v1218 = vld [vmem:[%s3 + $0x250] sm:$0xf]
        %v1219 = vld [vmem:[%s3 + $0x254] sm:$0xf]
        %v1220 = vld [vmem:[%s3 + $0x258] sm:$0xf]
        %v1221 = vld [vmem:[%s3 + $0x25c] sm:$0xf]
        %v1222 = vld [vmem:[%s3 + $0x260] sm:$0xf]
        %v1223 = vld [vmem:[%s3 + $0x264] sm:$0xf]
        %v1224 = vld [vmem:[%s3 + $0x268] sm:$0xf]
        %v1225 = vld [vmem:[%s3 + $0x26c] sm:$0xf]
        %v1226 = vld [vmem:[%s3 + $0x270] sm:$0xf]
        %v1227 = vld [vmem:[%s3 + $0x274] sm:$0xf]
        %v1228 = vld [vmem:[%s3 + $0x278] sm:$0xf]
        %v1229 = vld [vmem:[%s3 + $0x27c] sm:$0xf]
        %v1262 = vunpack.c.l.b16 %v1198
        %v1263 = vunpack.c.l.b16 %v1199
        %v1264 = vunpack.c.l.b16 %v1200
        %v1265 = vunpack.c.l.b16 %v1201
        %v1266 = vunpack.c.l.b16 %v1202
        %v1267 = vunpack.c.l.b16 %v1203
        %v1268 = vunpack.c.l.b16 %v1204
        %v1269 = vunpack.c.l.b16 %v1205
        %v1270 = vunpack.c.l.b16 %v1206
        %v1271 = vunpack.c.l.b16 %v1207
        %v1272 = vunpack.c.l.b16 %v1208
        %v1273 = vunpack.c.l.b16 %v1209
        %v1274 = vunpack.c.l.b16 %v1210
        %v1275 = vunpack.c.l.b16 %v1211
        %v1276 = vunpack.c.l.b16 %v1212
        %v1277 = vunpack.c.l.b16 %v1213
        %v1278 = vunpack.c.l.b16 %v1214
        %v1279 = vunpack.c.l.b16 %v1215
        %v1280 = vunpack.c.l.b16 %v1216
        %v1281 = vunpack.c.l.b16 %v1217
        %v1282 = vunpack.c.l.b16 %v1218
        %v1283 = vunpack.c.l.b16 %v1219
        %v1284 = vunpack.c.l.b16 %v1220
        %v1285 = vunpack.c.l.b16 %v1221
        %v1286 = vunpack.c.l.b16 %v1222
        %v1287 = vunpack.c.l.b16 %v1223
        %v1288 = vunpack.c.l.b16 %v1224
        %v1289 = vunpack.c.l.b16 %v1225
        %v1290 = vunpack.c.l.b16 %v1226
        %v1291 = vunpack.c.l.b16 %v1227
        %v1292 = vunpack.c.l.b16 %v1228
        %v1293 = vunpack.c.l.b16 %v1229
        %v1294 = vpack.c.b16 %v1263, %v1262
        %v1295 = vpack.c.b16 %v1265, %v1264
        %v1296 = vpack.c.b16 %v1267, %v1266
        %v1297 = vpack.c.b16 %v1269, %v1268
        %v1298 = vpack.c.b16 %v1271, %v1270
        %v1299 = vpack.c.b16 %v1273, %v1272
        %v1300 = vpack.c.b16 %v1275, %v1274
        %v1301 = vpack.c.b16 %v1277, %v1276
        %v1302 = vpack.c.b16 %v1279, %v1278
        %v1303 = vpack.c.b16 %v1281, %v1280
        %v1304 = vpack.c.b16 %v1283, %v1282
        %v1305 = vpack.c.b16 %v1285, %v1284
        %v1306 = vpack.c.b16 %v1287, %v1286
        %v1307 = vpack.c.b16 %v1289, %v1288
        %v1308 = vpack.c.b16 %v1291, %v1290
        %v1309 = vpack.c.b16 %v1293, %v1292
        %1326 = vmatprep.subr.bf16.mxu0 0
        %1327 = vmatpush1.bf16.msra.mxu0 %v1294
        %1328 = vmatprep.subr.bf16.mxu0 0
        %1329 = vmatpush1.bf16.msra.mxu0 %v1295
        %1330 = vmatprep.subr.bf16.mxu0 0
        %1331 = vmatpush1.bf16.msra.mxu0 %v1296
        %1332 = vmatprep.subr.bf16.mxu0 0
        %1333 = vmatpush1.bf16.msra.mxu0 %v1297
        %1334 = vmatprep.subr.bf16.mxu0 0
        %1335 = vmatpush1.bf16.msra.mxu0 %v1298
        %1336 = vmatprep.subr.bf16.mxu0 0
        %1337 = vmatpush1.bf16.msra.mxu0 %v1299
        %1338 = vmatprep.subr.bf16.mxu0 0
        %1339 = vmatpush1.bf16.msra.mxu0 %v1300
        %1340 = vmatprep.subr.bf16.mxu0 0
        %1341 = vmatpush1.bf16.msra.mxu0 %v1301
        %1342 = vmatprep.subr.bf16.mxu0 0
        %1343 = vmatpush1.bf16.msra.mxu0 %v1302
        %1344 = vmatprep.subr.bf16.mxu0 0
        %1345 = vmatpush1.bf16.msra.mxu0 %v1303
        %1346 = vmatprep.subr.bf16.mxu0 0
        %1347 = vmatpush1.bf16.msra.mxu0 %v1304
        %1348 = vmatprep.subr.bf16.mxu0 0
        %1349 = vmatpush1.bf16.msra.mxu0 %v1305
        %1350 = vmatprep.subr.bf16.mxu0 0
        %1351 = vmatpush1.bf16.msra.mxu0 %v1306
        %1352 = vmatprep.subr.bf16.mxu0 0
        %1353 = vmatpush1.bf16.msra.mxu0 %v1307
        %1354 = vmatprep.subr.bf16.mxu0 0
        %1355 = vmatpush1.bf16.msra.mxu0 %v1308
        %1356 = vmatprep.subr.bf16.mxu0 0
        %1357 = vmatpush1.bf16.msra.mxu0 %v1309
        %1358 = vmatprep.mubr.bf16.mxu0 %v1197
        %1359 = vmatmul.mubr.bf16.gmra.mrb[0].mxu0 %v1196
        %v1360 = vpop.f32.mrb[0].mxu0
        %v1361 = vadd.f32 0.0, %v1360
        %v1362 = vpop.f32.mrb[0].mxu0
        %v1363 = vpop.f32.mrb[0].mxu0
        %v1364 = vpop.f32.mrb[0].mxu0
        %1365 = vdwg.mxu0
        %v1366 = vadd.f32 %v1195, %v1361
        %v1367 = vpack.c.bf16 %v492, %v492
        %v1368 = vpack.c.bf16 %v494, %v494
        %v1369 = vld [vmem:[%s3 + $0x280] sm:$0xf]
        %v1370 = vld [vmem:[%s3 + $0x284] sm:$0xf]
        %v1371 = vld [vmem:[%s3 + $0x288] sm:$0xf]
        %v1372 = vld [vmem:[%s3 + $0x28c] sm:$0xf]
        %v1373 = vld [vmem:[%s3 + $0x290] sm:$0xf]
        %v1374 = vld [vmem:[%s3 + $0x294] sm:$0xf]
        %v1375 = vld [vmem:[%s3 + $0x298] sm:$0xf]
        %v1376 = vld [vmem:[%s3 + $0x29c] sm:$0xf]
        %v1377 = vld [vmem:[%s3 + $0x2a0] sm:$0xf]
        %v1378 = vld [vmem:[%s3 + $0x2a4] sm:$0xf]
        %v1379 = vld [vmem:[%s3 + $0x2a8] sm:$0xf]
        %v1380 = vld [vmem:[%s3 + $0x2ac] sm:$0xf]
        %v1381 = vld [vmem:[%s3 + $0x2b0] sm:$0xf]
        %v1382 = vld [vmem:[%s3 + $0x2b4] sm:$0xf]
        %v1383 = vld [vmem:[%s3 + $0x2b8] sm:$0xf]
        %v1384 = vld [vmem:[%s3 + $0x2bc] sm:$0xf]
        %v1385 = vld [vmem:[%s3 + $0x2c0] sm:$0xf]
        %v1386 = vld [vmem:[%s3 + $0x2c4] sm:$0xf]
        %v1387 = vld [vmem:[%s3 + $0x2c8] sm:$0xf]
        %v1388 = vld [vmem:[%s3 + $0x2cc] sm:$0xf]
        %v1389 = vld [vmem:[%s3 + $0x2d0] sm:$0xf]
        %v1390 = vld [vmem:[%s3 + $0x2d4] sm:$0xf]
        %v1391 = vld [vmem:[%s3 + $0x2d8] sm:$0xf]
        %v1392 = vld [vmem:[%s3 + $0x2dc] sm:$0xf]
        %v1393 = vld [vmem:[%s3 + $0x2e0] sm:$0xf]
        %v1394 = vld [vmem:[%s3 + $0x2e4] sm:$0xf]
        %v1395 = vld [vmem:[%s3 + $0x2e8] sm:$0xf]
        %v1396 = vld [vmem:[%s3 + $0x2ec] sm:$0xf]
        %v1397 = vld [vmem:[%s3 + $0x2f0] sm:$0xf]
        %v1398 = vld [vmem:[%s3 + $0x2f4] sm:$0xf]
        %v1399 = vld [vmem:[%s3 + $0x2f8] sm:$0xf]
        %v1400 = vld [vmem:[%s3 + $0x2fc] sm:$0xf]
        %v1433 = vunpack.c.l.b16 %v1369
        %v1434 = vunpack.c.l.b16 %v1370
        %v1435 = vunpack.c.l.b16 %v1371
        %v1436 = vunpack.c.l.b16 %v1372
        %v1437 = vunpack.c.l.b16 %v1373
        %v1438 = vunpack.c.l.b16 %v1374
        %v1439 = vunpack.c.l.b16 %v1375
        %v1440 = vunpack.c.l.b16 %v1376
        %v1441 = vunpack.c.l.b16 %v1377
        %v1442 = vunpack.c.l.b16 %v1378
        %v1443 = vunpack.c.l.b16 %v1379
        %v1444 = vunpack.c.l.b16 %v1380
        %v1445 = vunpack.c.l.b16 %v1381
        %v1446 = vunpack.c.l.b16 %v1382
        %v1447 = vunpack.c.l.b16 %v1383
        %v1448 = vunpack.c.l.b16 %v1384
        %v1449 = vunpack.c.l.b16 %v1385
        %v1450 = vunpack.c.l.b16 %v1386
        %v1451 = vunpack.c.l.b16 %v1387
        %v1452 = vunpack.c.l.b16 %v1388
        %v1453 = vunpack.c.l.b16 %v1389
        %v1454 = vunpack.c.l.b16 %v1390
        %v1455 = vunpack.c.l.b16 %v1391
        %v1456 = vunpack.c.l.b16 %v1392
        %v1457 = vunpack.c.l.b16 %v1393
        %v1458 = vunpack.c.l.b16 %v1394
        %v1459 = vunpack.c.l.b16 %v1395
        %v1460 = vunpack.c.l.b16 %v1396
        %v1461 = vunpack.c.l.b16 %v1397
        %v1462 = vunpack.c.l.b16 %v1398
        %v1463 = vunpack.c.l.b16 %v1399
        %v1464 = vunpack.c.l.b16 %v1400
        %v1465 = vpack.c.b16 %v1434, %v1433
        %v1466 = vpack.c.b16 %v1436, %v1435
        %v1467 = vpack.c.b16 %v1438, %v1437
        %v1468 = vpack.c.b16 %v1440, %v1439
        %v1469 = vpack.c.b16 %v1442, %v1441
        %v1470 = vpack.c.b16 %v1444, %v1443
        %v1471 = vpack.c.b16 %v1446, %v1445
        %v1472 = vpack.c.b16 %v1448, %v1447
        %v1473 = vpack.c.b16 %v1450, %v1449
        %v1474 = vpack.c.b16 %v1452, %v1451
        %v1475 = vpack.c.b16 %v1454, %v1453
        %v1476 = vpack.c.b16 %v1456, %v1455
        %v1477 = vpack.c.b16 %v1458, %v1457
        %v1478 = vpack.c.b16 %v1460, %v1459
        %v1479 = vpack.c.b16 %v1462, %v1461
        %v1480 = vpack.c.b16 %v1464, %v1463
        %1497 = vmatprep.subr.bf16.mxu0 0
        %1498 = vmatpush1.bf16.msra.mxu0 %v1465
        %1499 = vmatprep.subr.bf16.mxu0 0
        %1500 = vmatpush1.bf16.msra.mxu0 %v1466
        %1501 = vmatprep.subr.bf16.mxu0 0
        %1502 = vmatpush1.bf16.msra.mxu0 %v1467
        %1503 = vmatprep.subr.bf16.mxu0 0
        %1504 = vmatpush1.bf16.msra.mxu0 %v1468
        %1505 = vmatprep.subr.bf16.mxu0 0
        %1506 = vmatpush1.bf16.msra.mxu0 %v1469
        %1507 = vmatprep.subr.bf16.mxu0 0
        %1508 = vmatpush1.bf16.msra.mxu0 %v1470
        %1509 = vmatprep.subr.bf16.mxu0 0
        %1510 = vmatpush1.bf16.msra.mxu0 %v1471
        %1511 = vmatprep.subr.bf16.mxu0 0
        %1512 = vmatpush1.bf16.msra.mxu0 %v1472
        %1513 = vmatprep.subr.bf16.mxu0 0
        %1514 = vmatpush1.bf16.msra.mxu0 %v1473
        %1515 = vmatprep.subr.bf16.mxu0 0
        %1516 = vmatpush1.bf16.msra.mxu0 %v1474
        %1517 = vmatprep.subr.bf16.mxu0 0
        %1518 = vmatpush1.bf16.msra.mxu0 %v1475
        %1519 = vmatprep.subr.bf16.mxu0 0
        %1520 = vmatpush1.bf16.msra.mxu0 %v1476
        %1521 = vmatprep.subr.bf16.mxu0 0
        %1522 = vmatpush1.bf16.msra.mxu0 %v1477
        %1523 = vmatprep.subr.bf16.mxu0 0
        %1524 = vmatpush1.bf16.msra.mxu0 %v1478
        %1525 = vmatprep.subr.bf16.mxu0 0
        %1526 = vmatpush1.bf16.msra.mxu0 %v1479
        %1527 = vmatprep.subr.bf16.mxu0 0
        %1528 = vmatpush1.bf16.msra.mxu0 %v1480
        %1529 = vmatprep.mubr.bf16.mxu0 %v1368
        %1530 = vmatmul.mubr.bf16.gmra.mrb[0].mxu0 %v1367
        %v1531 = vpop.f32.mrb[0].mxu0
        %v1532 = vadd.f32 0.0, %v1531
        %v1533 = vpop.f32.mrb[0].mxu0
        %v1534 = vpop.f32.mrb[0].mxu0
        %v1535 = vpop.f32.mrb[0].mxu0
        %1536 = vdwg.mxu0
        %v1537 = vadd.f32 %v1366, %v1532
        %v1538 = vpack.c.bf16 %v498, %v498
        %v1539 = vpack.c.bf16 %v500, %v500
        %v1540 = vld [vmem:[%s3 + $0x300] sm:$0xf]
        %v1541 = vld [vmem:[%s3 + $0x304] sm:$0xf]
        %v1542 = vld [vmem:[%s3 + $0x308] sm:$0xf]
        %v1543 = vld [vmem:[%s3 + $0x30c] sm:$0xf]
        %v1544 = vld [vmem:[%s3 + $0x310] sm:$0xf]
        %v1545 = vld [vmem:[%s3 + $0x314] sm:$0xf]
        %v1546 = vld [vmem:[%s3 + $0x318] sm:$0xf]
        %v1547 = vld [vmem:[%s3 + $0x31c] sm:$0xf]
        %v1548 = vld [vmem:[%s3 + $0x320] sm:$0xf]
        %v1549 = vld [vmem:[%s3 + $0x324] sm:$0xf]
        %v1550 = vld [vmem:[%s3 + $0x328] sm:$0xf]
        %v1551 = vld [vmem:[%s3 + $0x32c] sm:$0xf]
        %v1552 = vld [vmem:[%s3 + $0x330] sm:$0xf]
        %v1553 = vld [vmem:[%s3 + $0x334] sm:$0xf]
        %v1554 = vld [vmem:[%s3 + $0x338] sm:$0xf]
        %v1555 = vld [vmem:[%s3 + $0x33c] sm:$0xf]
        %v1556 = vld [vmem:[%s3 + $0x340] sm:$0xf]
        %v1557 = vld [vmem:[%s3 + $0x344] sm:$0xf]
        %v1558 = vld [vmem:[%s3 + $0x348] sm:$0xf]
        %v1559 = vld [vmem:[%s3 + $0x34c] sm:$0xf]
        %v1560 = vld [vmem:[%s3 + $0x350] sm:$0xf]
        %v1561 = vld [vmem:[%s3 + $0x354] sm:$0xf]
        %v1562 = vld [vmem:[%s3 + $0x358] sm:$0xf]
        %v1563 = vld [vmem:[%s3 + $0x35c] sm:$0xf]
        %v1564 = vld [vmem:[%s3 + $0x360] sm:$0xf]
        %v1565 = vld [vmem:[%s3 + $0x364] sm:$0xf]
        %v1566 = vld [vmem:[%s3 + $0x368] sm:$0xf]
        %v1567 = vld [vmem:[%s3 + $0x36c] sm:$0xf]
        %v1568 = vld [vmem:[%s3 + $0x370] sm:$0xf]
        %v1569 = vld [vmem:[%s3 + $0x374] sm:$0xf]
        %v1570 = vld [vmem:[%s3 + $0x378] sm:$0xf]
        %v1571 = vld [vmem:[%s3 + $0x37c] sm:$0xf]
        %v1604 = vunpack.c.l.b16 %v1540
        %v1605 = vunpack.c.l.b16 %v1541
        %v1606 = vunpack.c.l.b16 %v1542
        %v1607 = vunpack.c.l.b16 %v1543
        %v1608 = vunpack.c.l.b16 %v1544
        %v1609 = vunpack.c.l.b16 %v1545
        %v1610 = vunpack.c.l.b16 %v1546
        %v1611 = vunpack.c.l.b16 %v1547
        %v1612 = vunpack.c.l.b16 %v1548
        %v1613 = vunpack.c.l.b16 %v1549
        %v1614 = vunpack.c.l.b16 %v1550
        %v1615 = vunpack.c.l.b16 %v1551
        %v1616 = vunpack.c.l.b16 %v1552
        %v1617 = vunpack.c.l.b16 %v1553
        %v1618 = vunpack.c.l.b16 %v1554
        %v1619 = vunpack.c.l.b16 %v1555
        %v1620 = vunpack.c.l.b16 %v1556
        %v1621 = vunpack.c.l.b16 %v1557
        %v1622 = vunpack.c.l.b16 %v1558
        %v1623 = vunpack.c.l.b16 %v1559
        %v1624 = vunpack.c.l.b16 %v1560
        %v1625 = vunpack.c.l.b16 %v1561
        %v1626 = vunpack.c.l.b16 %v1562
        %v1627 = vunpack.c.l.b16 %v1563
        %v1628 = vunpack.c.l.b16 %v1564
        %v1629 = vunpack.c.l.b16 %v1565
        %v1630 = vunpack.c.l.b16 %v1566
        %v1631 = vunpack.c.l.b16 %v1567
        %v1632 = vunpack.c.l.b16 %v1568
        %v1633 = vunpack.c.l.b16 %v1569
        %v1634 = vunpack.c.l.b16 %v1570
        %v1635 = vunpack.c.l.b16 %v1571
        %v1636 = vpack.c.b16 %v1605, %v1604
        %v1637 = vpack.c.b16 %v1607, %v1606
        %v1638 = vpack.c.b16 %v1609, %v1608
        %v1639 = vpack.c.b16 %v1611, %v1610
        %v1640 = vpack.c.b16 %v1613, %v1612
        %v1641 = vpack.c.b16 %v1615, %v1614
        %v1642 = vpack.c.b16 %v1617, %v1616
        %v1643 = vpack.c.b16 %v1619, %v1618
        %v1644 = vpack.c.b16 %v1621, %v1620
        %v1645 = vpack.c.b16 %v1623, %v1622
        %v1646 = vpack.c.b16 %v1625, %v1624
        %v1647 = vpack.c.b16 %v1627, %v1626
        %v1648 = vpack.c.b16 %v1629, %v1628
        %v1649 = vpack.c.b16 %v1631, %v1630
        %v1650 = vpack.c.b16 %v1633, %v1632
        %v1651 = vpack.c.b16 %v1635, %v1634
        %1668 = vmatprep.subr.bf16.mxu0 0
        %1669 = vmatpush1.bf16.msra.mxu0 %v1636
        %1670 = vmatprep.subr.bf16.mxu0 0
        %1671 = vmatpush1.bf16.msra.mxu0 %v1637
        %1672 = vmatprep.subr.bf16.mxu0 0
        %1673 = vmatpush1.bf16.msra.mxu0 %v1638
        %1674 = vmatprep.subr.bf16.mxu0 0
        %1675 = vmatpush1.bf16.msra.mxu0 %v1639
        %1676 = vmatprep.subr.bf16.mxu0 0
        %1677 = vmatpush1.bf16.msra.mxu0 %v1640
        %1678 = vmatprep.subr.bf16.mxu0 0
        %1679 = vmatpush1.bf16.msra.mxu0 %v1641
        %1680 = vmatprep.subr.bf16.mxu0 0
        %1681 = vmatpush1.bf16.msra.mxu0 %v1642
        %1682 = vmatprep.subr.bf16.mxu0 0
        %1683 = vmatpush1.bf16.msra.mxu0 %v1643
        %1684 = vmatprep.subr.bf16.mxu0 0
        %1685 = vmatpush1.bf16.msra.mxu0 %v1644
        %1686 = vmatprep.subr.bf16.mxu0 0
        %1687 = vmatpush1.bf16.msra.mxu0 %v1645
        %1688 = vmatprep.subr.bf16.mxu0 0
        %1689 = vmatpush1.bf16.msra.mxu0 %v1646
        %1690 = vmatprep.subr.bf16.mxu0 0
        %1691 = vmatpush1.bf16.msra.mxu0 %v1647
        %1692 = vmatprep.subr.bf16.mxu0 0
        %1693 = vmatpush1.bf16.msra.mxu0 %v1648
        %1694 = vmatprep.subr.bf16.mxu0 0
        %1695 = vmatpush1.bf16.msra.mxu0 %v1649
        %1696 = vmatprep.subr.bf16.mxu0 0
        %1697 = vmatpush1.bf16.msra.mxu0 %v1650
        %1698 = vmatprep.subr.bf16.mxu0 0
        %1699 = vmatpush1.bf16.msra.mxu0 %v1651
        %1700 = vmatprep.mubr.bf16.mxu0 %v1539
        %1701 = vmatmul.mubr.bf16.gmra.mrb[0].mxu0 %v1538
        %v1702 = vpop.f32.mrb[0].mxu0
        %v1703 = vadd.f32 0.0, %v1702
        %v1704 = vpop.f32.mrb[0].mxu0
        %v1705 = vpop.f32.mrb[0].mxu0
        %v1706 = vpop.f32.mrb[0].mxu0
        %1707 = vdwg.mxu0
        %v1708 = vadd.f32 %v1537, %v1703
        %v1709 = vpack.c.bf16 %v502, %v502
        %v1710 = vpack.c.bf16 %v504, %v504
        %v1711 = vld [vmem:[%s3 + $0x380] sm:$0xf]
        %v1712 = vld [vmem:[%s3 + $0x384] sm:$0xf]
        %v1713 = vld [vmem:[%s3 + $0x388] sm:$0xf]
        %v1714 = vld [vmem:[%s3 + $0x38c] sm:$0xf]
        %v1715 = vld [vmem:[%s3 + $0x390] sm:$0xf]
        %v1716 = vld [vmem:[%s3 + $0x394] sm:$0xf]
        %v1717 = vld [vmem:[%s3 + $0x398] sm:$0xf]
        %v1718 = vld [vmem:[%s3 + $0x39c] sm:$0xf]
        %v1719 = vld [vmem:[%s3 + $0x3a0] sm:$0xf]
        %v1720 = vld [vmem:[%s3 + $0x3a4] sm:$0xf]
        %v1721 = vld [vmem:[%s3 + $0x3a8] sm:$0xf]
        %v1722 = vld [vmem:[%s3 + $0x3ac] sm:$0xf]
        %v1723 = vld [vmem:[%s3 + $0x3b0] sm:$0xf]
        %v1724 = vld [vmem:[%s3 + $0x3b4] sm:$0xf]
        %v1725 = vld [vmem:[%s3 + $0x3b8] sm:$0xf]
        %v1726 = vld [vmem:[%s3 + $0x3bc] sm:$0xf]
        %v1727 = vld [vmem:[%s3 + $0x3c0] sm:$0xf]
        %v1728 = vld [vmem:[%s3 + $0x3c4] sm:$0xf]
        %v1729 = vld [vmem:[%s3 + $0x3c8] sm:$0xf]
        %v1730 = vld [vmem:[%s3 + $0x3cc] sm:$0xf]
        %v1731 = vld [vmem:[%s3 + $0x3d0] sm:$0xf]
        %v1732 = vld [vmem:[%s3 + $0x3d4] sm:$0xf]
        %v1733 = vld [vmem:[%s3 + $0x3d8] sm:$0xf]
        %v1734 = vld [vmem:[%s3 + $0x3dc] sm:$0xf]
        %v1735 = vld [vmem:[%s3 + $0x3e0] sm:$0xf]
        %v1736 = vld [vmem:[%s3 + $0x3e4] sm:$0xf]
        %v1737 = vld [vmem:[%s3 + $0x3e8] sm:$0xf]
        %v1738 = vld [vmem:[%s3 + $0x3ec] sm:$0xf]
        %v1739 = vld [vmem:[%s3 + $0x3f0] sm:$0xf]
        %v1740 = vld [vmem:[%s3 + $0x3f4] sm:$0xf]
        %v1741 = vld [vmem:[%s3 + $0x3f8] sm:$0xf]
        %v1742 = vld [vmem:[%s3 + $0x3fc] sm:$0xf]
        %v1775 = vunpack.c.l.b16 %v1711
        %v1776 = vunpack.c.l.b16 %v1712
        %v1777 = vunpack.c.l.b16 %v1713
        %v1778 = vunpack.c.l.b16 %v1714
        %v1779 = vunpack.c.l.b16 %v1715
        %v1780 = vunpack.c.l.b16 %v1716
        %v1781 = vunpack.c.l.b16 %v1717
        %v1782 = vunpack.c.l.b16 %v1718
        %v1783 = vunpack.c.l.b16 %v1719
        %v1784 = vunpack.c.l.b16 %v1720
        %v1785 = vunpack.c.l.b16 %v1721
        %v1786 = vunpack.c.l.b16 %v1722
        %v1787 = vunpack.c.l.b16 %v1723
        %v1788 = vunpack.c.l.b16 %v1724
        %v1789 = vunpack.c.l.b16 %v1725
        %v1790 = vunpack.c.l.b16 %v1726
        %v1791 = vunpack.c.l.b16 %v1727
        %v1792 = vunpack.c.l.b16 %v1728
        %v1793 = vunpack.c.l.b16 %v1729
        %v1794 = vunpack.c.l.b16 %v1730
        %v1795 = vunpack.c.l.b16 %v1731
        %v1796 = vunpack.c.l.b16 %v1732
        %v1797 = vunpack.c.l.b16 %v1733
        %v1798 = vunpack.c.l.b16 %v1734
        %v1799 = vunpack.c.l.b16 %v1735
        %v1800 = vunpack.c.l.b16 %v1736
        %v1801 = vunpack.c.l.b16 %v1737
        %v1802 = vunpack.c.l.b16 %v1738
        %v1803 = vunpack.c.l.b16 %v1739
        %v1804 = vunpack.c.l.b16 %v1740
        %v1805 = vunpack.c.l.b16 %v1741
        %v1806 = vunpack.c.l.b16 %v1742
        %v1807 = vpack.c.b16 %v1776, %v1775
        %v1808 = vpack.c.b16 %v1778, %v1777
        %v1809 = vpack.c.b16 %v1780, %v1779
        %v1810 = vpack.c.b16 %v1782, %v1781
        %v1811 = vpack.c.b16 %v1784, %v1783
        %v1812 = vpack.c.b16 %v1786, %v1785
        %v1813 = vpack.c.b16 %v1788, %v1787
        %v1814 = vpack.c.b16 %v1790, %v1789
        %v1815 = vpack.c.b16 %v1792, %v1791
        %v1816 = vpack.c.b16 %v1794, %v1793
        %v1817 = vpack.c.b16 %v1796, %v1795
        %v1818 = vpack.c.b16 %v1798, %v1797
        %v1819 = vpack.c.b16 %v1800, %v1799
        %v1820 = vpack.c.b16 %v1802, %v1801
        %v1821 = vpack.c.b16 %v1804, %v1803
        %v1822 = vpack.c.b16 %v1806, %v1805
        %1839 = vmatprep.subr.bf16.mxu0 0
        %1840 = vmatpush1.bf16.msra.mxu0 %v1807
        %1841 = vmatprep.subr.bf16.mxu0 0
        %1842 = vmatpush1.bf16.msra.mxu0 %v1808
        %1843 = vmatprep.subr.bf16.mxu0 0
        %1844 = vmatpush1.bf16.msra.mxu0 %v1809
        %1845 = vmatprep.subr.bf16.mxu0 0
        %1846 = vmatpush1.bf16.msra.mxu0 %v1810
        %1847 = vmatprep.subr.bf16.mxu0 0
        %1848 = vmatpush1.bf16.msra.mxu0 %v1811
        %1849 = vmatprep.subr.bf16.mxu0 0
        %1850 = vmatpush1.bf16.msra.mxu0 %v1812
        %1851 = vmatprep.subr.bf16.mxu0 0
        %1852 = vmatpush1.bf16.msra.mxu0 %v1813
        %1853 = vmatprep.subr.bf16.mxu0 0
        %1854 = vmatpush1.bf16.msra.mxu0 %v1814
        %1855 = vmatprep.subr.bf16.mxu0 0
        %1856 = vmatpush1.bf16.msra.mxu0 %v1815
        %1857 = vmatprep.subr.bf16.mxu0 0
        %1858 = vmatpush1.bf16.msra.mxu0 %v1816
        %1859 = vmatprep.subr.bf16.mxu0 0
        %1860 = vmatpush1.bf16.msra.mxu0 %v1817
        %1861 = vmatprep.subr.bf16.mxu0 0
        %1862 = vmatpush1.bf16.msra.mxu0 %v1818
        %1863 = vmatprep.subr.bf16.mxu0 0
        %1864 = vmatpush1.bf16.msra.mxu0 %v1819
        %1865 = vmatprep.subr.bf16.mxu0 0
        %1866 = vmatpush1.bf16.msra.mxu0 %v1820
        %1867 = vmatprep.subr.bf16.mxu0 0
        %1868 = vmatpush1.bf16.msra.mxu0 %v1821
        %1869 = vmatprep.subr.bf16.mxu0 0
        %1870 = vmatpush1.bf16.msra.mxu0 %v1822
        %1871 = vmatprep.mubr.bf16.mxu0 %v1710
        %1872 = vmatmul.mubr.bf16.gmra.mrb[0].mxu0 %v1709
        %v1873 = vpop.f32.mrb[0].mxu0
        %v1874 = vadd.f32 0.0, %v1873
        %v1875 = vpop.f32.mrb[0].mxu0
        %v1876 = vpop.f32.mrb[0].mxu0
        %v1877 = vpop.f32.mrb[0].mxu0
        %1878 = vdwg.mxu0
        %v1879 = vadd.f32 %v1708, %v1874
        %v1880 = vpack.c.bf16 %v508, %v508
        %v1881 = vpack.c.bf16 %v510, %v510
        %v1882 = vld [vmem:[%s3 + $0x400] sm:$0xf]
        %v1883 = vld [vmem:[%s3 + $0x404] sm:$0xf]
        %v1884 = vld [vmem:[%s3 + $0x408] sm:$0xf]
        %v1885 = vld [vmem:[%s3 + $0x40c] sm:$0xf]
        %v1886 = vld [vmem:[%s3 + $0x410] sm:$0xf]
        %v1887 = vld [vmem:[%s3 + $0x414] sm:$0xf]
        %v1888 = vld [vmem:[%s3 + $0x418] sm:$0xf]
        %v1889 = vld [vmem:[%s3 + $0x41c] sm:$0xf]
        %v1890 = vld [vmem:[%s3 + $0x420] sm:$0xf]
        %v1891 = vld [vmem:[%s3 + $0x424] sm:$0xf]
        %v1892 = vld [vmem:[%s3 + $0x428] sm:$0xf]
        %v1893 = vld [vmem:[%s3 + $0x42c] sm:$0xf]
        %v1894 = vld [vmem:[%s3 + $0x430] sm:$0xf]
        %v1895 = vld [vmem:[%s3 + $0x434] sm:$0xf]
        %v1896 = vld [vmem:[%s3 + $0x438] sm:$0xf]
        %v1897 = vld [vmem:[%s3 + $0x43c] sm:$0xf]
        %v1898 = vld [vmem:[%s3 + $0x440] sm:$0xf]
        %v1899 = vld [vmem:[%s3 + $0x444] sm:$0xf]
        %v1900 = vld [vmem:[%s3 + $0x448] sm:$0xf]
        %v1901 = vld [vmem:[%s3 + $0x44c] sm:$0xf]
        %v1902 = vld [vmem:[%s3 + $0x450] sm:$0xf]
        %v1903 = vld [vmem:[%s3 + $0x454] sm:$0xf]
        %v1904 = vld [vmem:[%s3 + $0x458] sm:$0xf]
        %v1905 = vld [vmem:[%s3 + $0x45c] sm:$0xf]
        %v1906 = vld [vmem:[%s3 + $0x460] sm:$0xf]
        %v1907 = vld [vmem:[%s3 + $0x464] sm:$0xf]
        %v1908 = vld [vmem:[%s3 + $0x468] sm:$0xf]
        %v1909 = vld [vmem:[%s3 + $0x46c] sm:$0xf]
        %v1910 = vld [vmem:[%s3 + $0x470] sm:$0xf]
        %v1911 = vld [vmem:[%s3 + $0x474] sm:$0xf]
        %v1912 = vld [vmem:[%s3 + $0x478] sm:$0xf]
        %v1913 = vld [vmem:[%s3 + $0x47c] sm:$0xf]
        %v1946 = vunpack.c.l.b16 %v1882
        %v1947 = vunpack.c.l.b16 %v1883
        %v1948 = vunpack.c.l.b16 %v1884
        %v1949 = vunpack.c.l.b16 %v1885
        %v1950 = vunpack.c.l.b16 %v1886
        %v1951 = vunpack.c.l.b16 %v1887
        %v1952 = vunpack.c.l.b16 %v1888
        %v1953 = vunpack.c.l.b16 %v1889
        %v1954 = vunpack.c.l.b16 %v1890
        %v1955 = vunpack.c.l.b16 %v1891
        %v1956 = vunpack.c.l.b16 %v1892
        %v1957 = vunpack.c.l.b16 %v1893
        %v1958 = vunpack.c.l.b16 %v1894
        %v1959 = vunpack.c.l.b16 %v1895
        %v1960 = vunpack.c.l.b16 %v1896
        %v1961 = vunpack.c.l.b16 %v1897
        %v1962 = vunpack.c.l.b16 %v1898
        %v1963 = vunpack.c.l.b16 %v1899
        %v1964 = vunpack.c.l.b16 %v1900
        %v1965 = vunpack.c.l.b16 %v1901
        %v1966 = vunpack.c.l.b16 %v1902
        %v1967 = vunpack.c.l.b16 %v1903
        %v1968 = vunpack.c.l.b16 %v1904
        %v1969 = vunpack.c.l.b16 %v1905
        %v1970 = vunpack.c.l.b16 %v1906
        %v1971 = vunpack.c.l.b16 %v1907
        %v1972 = vunpack.c.l.b16 %v1908
        %v1973 = vunpack.c.l.b16 %v1909
        %v1974 = vunpack.c.l.b16 %v1910
        %v1975 = vunpack.c.l.b16 %v1911
        %v1976 = vunpack.c.l.b16 %v1912
        %v1977 = vunpack.c.l.b16 %v1913
        %v1978 = vpack.c.b16 %v1947, %v1946
        %v1979 = vpack.c.b16 %v1949, %v1948
        %v1980 = vpack.c.b16 %v1951, %v1950
        %v1981 = vpack.c.b16 %v1953, %v1952
        %v1982 = vpack.c.b16 %v1955, %v1954
        %v1983 = vpack.c.b16 %v1957, %v1956
        %v1984 = vpack.c.b16 %v1959, %v1958
        %v1985 = vpack.c.b16 %v1961, %v1960
        %v1986 = vpack.c.b16 %v1963, %v1962
        %v1987 = vpack.c.b16 %v1965, %v1964
        %v1988 = vpack.c.b16 %v1967, %v1966
        %v1989 = vpack.c.b16 %v1969, %v1968
        %v1990 = vpack.c.b16 %v1971, %v1970
        %v1991 = vpack.c.b16 %v1973, %v1972
        %v1992 = vpack.c.b16 %v1975, %v1974
        %v1993 = vpack.c.b16 %v1977, %v1976
        %2010 = vmatprep.subr.bf16.mxu0 0
        %2011 = vmatpush1.bf16.msra.mxu0 %v1978
        %2012 = vmatprep.subr.bf16.mxu0 0
        %2013 = vmatpush1.bf16.msra.mxu0 %v1979
        %2014 = vmatprep.subr.bf16.mxu0 0
        %2015 = vmatpush1.bf16.msra.mxu0 %v1980
        %2016 = vmatprep.subr.bf16.mxu0 0
        %2017 = vmatpush1.bf16.msra.mxu0 %v1981
        %2018 = vmatprep.subr.bf16.mxu0 0
        %2019 = vmatpush1.bf16.msra.mxu0 %v1982
        %2020 = vmatprep.subr.bf16.mxu0 0
        %2021 = vmatpush1.bf16.msra.mxu0 %v1983
        %2022 = vmatprep.subr.bf16.mxu0 0
        %2023 = vmatpush1.bf16.msra.mxu0 %v1984
        %2024 = vmatprep.subr.bf16.mxu0 0
        %2025 = vmatpush1.bf16.msra.mxu0 %v1985
        %2026 = vmatprep.subr.bf16.mxu0 0
        %2027 = vmatpush1.bf16.msra.mxu0 %v1986
        %2028 = vmatprep.subr.bf16.mxu0 0
        %2029 = vmatpush1.bf16.msra.mxu0 %v1987
        %2030 = vmatprep.subr.bf16.mxu0 0
        %2031 = vmatpush1.bf16.msra.mxu0 %v1988
        %2032 = vmatprep.subr.bf16.mxu0 0
        %2033 = vmatpush1.bf16.msra.mxu0 %v1989
        %2034 = vmatprep.subr.bf16.mxu0 0
        %2035 = vmatpush1.bf16.msra.mxu0 %v1990
        %2036 = vmatprep.subr.bf16.mxu0 0
        %2037 = vmatpush1.bf16.msra.mxu0 %v1991
        %2038 = vmatprep.subr.bf16.mxu0 0
        %2039 = vmatpush1.bf16.msra.mxu0 %v1992
        %2040 = vmatprep.subr.bf16.mxu0 0
        %2041 = vmatpush1.bf16.msra.mxu0 %v1993
        %2042 = vmatprep.mubr.bf16.mxu0 %v1881
        %2043 = vmatmul.mubr.bf16.gmra.mrb[0].mxu0 %v1880
        %v2044 = vpop.f32.mrb[0].mxu0
        %v2045 = vadd.f32 0.0, %v2044
        %v2046 = vpop.f32.mrb[0].mxu0
        %v2047 = vpop.f32.mrb[0].mxu0
        %v2048 = vpop.f32.mrb[0].mxu0
        %2049 = vdwg.mxu0
        %v2050 = vadd.f32 %v1879, %v2045
        %2052 = vrot.lane.b32.xlu0 %v2050, 121
        %v2053 = vpop.permute.xlu0 %2052
        %v2055 = vmax.f32 %v2050, %v2053
        %2056 = vrot.lane.b32.xlu0 %v2050, 114
        %v2057 = vpop.permute.xlu0 %2056
        %v2059 = vmax.f32 %v2055, %v2057
        %2060 = vrot.lane.b32.xlu0 %v2050, 107
        %v2061 = vpop.permute.xlu0 %2060
        %v2063 = vmax.f32 %v2059, %v2061
        %2064 = vrot.lane.b32.xlu0 %v2050, 100
        %v2065 = vpop.permute.xlu0 %2064
        %v2067 = vmax.f32 %v2063, %v2065
        %2068 = vrot.lane.b32.xlu0 %v2050, 93
        %v2069 = vpop.permute.xlu0 %2068
        %v2071 = vmax.f32 %v2067, %v2069
        %2072 = vrot.lane.b32.xlu0 %v2050, 86
        %v2073 = vpop.permute.xlu0 %2072
        %v2075 = vmax.f32 %v2071, %v2073
        %vm2076 = vcmask 56320
        %v2077 = vsel %vm2076, %v2075, -inf
        %2078 = vmax.xlane.f32.xlu0 %v2077
        %v2079 = vpop.xlane.xlu0 %2078
        %v2080 = vpack.c.bf16 %v2079, %v2079
        %v2082 = vsel %vm343, %v267, 0
        %v2085 = vsel %vm347, %v2080, 0
        %2087 = vmatprep.subr.bf16.mxu0 0
        %2088 = vmatpush1.bf16.msra.mxu0 %v2085
        %2089 = vmatprep.subr.bf16.mxu0 0
        %2090 = vmatpush1.bf16.msra.mxu0 0
        %2091 = vmatprep.subr.bf16.mxu0 0
        %2092 = vmatpush1.bf16.msra.mxu0 0
        %2093 = vmatprep.subr.bf16.mxu0 0
        %2094 = vmatpush1.bf16.msra.mxu0 0
        %2095 = vmatprep.subr.bf16.mxu0 0
        %2096 = vmatpush1.bf16.msra.mxu0 0
        %2097 = vmatprep.subr.bf16.mxu0 0
        %2098 = vmatpush1.bf16.msra.mxu0 0
        %2099 = vmatprep.subr.bf16.mxu0 0
        %2100 = vmatpush1.bf16.msra.mxu0 0
        %2101 = vmatprep.subr.bf16.mxu0 0
        %2102 = vmatpush1.bf16.msra.mxu0 0
        %2103 = vmatprep.subr.bf16.mxu0 0
        %2104 = vmatpush1.bf16.msra.mxu0 0
        %2105 = vmatprep.subr.bf16.mxu0 0
        %2106 = vmatpush1.bf16.msra.mxu0 0
        %2107 = vmatprep.subr.bf16.mxu0 0
        %2108 = vmatpush1.bf16.msra.mxu0 0
        %2109 = vmatprep.subr.bf16.mxu0 0
        %2110 = vmatpush1.bf16.msra.mxu0 0
        %2111 = vmatprep.subr.bf16.mxu0 0
        %2112 = vmatpush1.bf16.msra.mxu0 0
        %2113 = vmatprep.subr.bf16.mxu0 0
        %2114 = vmatpush1.bf16.msra.mxu0 0
        %2115 = vmatprep.subr.bf16.mxu0 0
        %2116 = vmatpush1.bf16.msra.mxu0 0
        %2117 = vmatprep.subr.bf16.mxu0 0
        %2118 = vmatpush1.bf16.msra.mxu0 0
        %2119 = vmatprep.mubr.bf16.mxu0 0
        %2120 = vmatmul.mubr.bf16.gmra.mrb[0].mxu0 %v2082
        %v2121 = vpop.f32.mrb[0].mxu0
        %v2122 = vadd.f32 0.0, %v2121
        %v2123 = vpop.f32.mrb[0].mxu0
        %v2124 = vpop.f32.mrb[0].mxu0
        %v2125 = vpop.f32.mrb[0].mxu0
        %2126 = vdwg.mxu0
        %v2127 = vmax.f32 %v2122, 0.0
        %v2128 = vpack.c.bf16 %v2127, %v2127
        %v2130 = vsel %vm343, %v269, 0
        %v2133 = vsel %vm347, %v2128, 0
        %2135 = vmatprep.subr.bf16.mxu0 0
        %2136 = vmatpush1.bf16.msra.mxu0 %v2133
        %2137 = vmatprep.subr.bf16.mxu0 0
        %2138 = vmatpush1.bf16.msra.mxu0 0
        %2139 = vmatprep.subr.bf16.mxu0 0
        %2140 = vmatpush1.bf16.msra.mxu0 0
        %2141 = vmatprep.subr.bf16.mxu0 0
        %2142 = vmatpush1.bf16.msra.mxu0 0
        %2143 = vmatprep.subr.bf16.mxu0 0
        %2144 = vmatpush1.bf16.msra.mxu0 0
        %2145 = vmatprep.subr.bf16.mxu0 0
        %2146 = vmatpush1.bf16.msra.mxu0 0
        %2147 = vmatprep.subr.bf16.mxu0 0
        %2148 = vmatpush1.bf16.msra.mxu0 0
        %2149 = vmatprep.subr.bf16.mxu0 0
        %2150 = vmatpush1.bf16.msra.mxu0 0
        %2151 = vmatprep.subr.bf16.mxu0 0
        %2152 = vmatpush1.bf16.msra.mxu0 0
        %2153 = vmatprep.subr.bf16.mxu0 0
        %2154 = vmatpush1.bf16.msra.mxu0 0
        %2155 = vmatprep.subr.bf16.mxu0 0
        %2156 = vmatpush1.bf16.msra.mxu0 0
        %2157 = vmatprep.subr.bf16.mxu0 0
        %2158 = vmatpush1.bf16.msra.mxu0 0
        %2159 = vmatprep.subr.bf16.mxu0 0
        %2160 = vmatpush1.bf16.msra.mxu0 0
        %2161 = vmatprep.subr.bf16.mxu0 0
        %2162 = vmatpush1.bf16.msra.mxu0 0
        %2163 = vmatprep.subr.bf16.mxu0 0
        %2164 = vmatpush1.bf16.msra.mxu0 0
        %2165 = vmatprep.subr.bf16.mxu0 0
        %2166 = vmatpush1.bf16.msra.mxu0 0
        %2167 = vmatprep.mubr.bf16.mxu0 0
        %2168 = vmatmul.mubr.bf16.gmra.mrb[0].mxu0 %v2130
        %v2169 = vpop.f32.mrb[0].mxu0
        %v2170 = vadd.f32 0.0, %v2169
        %v2171 = vpop.f32.mrb[0].mxu0
        %v2172 = vpop.f32.mrb[0].mxu0
        %v2173 = vpop.f32.mrb[0].mxu0
        %2174 = vdwg.mxu0
        %v2175 = vmax.f32 %v2170, 0.0
        %v2176 = vpack.c.bf16 %v2175, %v2175
        %v2178 = vsel %vm343, %v271, 0
        %v2181 = vsel %vm347, %v2176, 0
        %2183 = vmatprep.subr.bf16.mxu0 0
        %2184 = vmatpush1.bf16.msra.mxu0 %v2181
        %2185 = vmatprep.subr.bf16.mxu0 0
        %2186 = vmatpush1.bf16.msra.mxu0 0
        %2187 = vmatprep.subr.bf16.mxu0 0
        %2188 = vmatpush1.bf16.msra.mxu0 0
        %2189 = vmatprep.subr.bf16.mxu0 0
        %2190 = vmatpush1.bf16.msra.mxu0 0
        %2191 = vmatprep.subr.bf16.mxu0 0
        %2192 = vmatpush1.bf16.msra.mxu0 0
        %2193 = vmatprep.subr.bf16.mxu0 0
        %2194 = vmatpush1.bf16.msra.mxu0 0
        %2195 = vmatprep.subr.bf16.mxu0 0
        %2196 = vmatpush1.bf16.msra.mxu0 0
        %2197 = vmatprep.subr.bf16.mxu0 0
        %2198 = vmatpush1.bf16.msra.mxu0 0
        %2199 = vmatprep.subr.bf16.mxu0 0
        %2200 = vmatpush1.bf16.msra.mxu0 0
        %2201 = vmatprep.subr.bf16.mxu0 0
        %2202 = vmatpush1.bf16.msra.mxu0 0
        %2203 = vmatprep.subr.bf16.mxu0 0
        %2204 = vmatpush1.bf16.msra.mxu0 0
        %2205 = vmatprep.subr.bf16.mxu0 0
        %2206 = vmatpush1.bf16.msra.mxu0 0
        %2207 = vmatprep.subr.bf16.mxu0 0
        %2208 = vmatpush1.bf16.msra.mxu0 0
        %2209 = vmatprep.subr.bf16.mxu0 0
        %2210 = vmatpush1.bf16.msra.mxu0 0
        %2211 = vmatprep.subr.bf16.mxu0 0
        %2212 = vmatpush1.bf16.msra.mxu0 0
        %2213 = vmatprep.subr.bf16.mxu0 0
        %2214 = vmatpush1.bf16.msra.mxu0 0
        %2215 = vmatprep.mubr.bf16.mxu0 0
        %2216 = vmatmul.mubr.bf16.gmra.mrb[0].mxu0 %v2178
        %v2217 = vpop.f32.mrb[0].mxu0
        %v2218 = vadd.f32 0.0, %v2217
        %v2219 = vpop.f32.mrb[0].mxu0
        %v2220 = vpop.f32.mrb[0].mxu0
        %v2221 = vpop.f32.mrb[0].mxu0
        %2222 = vdwg.mxu0
        %v2223 = vld [vmem:[%s5] sm:$0x3]
        %v2224 = vunpack.c.l.bf16 %v2223
        %2226 = vset.pattern.permute.xlu0 0
        %2227 = vperm.xlu0 %2226, %v2218
        %v2228 = vpop.permute.xlu0 %2227
        %v2231 = vlaneseq
        %v2232 = vshrl.u32 %v2231, 7
        %v2233 = vsub.s32 0, %v2232
        %v2234 = vrot.slane %v2224, %v2233
        %v2235 = vlaneseq
        %v2236 = vshrl.u32 %v2235, 7
        %v2237 = vsub.s32 2, %v2236
        %v2238 = vrot.slane %v2224, %v2237
        %v2241 = vlaneseq
        %v2242 = vshrl.u32 %v2241, 7
        %v2243 = vsub.s32 0, %v2242
        %v2244 = vrot.slane %v2234, %v2243
        %v2245 = vlaneseq
        %v2246 = vshrl.u32 %v2245, 7
        %v2247 = vsub.s32 0, %v2246
        %v2248 = vrot.slane %v2238, %v2247
        %v2249 = vmul.f32 %v2228, %v2244
        %v2250 = vmul.f32 %v2228, %v2248
        %v2251 = vadd.f32 %v2249, %v389
        %v2252 = vadd.f32 %v2250, %v391
        %v2253 = vpack.c.bf16 %v2251, %v2251
        %v2254 = vpack.c.bf16 %v2252, %v2252
        %v2259 = vunpack.c.l.b16 %v253
        %v2260 = vunpack.c.l.b16 %v254
        %v2261 = vunpack.c.l.b16 %v255
        %v2262 = vunpack.c.l.b16 %v256
        %v2263 = vpack.c.b16 %v2260, %v2259
        %v2264 = vpack.c.b16 %v2262, %v2261
        %v2266 = vsel %vm343, %v2263, 0
        %v2269 = vsel %vm343, %v2264, 0
        %v2272 = vsel %vm347, %v2253, 0
        %v2275 = vsel %vm347, %v2254, 0
        %2277 = vmatprep.subr.bf16.mxu0 %v2275
        %2278 = vmatpush1.bf16.msra.mxu0 %v2272
        %2279 = vmatprep.subr.bf16.mxu0 0
        %2280 = vmatpush1.bf16.msra.mxu0 0
        %2281 = vmatprep.subr.bf16.mxu0 0
        %2282 = vmatpush1.bf16.msra.mxu0 0
        %2283 = vmatprep.subr.bf16.mxu0 0
        %2284 = vmatpush1.bf16.msra.mxu0 0
        %2285 = vmatprep.subr.bf16.mxu0 0
        %2286 = vmatpush1.bf16.msra.mxu0 0
        %2287 = vmatprep.subr.bf16.mxu0 0
        %2288 = vmatpush1.bf16.msra.mxu0 0
        %2289 = vmatprep.subr.bf16.mxu0 0
        %2290 = vmatpush1.bf16.msra.mxu0 0
        %2291 = vmatprep.subr.bf16.mxu0 0
        %2292 = vmatpush1.bf16.msra.mxu0 0
        %2293 = vmatprep.subr.bf16.mxu0 0
        %2294 = vmatpush1.bf16.msra.mxu0 0
        %2295 = vmatprep.subr.bf16.mxu0 0
        %2296 = vmatpush1.bf16.msra.mxu0 0
        %2297 = vmatprep.subr.bf16.mxu0 0
        %2298 = vmatpush1.bf16.msra.mxu0 0
        %2299 = vmatprep.subr.bf16.mxu0 0
        %2300 = vmatpush1.bf16.msra.mxu0 0
        %2301 = vmatprep.subr.bf16.mxu0 0
        %2302 = vmatpush1.bf16.msra.mxu0 0
        %2303 = vmatprep.subr.bf16.mxu0 0
        %2304 = vmatpush1.bf16.msra.mxu0 0
        %2305 = vmatprep.subr.bf16.mxu0 0
        %2306 = vmatpush1.bf16.msra.mxu0 0
        %2307 = vmatprep.subr.bf16.mxu0 0
        %2308 = vmatpush1.bf16.msra.mxu0 0
        %2309 = vmatprep.mubr.bf16.mxu0 0
        %2310 = vmatmul.mubr.bf16.gmra.mrb[0].mxu0 %v2266
        %v2311 = vpop.f32.mrb[0].mxu0
        %v2312 = vadd.f32 0.0, %v2311
        %v2313 = vpop.f32.mrb[0].mxu0
        %v2314 = vadd.f32 0.0, %v2313
        %v2315 = vpop.f32.mrb[0].mxu0
        %v2316 = vadd.f32 0.0, %v2315
        %v2317 = vpop.f32.mrb[0].mxu0
        %v2318 = vadd.f32 0.0, %v2317
        %2319 = vmatprep.mubr.bf16.mxu0 0
        %2320 = vmatmul.mubr.bf16.gmra.mrb[0].mxu0 %v2269
        %v2321 = vpop.f32.mrb[0].mxu0
        %v2322 = vadd.f32 0.0, %v2321
        %v2323 = vpop.f32.mrb[0].mxu0
        %v2324 = vadd.f32 0.0, %v2323
        %v2325 = vpop.f32.mrb[0].mxu0
        %v2326 = vadd.f32 0.0, %v2325
        %v2327 = vpop.f32.mrb[0].mxu0
        %v2328 = vadd.f32 0.0, %v2327
        %2329 = vdwg.mxu0
        %v2330 = vsub.f32 0.0, %v2312
        %v2331 = vsub.f32 0.0, %v2314
        %v2332 = vsub.f32 0.0, %v2316
        %v2333 = vsub.f32 0.0, %v2318
        %v2334 = vsub.f32 0.0, %v2322
        %v2335 = vsub.f32 0.0, %v2324
        %v2336 = vsub.f32 0.0, %v2326
        %v2337 = vsub.f32 0.0, %v2328
        %v2338 = vmul.f32 %v2330, 1.442695
        %v2339 = vpow.pop %v2338
        %v2340 = vmul.f32 %v2331, 1.442695
        %v2341 = vpow.pop %v2340
        %v2342 = vmul.f32 %v2332, 1.442695
        %v2343 = vpow.pop %v2342
        %v2344 = vmul.f32 %v2333, 1.442695
        %v2345 = vpow.pop %v2344
        %v2346 = vmul.f32 %v2334, 1.442695
        %v2347 = vpow.pop %v2346
        %v2348 = vmul.f32 %v2335, 1.442695
        %v2349 = vpow.pop %v2348
        %v2350 = vmul.f32 %v2336, 1.442695
        %v2351 = vpow.pop %v2350
        %v2352 = vmul.f32 %v2337, 1.442695
        %v2353 = vpow.pop %v2352
        %v2354 = vadd.f32 %v2339, 1.0
        %v2355 = vadd.f32 %v2341, 1.0
        %v2356 = vadd.f32 %v2343, 1.0
        %v2357 = vadd.f32 %v2345, 1.0
        %v2358 = vadd.f32 %v2347, 1.0
        %v2359 = vadd.f32 %v2349, 1.0
        %v2360 = vadd.f32 %v2351, 1.0
        %v2361 = vadd.f32 %v2353, 1.0
        %v2362 = vrcp.pop %v2354
        %v2363 = vmul.f32 1.0, %v2362
        %v2364 = vrcp.pop %v2355
        %v2365 = vmul.f32 1.0, %v2364
        %v2366 = vrcp.pop %v2356
        %v2367 = vmul.f32 1.0, %v2366
        %v2368 = vrcp.pop %v2357
        %v2369 = vmul.f32 1.0, %v2368
        %v2370 = vrcp.pop %v2358
        %v2371 = vmul.f32 1.0, %v2370
        %v2372 = vrcp.pop %v2359
        %v2373 = vmul.f32 1.0, %v2372
        %v2374 = vrcp.pop %v2360
        %v2375 = vmul.f32 1.0, %v2374
        %v2376 = vrcp.pop %v2361
        %v2377 = vmul.f32 1.0, %v2376
        %2378 = vst [vmem:[%s244] sm:$0xff] %v2363
        %2379 = vst [vmem:[%s244 + $0x8] sm:$0xff] %v2365
        %2380 = vst [vmem:[%s244 + $0x10] sm:$0xff] %v2367
        %2381 = vst [vmem:[%s244 + $0x18] sm:$0xff] %v2369
        %2382 = vst [vmem:[%s244 + $0x20] sm:$0xff] %v2371
        %2383 = vst [vmem:[%s244 + $0x28] sm:$0xff] %v2373
        %2384 = vst [vmem:[%s244 + $0x30] sm:$0xff] %v2375
        %2385 = vst [vmem:[%s244 + $0x38] sm:$0xff] %v2377
        %s2386 = sand.u32 %s159, 1
        %s2387 = scalar_lea.sflag [#allocation3], %s2386
        %s2388 = sand.u32 %s159, 1
        %s2389 = smul.addr %s2388, 64
        %s2390 = scalar_lea.vmem [#allocation2], %s2389
        // Predicated region
        $region45: #{tpu_custom_call.1} parent=43 // pred_check
          %p2391 = pneg %p169
        $region46: #{tpu_custom_call.1} parent=43 // pred_check_branch
          %2393 = sbr.rel (%p2391) target = $region48
        $region47: #{tpu_custom_call.1} parent=43 // pred_region
          %s2395 = ssub.s32 1024, 1024
          %2396 = vsyncadd %s2387, %s2395
          %s2397 = smul.addr %s20, 8
          %s2398 = smul.addr %s2397, 128
          %s2399 = scalar_lea.hbm %s6, %s2398
          %s2400 = sshll.u32 %s2390, 4
          %s2401 = int_to_ptr.vmem [resolvable:$true] %s2400
          %2406 = dma.vmem_to_hbm [thread:$0]  %s2401, 1024, %s2399, %s2387, 256, 256, 16
        $region48: #{tpu_custom_call.1} parent=43 // pred_fallthru
          _
      $region44: #{tpu_custom_call.1} parent=5 // pred_fallthru
        _
      %p2407 = scmp.le.s32.totalorder 2, %s15
      // Predicated region
      $region49: #{tpu_custom_call.1} parent=5 // pred_check
        %p2408 = pneg %p2407
      $region50: #{tpu_custom_call.1} parent=5 // pred_check_branch
        %2410 = sbr.rel (%p2408) target = $region52
      $region51: #{tpu_custom_call.1} parent=5 // pred_region
        %s2411 = ssub.s32 %s15, 2
        // Predicated region
        $region53: #{tpu_custom_call.1} parent=51 // pred_check
          %p2412 = pneg %p175
        $region54: #{tpu_custom_call.1} parent=51 // pred_check_branch
          %2414 = sbr.rel (%p2412) target = $region56
        $region55: #{tpu_custom_call.1} parent=51 // pred_region
          %s2415 = sand.u32 %s160, 1
          %s2416 = scalar_lea.sflag [#allocation3], %s2415
          %s2417 = sand.u32 %s160, 1
          %s2418 = smul.addr %s2417, 64
          %s2419 = scalar_lea.vmem [#allocation2], %s2418
          %2420 = dma.done %s2416, 1024
        $region56: #{tpu_custom_call.1} parent=51 // pred_fallthru
          _
      $region52: #{tpu_custom_call.1} parent=5 // pred_fallthru
        _
    $region6: #{tpu_custom_call.1} parent=1 // loop_footer
      %s19 = sadd.s32 1, %s15
    $region7: #{tpu_custom_call.1} parent=1 // loop_footer_branch
      %14 = sbr.rel target = $region3
    $region8: #{tpu_custom_call.1} parent=1 // loop_exit
      _
    %2421 = vsyncpa [#allocation3], 1
    %s2422 = scalar_lea.sflag [#allocation3], 1
    %2423 = vsyncpa %s2422, 1

</llo_original>
